<compile_context>
chip_gen: v6e
topology: v6e:2x2x1
jax: 0.10.0
libtpu: 0.0.40
codegen_flags: <defaults>
</compile_context>

<pallas_src>
import functools

import jax
import jax.numpy as jnp
from jax.experimental import pallas as pl
from jax.experimental.pallas import tpu as pltpu

BETA = 3.0
ALPHA = 7.0

# Tile caps. f32 worst case (tm, tk, tn) = (512, 1024, 512):
#   A 2 MiB + B 2 MiB (double-buffered) + M 1 MiB + out 2 MiB  ~= 11 MiB VMEM.
_TM_CAP = 512
_TN_CAP = 512
_TK_CAP = 1024


def _round_up(x, m):
    return ((x + m - 1) // m) * m


def _sublane_min(dtype):
    # Minimum (sublane, lane) tile: (8,128) f32, (16,128) bf16, (32,128) int8/fp8.
    return max(8, 32 // jnp.dtype(dtype).itemsize)


def _tile_and_pad(dim, cap, align):
    """Pick a tile size <= cap for `dim` with alignment `align`.

    Prefers a tile that divides the alignment-rounded dim exactly (avoids a
    jnp.pad HBM copy); pads to a multiple of the capped tile only when the
    exact divisors are unreasonably small. Returns (tile, padded_dim)."""
    dim_a = _round_up(dim, align)
    if dim_a <= cap:
        return dim_a, dim_a                       # full-extent block, no padding
    cap_a = max(align, (cap // align) * align)
    t = cap_a
    while t >= align:
        if dim_a % t == 0:
            break
        t -= align
    if t >= align and dim_a % t == 0 and t * 4 >= cap_a:
        return t, dim_a                           # good divisor, no padding
    # TODO(synk): mask the trailing tile in-kernel instead of padding operands.
    return cap_a, _round_up(dim_a, cap_a)


def _split_for_two_cores(tm, tn, Np, Pp, sub_m):
    """Ensure >=2 output tiles so v7x's two TensorCores both get work."""
    if (Np // tm) * (Pp // tn) >= 2:
        return tm, tn

    def can_halve(t, dim, align):
        h = t // 2
        return h >= align and h % align == 0 and dim % h == 0

    if can_halve(tn, Pp, 128):                    # keep output lane-dense (>=128)
        return tm, tn // 2
    if can_halve(tm, Np, sub_m):
        return tm // 2, tn
    return tm, tn


def _addmm_kernel_f32(m_ref, a_ref, b_ref, o_ref, *, beta, alpha):
    # f32 output: accumulate directly into the VMEM-resident output tile
    # (its block index ignores k), so no scratch accumulator is needed.
    k = pl.program_id(2)

    @pl.when(k == 0)
    def _():
        o_ref[...] = jnp.zeros_like(o_ref)

    o_ref[...] += jnp.dot(a_ref[...], b_ref[...],
                          preferred_element_type=jnp.float32)

    @pl.when(k == pl.num_programs(2) - 1)
    def _():
        # Epilogue once per output tile: beta*M + alpha*acc.
        o_ref[...] = beta * m_ref[...].astype(jnp.float32) + alpha * o_ref[...]


def _addmm_kernel_scratch(m_ref, a_ref, b_ref, o_ref, acc_ref, *, beta, alpha):
    # Narrow output dtypes: keep an f32 scratch accumulator, cast once at end.
    k = pl.program_id(2)

    @pl.when(k == 0)
    def _():
        acc_ref[...] = jnp.zeros_like(acc_ref)

    acc_ref[...] += jnp.dot(a_ref[...], b_ref[...],
                            preferred_element_type=jnp.float32)

    @pl.when(k == pl.num_programs(2) - 1)
    def _():
        o_ref[...] = (beta * m_ref[...].astype(jnp.float32)
                      + alpha * acc_ref[...]).astype(o_ref.dtype)


def addmm(M, mat1, mat2, *, beta=BETA, alpha=ALPHA, force_pallas=False):
    """Pallas equivalent of torch.addmm(M, mat1, mat2, beta=beta, alpha=alpha)."""
    N, K = mat1.shape
    K2, P = mat2.shape
    assert K == K2, "inner dims must match"
    out_dtype = jnp.result_type(M.dtype, mat1.dtype, mat2.dtype)

    # torch.addmm broadcasts M to (N, P); the common (N, P) case is untouched.
    if M.shape != (N, P):
        M = jnp.broadcast_to(M, (N, P))

    # Tiny problems: fixed Pallas dispatch/step overhead can't beat fused XLA.
    if not force_pallas and (2 * N * K * P) < (1 << 22):
        acc = jnp.dot(mat1, mat2, preferred_element_type=jnp.float32)
        return (beta * M.astype(jnp.float32) + alpha * acc).astype(out_dtype)

    sub_m = max(_sublane_min(mat1.dtype), _sublane_min(M.dtype),
                _sublane_min(out_dtype))

    tm, Np = _tile_and_pad(N, _TM_CAP, sub_m)
    tn, Pp = _tile_and_pad(P, _TN_CAP, 128)
    tk, Kp = _tile_and_pad(K, _TK_CAP, 128)       # lane for mat1, sublane for mat2
    tm, tn = _split_for_two_cores(tm, tn, Np, Pp, sub_m)

    def _pad(x, rows, cols):
        if x.shape == (rows, cols):
            return x
        return jnp.pad(x, ((0, rows - x.shape[0]), (0, cols - x.shape[1])))

    Mp = _pad(M, Np, Pp)
    m1p = _pad(mat1, Np, Kp)
    m2p = _pad(mat2, Kp, Pp)

    grid = (Np // tm, Pp // tn, Kp // tk)
    use_scratch = (out_dtype != jnp.float32)

    item = lambda x: jnp.dtype(x.dtype).itemsize
    out_item = jnp.dtype(out_dtype).itemsize
    vmem_need = (tm * tn * item(Mp)                       # M (single-buffered)
                 + 2 * tm * tk * item(m1p)                # mat1 (double-buffered)
                 + 2 * tk * tn * item(m2p)                # mat2 (double-buffered)
                 + 2 * tm * tn * out_item                 # output
                 + (tm * tn * 4 if use_scratch else 0))   # acc scratch
    vmem_limit = int(min(max(2 * vmem_need, 32 << 20), 48 << 20))

    cost = pl.CostEstimate(
        flops=2 * N * K * P,
        transcendentals=0,
        bytes_accessed=(N * K * item(mat1) + K * P * item(mat2)
                        + N * P * item(M) + N * P * out_item))

    kernel = functools.partial(
        _addmm_kernel_scratch if use_scratch else _addmm_kernel_f32,
        beta=beta, alpha=alpha)
    scratch = [pltpu.VMEM((tm, tn), jnp.float32)] if use_scratch else []

    def _call(m_pipeline_mode):
        if m_pipeline_mode is None:
            m_spec = pl.BlockSpec((tm, tn), lambda i, j, k: (i, j))
        else:
            m_spec = pl.BlockSpec((tm, tn), lambda i, j, k: (i, j),
                                  pipeline_mode=m_pipeline_mode)
        return pl.pallas_call(
            kernel,
            out_shape=jax.ShapeDtypeStruct((Np, Pp), out_dtype),
            grid_spec=pltpu.PrefetchScalarGridSpec(
                num_scalar_prefetch=0,
                grid=grid,
                in_specs=[
                    m_spec,                                           # M (epilogue only)
                    pl.BlockSpec((tm, tk), lambda i, j, k: (i, k)),   # mat1
                    pl.BlockSpec((tk, tn), lambda i, j, k: (k, j)),   # mat2
                ],
                out_specs=pl.BlockSpec((tm, tn), lambda i, j, k: (i, j)),
                scratch_shapes=scratch,
            ),
            compiler_params=pltpu.CompilerParams(
                dimension_semantics=("parallel", "parallel", "arbitrary"),
                vmem_limit_bytes=vmem_limit,
            ),
            cost_estimate=cost,
        )(Mp, m1p, m2p)

    if hasattr(pl, "Buffered"):
        try:
            # M is only read in the k==last epilogue -> single buffer suffices.
            out = _call(pl.Buffered(1))
        except Exception:
            out = _call(None)
    else:
        out = _call(None)

    if (Np, Pp) != (N, P):
        out = out[:N, :P]
    return out


if __name__ == "__main__":
    key = jax.random.PRNGKey(0)
    k1, k2, k3 = jax.random.split(key, 3)

    # Shape that exercises the tiled grid: full-extent tn=384, tk=1024 with
    # K accumulated directly into the VMEM-resident f32 output tile, and the
    # two-core split halving tm 256 -> 128 so the grid is (2, 1, 2).
    N, K, P = 256, 2048, 384
    M = jax.random.normal(k1, (N, P), dtype=jnp.float32)
    mat1 = jax.random.normal(k2, (N, K), dtype=jnp.float32)
    mat2 = jax.random.normal(k3, (K, P), dtype=jnp.float32)

    out = jax.block_until_ready(addmm(M, mat1, mat2))
    ref = BETA * M + ALPHA * jnp.dot(mat1, mat2,
                                     preferred_element_type=jnp.float32)
    assert out.shape == (N, P) and out.dtype == jnp.float32
    assert jnp.allclose(out, ref, atol=5e-2, rtol=5e-3), \
        float(jnp.max(jnp.abs(out - ref)))

    # Tiny, misaligned shape from the original spec, forced through Pallas to
    # validate the alignment-padding + slicing path (default wrapper would
    # dispatch this size to plain XLA).
    n, kk, p = 8, 32, 16
    Ms = jax.random.normal(k1, (n, p), dtype=jnp.float32)
    m1s = jax.random.normal(k2, (n, kk), dtype=jnp.float32)
    m2s = jax.random.normal(k3, (kk, p), dtype=jnp.float32)

    outs = jax.block_until_ready(addmm(Ms, m1s, m2s, force_pallas=True))
    refs = BETA * Ms + ALPHA * (m1s @ m2s)
    assert outs.shape == (n, p)
    assert jnp.allclose(outs, refs, atol=1e-3, rtol=1e-3), \
        float(jnp.max(jnp.abs(outs - refs)))

    print("KERNEL_OK")
</pallas_src>

<mosaic_0001>
module attributes {stable_mosaic.version = 11 : i64} {
  func.func @_addmm_kernel_f32(%arg0: i32, %arg1: i32, %arg2: i32, %arg3: memref<128x384xf32, #tpu.memory_space<vmem>>, %arg4: memref<128x1024xf32, #tpu.memory_space<vmem>>, %arg5: memref<1024x384xf32, #tpu.memory_space<vmem>>, %arg6: memref<128x384xf32, #tpu.memory_space<vmem>>) attributes {dimension_semantics = [#tpu.dimension_semantics<parallel>, #tpu.dimension_semantics<parallel>, #tpu.dimension_semantics<arbitrary>], iteration_bounds = array<i64: 2, 1, 2>, scalar_prefetch = 0 : i64, scratch_operands = 0 : i64, tpu.core_type = #tpu.core_type<tc>, window_params = [{pipeline_mode = #tpu.pipeline_mode<synchronous>, transform_indices = @transform_0, window_bounds = array<i64: 128, 384>}, {transform_indices = @transform_1, window_bounds = array<i64: 128, 1024>}, {transform_indices = @transform_2, window_bounds = array<i64: 1024, 384>}, {transform_indices = @transform_3, window_bounds = array<i64: 128, 384>}]} {
    %c0_i32 = arith.constant 0 : i32
    %0 = arith.cmpi eq, %arg2, %c0_i32 : i32
    %1 = arith.extui %0 : i1 to i32
    %c0_i32_0 = arith.constant 0 : i32
    %2 = arith.cmpi ne, %1, %c0_i32_0 : i32
    scf.if %2 {
      %cst_9 = arith.constant 0.000000e+00 : f32
      %12 = vector.broadcast %cst_9 : f32 to vector<128x384xf32>
      %c0_10 = arith.constant 0 : index
      %c0_11 = arith.constant 0 : index
      %13 = vector.load %arg6[%c0_10, %c0_11] : memref<128x384xf32, #tpu.memory_space<vmem>>, vector<128x384xf32>
      tpu.vector_store %arg6[%c0_10, %c0_11], %12 {strides = array<i32>} : memref<128x384xf32, #tpu.memory_space<vmem>>, vector<128x384xf32>,
    } else {
    }
    %c0 = arith.constant 0 : index
    %c0_1 = arith.constant 0 : index
    %3 = vector.load %arg6[%c0, %c0_1] : memref<128x384xf32, #tpu.memory_space<vmem>>, vector<128x384xf32>
    %c0_2 = arith.constant 0 : index
    %c0_3 = arith.constant 0 : index
    %4 = vector.load %arg4[%c0_2, %c0_3] : memref<128x1024xf32, #tpu.memory_space<vmem>>, vector<128x1024xf32>
    %c0_4 = arith.constant 0 : index
    %c0_5 = arith.constant 0 : index
    %5 = vector.load %arg5[%c0_4, %c0_5] : memref<1024x384xf32, #tpu.memory_space<vmem>>, vector<1024x384xf32>
    %cst = arith.constant dense<0.000000e+00> : vector<128x384xf32>
    %6 = tpu.matmul %4, %5, %cst {dimension_numbers = #tpu.dot_dimension_numbers<[1], [0], [0], [1], [0, 0, 1, 1], [], []>} : vector<128x1024xf32>, vector<1024x384xf32>, vector<128x384xf32> -> vector<128x384xf32>
    %7 = arith.addf %3, %6 : vector<128x384xf32>
    %c0_6 = arith.constant 0 : index
    %c0_7 = arith.constant 0 : index
    %8 = vector.load %arg6[%c0_6, %c0_7] : memref<128x384xf32, #tpu.memory_space<vmem>>, vector<128x384xf32>
    tpu.vector_store %arg6[%c0_6, %c0_7], %7 {strides = array<i32>} : memref<128x384xf32, #tpu.memory_space<vmem>>, vector<128x384xf32>,
    %c1_i32 = arith.constant 1 : i32
    %9 = arith.cmpi eq, %arg2, %c1_i32 : i32
    %10 = arith.extui %9 : i1 to i32
    %c0_i32_8 = arith.constant 0 : i32
    %11 = arith.cmpi ne, %10, %c0_i32_8 : i32
    scf.if %11 {
      %c0_9 = arith.constant 0 : index
      %c0_10 = arith.constant 0 : index
      %12 = vector.load %arg3[%c0_9, %c0_10] : memref<128x384xf32, #tpu.memory_space<vmem>>, vector<128x384xf32>
      %cst_11 = arith.constant 3.000000e+00 : f32
      %13 = vector.broadcast %cst_11 : f32 to vector<128x384xf32>
      %14 = arith.mulf %13, %12 : vector<128x384xf32>
      %c0_12 = arith.constant 0 : index
      %c0_13 = arith.constant 0 : index
      %15 = vector.load %arg6[%c0_12, %c0_13] : memref<128x384xf32, #tpu.memory_space<vmem>>, vector<128x384xf32>
      %cst_14 = arith.constant 7.000000e+00 : f32
      %16 = vector.broadcast %cst_14 : f32 to vector<128x384xf32>
      %17 = arith.mulf %16, %15 : vector<128x384xf32>
      %18 = arith.addf %14, %17 : vector<128x384xf32>
      %c0_15 = arith.constant 0 : index
      %c0_16 = arith.constant 0 : index
      %19 = vector.load %arg6[%c0_15, %c0_16] : memref<128x384xf32, #tpu.memory_space<vmem>>, vector<128x384xf32>
      tpu.vector_store %arg6[%c0_15, %c0_16], %18 {strides = array<i32>} : memref<128x384xf32, #tpu.memory_space<vmem>>, vector<128x384xf32>,
    } else {
    }
    return
  }
  func.func @transform_0(%arg0: i32, %arg1: i32, %arg2: i32) -> (i32, i32) {
    %c0_i32 = arith.constant 0 : i32
    return %arg0, %arg1 : i32, i32
  }
  func.func @transform_1(%arg0: i32, %arg1: i32, %arg2: i32) -> (i32, i32) {
    %c0_i32 = arith.constant 0 : i32
    return %arg0, %arg2 : i32, i32
  }
  func.func @transform_2(%arg0: i32, %arg1: i32, %arg2: i32) -> (i32, i32) {
    %c0_i32 = arith.constant 0 : i32
    return %arg2, %arg1 : i32, i32
  }
  func.func @transform_3(%arg0: i32, %arg1: i32, %arg2: i32) -> (i32, i32) {
    %c0_i32 = arith.constant 0 : i32
    return %arg0, %arg1 : i32, i32
  }
}

module attributes {stable_mosaic.version = 11 : i64} {
  func.func @_addmm_kernel_f32(%arg0: i32, %arg1: i32, %arg2: i32, %arg3: memref<128x384xf32, #tpu.memory_space<vmem>>, %arg4: memref<128x1024xf32, #tpu.memory_space<vmem>>, %arg5: memref<1024x384xf32, #tpu.memory_space<vmem>>, %arg6: memref<128x384xf32, #tpu.memory_space<vmem>>) attributes {dimension_semantics = [#tpu.dimension_semantics<parallel>, #tpu.dimension_semantics<parallel>, #tpu.dimension_semantics<arbitrary>], iteration_bounds = array<i64: 2, 1, 2>, scalar_prefetch = 0 : i64, scratch_operands = 0 : i64, tpu.core_type = #tpu.core_type<tc>, window_params = [{transform_indices = @transform_0, window_bounds = array<i64: 128, 384>}, {transform_indices = @transform_1, window_bounds = array<i64: 128, 1024>}, {transform_indices = @transform_2, window_bounds = array<i64: 1024, 384>}, {transform_indices = @transform_3, window_bounds = array<i64: 128, 384>}]} {
    %c0_i32 = arith.constant 0 : i32
    %0 = arith.cmpi eq, %arg2, %c0_i32 : i32
    %1 = arith.extui %0 : i1 to i32
    %c0_i32_0 = arith.constant 0 : i32
    %2 = arith.cmpi ne, %1, %c0_i32_0 : i32
    scf.if %2 {
      %cst_9 = arith.constant 0.000000e+00 : f32
      %12 = vector.broadcast %cst_9 : f32 to vector<128x384xf32>
      %c0_10 = arith.constant 0 : index
      %c0_11 = arith.constant 0 : index
      %13 = vector.load %arg6[%c0_10, %c0_11] : memref<128x384xf32, #tpu.memory_space<vmem>>, vector<128x384xf32>
      tpu.vector_store %arg6[%c0_10, %c0_11], %12 {strides = array<i32>} : memref<128x384xf32, #tpu.memory_space<vmem>>, vector<128x384xf32>,
    } else {
    }
    %c0 = arith.constant 0 : index
    %c0_1 = arith.constant 0 : index
    %3 = vector.load %arg6[%c0, %c0_1] : memref<128x384xf32, #tpu.memory_space<vmem>>, vector<128x384xf32>
    %c0_2 = arith.constant 0 : index
    %c0_3 = arith.constant 0 : index
    %4 = vector.load %arg4[%c0_2, %c0_3] : memref<128x1024xf32, #tpu.memory_space<vmem>>, vector<128x1024xf32>
    %c0_4 = arith.constant 0 : index
    %c0_5 = arith.constant 0 : index
    %5 = vector.load %arg5[%c0_4, %c0_5] : memref<1024x384xf32, #tpu.memory_space<vmem>>, vector<1024x384xf32>
    %cst = arith.constant dense<0.000000e+00> : vector<128x384xf32>
    %6 = tpu.matmul %4, %5, %cst {dimension_numbers = #tpu.dot_dimension_numbers<[1], [0], [0], [1], [0, 0, 1, 1], [], []>} : vector<128x1024xf32>, vector<1024x384xf32>, vector<128x384xf32> -> vector<128x384xf32>
    %7 = arith.addf %3, %6 : vector<128x384xf32>
    %c0_6 = arith.constant 0 : index
    %c0_7 = arith.constant 0 : index
    %8 = vector.load %arg6[%c0_6, %c0_7] : memref<128x384xf32, #tpu.memory_space<vmem>>, vector<128x384xf32>
    tpu.vector_store %arg6[%c0_6, %c0_7], %7 {strides = array<i32>} : memref<128x384xf32, #tpu.memory_space<vmem>>, vector<128x384xf32>,
    %c1_i32 = arith.constant 1 : i32
    %9 = arith.cmpi eq, %arg2, %c1_i32 : i32
    %10 = arith.extui %9 : i1 to i32
    %c0_i32_8 = arith.constant 0 : i32
    %11 = arith.cmpi ne, %10, %c0_i32_8 : i32
    scf.if %11 {
      %c0_9 = arith.constant 0 : index
      %c0_10 = arith.constant 0 : index
      %12 = vector.load %arg3[%c0_9, %c0_10] : memref<128x384xf32, #tpu.memory_space<vmem>>, vector<128x384xf32>
      %cst_11 = arith.constant 3.000000e+00 : f32
      %13 = vector.broadcast %cst_11 : f32 to vector<128x384xf32>
      %14 = arith.mulf %13, %12 : vector<128x384xf32>
      %c0_12 = arith.constant 0 : index
      %c0_13 = arith.constant 0 : index
      %15 = vector.load %arg6[%c0_12, %c0_13] : memref<128x384xf32, #tpu.memory_space<vmem>>, vector<128x384xf32>
      %cst_14 = arith.constant 7.000000e+00 : f32
      %16 = vector.broadcast %cst_14 : f32 to vector<128x384xf32>
      %17 = arith.mulf %16, %15 : vector<128x384xf32>
      %18 = arith.addf %14, %17 : vector<128x384xf32>
      %c0_15 = arith.constant 0 : index
      %c0_16 = arith.constant 0 : index
      %19 = vector.load %arg6[%c0_15, %c0_16] : memref<128x384xf32, #tpu.memory_space<vmem>>, vector<128x384xf32>
      tpu.vector_store %arg6[%c0_15, %c0_16], %18 {strides = array<i32>} : memref<128x384xf32, #tpu.memory_space<vmem>>, vector<128x384xf32>,
    } else {
    }
    return
  }
  func.func @transform_0(%arg0: i32, %arg1: i32, %arg2: i32) -> (i32, i32) {
    %c0_i32 = arith.constant 0 : i32
    return %arg0, %arg1 : i32, i32
  }
  func.func @transform_1(%arg0: i32, %arg1: i32, %arg2: i32) -> (i32, i32) {
    %c0_i32 = arith.constant 0 : i32
    return %arg0, %arg2 : i32, i32
  }
  func.func @transform_2(%arg0: i32, %arg1: i32, %arg2: i32) -> (i32, i32) {
    %c0_i32 = arith.constant 0 : i32
    return %arg2, %arg1 : i32, i32
  }
  func.func @transform_3(%arg0: i32, %arg1: i32, %arg2: i32) -> (i32, i32) {
    %c0_i32 = arith.constant 0 : i32
    return %arg0, %arg1 : i32, i32
  }
}

</mosaic_0001>

<llo_original>
// kernel: tpu_custom_call.1
$region0: #{tpu_custom_call.1}
  #allocation0 [shape = 'u32[]', space=smem, size = 0x4, offset = 0x4, fixed_abs, tag = 'smem constant byte address 0x4 - core index']
  #allocation1 [shape = 'u32[144,128]{1,0:T(1,128)}', space=vmem, size = 0x12000, scoped, tag = 'internal scratch']
  %s0 = inlined_call_operand.hbm [shape: f32[256,384], index: 0, kind: input, shape index: {}]
  %s1 = inlined_call_operand.hbm [shape: f32[256,2048], index: 1, kind: input, shape index: {}]
  %s2 = inlined_call_operand.hbm [shape: f32[2048,384], index: 2, kind: input, shape index: {}]
  %s3 = inlined_call_operand.hbm [shape: f32[256,384], index: 3, kind: output, shape index: {}]
  %s4 = sld [smem:[#allocation0]]
  $region65: #{tpu_custom_call.1} parent=0
    _
  %s6 = ssub.s32 1, %s4
  %s7 = scalar_select 0, %s6, %s4
  $region1: #{tpu_custom_call.1} parent=0
    #allocation2 [shape = 'u8[196608]{0}', space=vmem, size = 0x30000, scoped, tag = 'input window, operand 0, single buffered']
    #allocation3 [shape = 's32[2]{0}', space=sflag, size = 0x8, scoped, tag = 'scoped memory for tpu_custom_call.1']
    #allocation4 [shape = 's32[2]{0}', space=sflag, size = 0x8, scoped, tag = 'scoped memory for tpu_custom_call.1']
    #allocation5 [shape = 'u8[1048576]{0}', space=vmem, size = 0x100000, scoped, tag = 'input window, operand 1']
    #allocation6 [shape = 's32[2]{0}', space=sflag, size = 0x8, scoped, tag = 'scoped memory for tpu_custom_call.1']
    #allocation7 [shape = 'u8[3145728]{0}', space=vmem, size = 0x300000, scoped, tag = 'input window, operand 2']
    #allocation8 [shape = 'u8[393216]{0}', space=vmem, size = 0x60000, scoped, tag = 'output window, operand 0']
    %8 = vsyncpa [#allocation3], 0
    %9 = vsyncpa [#allocation6], 0
    %s10 = scalar_lea.sflag [#allocation6], 1
    %11 = vsyncpa %s10, 0
    %12 = vsyncpa [#allocation4], 0
    %s13 = scalar_lea.sflag [#allocation4], 1
    %14 = vsyncpa %s13, 0
    loop: start=0, step=1, limit=6
    $region2: #{tpu_custom_call.1} parent=1 // loop_pre_header
      _
    $region3: #{tpu_custom_call.1} parent=1 // loop_header
      %s16 = sphi 0, %s20
      %p17 = scmp.ge.s32.totalorder %s16, 6
      %s23 = sphi 0, %s42
      %s24 = sphi 0, %s38
      %s25 = sphi 0, %s34
      %s26 = sphi 0, %s23
      %s27 = sphi 0, %s24
      %s28 = sphi 0, %s25
      %s29 = sphi 0, %s26
      %s30 = sphi 0, %s27
      %s31 = sphi 0, %s28
      %s47 = sphi 0, %s49
      %s50 = sphi 0, %s47
      %s51 = sphi 0, %s50
      %s67 = sphi 0, %s51
      %s75 = sphi 0, %s77
      %s78 = sphi 0, %s75
      %s79 = sphi 0, %s78
      %s95 = sphi 0, %s79
      %s103 = sphi 0, %s105
      %s106 = sphi 0, %s103
      %s107 = sphi 0, %s106
      %s123 = sphi 0, %s107
      %s131 = sphi 0, %s133
      %s134 = sphi 0, %s131
      %s135 = sphi 0, %s134
      %s151 = sphi 0, %s135
    $region4: #{tpu_custom_call.1} parent=1 // loop_header_branch
      %19 = sbr.rel (%p17) target = $region8
    $region5: #{tpu_custom_call.1} parent=1 // loop_body
      %s21 = ssub.s32 %s16, 1
      %s22 = ssub.s32 %s16, 2
      %s32 = sadd.s32 1, %s25
      %p33 = scmp.ge.s32.totalorder %s32, 2
      %s34 = scalar_select %p33, 0, %s32
      %s35 = sadd.s32 1, %s24
      %s36 = scalar_select %p33, %s35, %s24
      %p37 = scmp.ge.s32.totalorder %s36, 1
      %s38 = scalar_select %p37, 0, %s36
      %s39 = sadd.s32 1, %s23
      %s40 = scalar_select %p37, %s39, %s23
      %p41 = scmp.ge.s32.totalorder %s40, 2
      %s42 = scalar_select %p41, 0, %s40
      %s43 = ssub.s32 %s23, %s42
      %s44 = ssub.s32 %s24, %s38
      %s45 = sor.u32 %s43, %s44
      %p46 = scmp.eq.s32.totalorder %s45, 0
      %s48 = sadd.s32 %s47, 1
      %s49 = scalar_select %p46, %s47, %s48
      %p52 = pneg %p46
      %p53 = scmp.eq.s32.totalorder %s16, 3
      %p54 = por %p52, %p53
      %p55 = scmp.ne.s32.totalorder %s47, %s50
      %p56 = scmp.eq.s32.totalorder %s16, 0
      %p57 = por %p55, %p56
      %p58 = scmp.ne.s32.totalorder %s47, %s50
      %p59 = scmp.eq.s32.totalorder %s21, 3
      %p60 = por %p58, %p59
      %p61 = scmp.ne.s32.totalorder %s50, %s51
      %p62 = scmp.eq.s32.totalorder %s21, 0
      %p63 = por %p61, %p62
      %p64 = scmp.ne.s32.totalorder %s50, %s51
      %p65 = scmp.eq.s32.totalorder %s22, 3
      %p66 = por %p64, %p65
      %p68 = scmp.ne.s32.totalorder %s51, %s67
      %p69 = scmp.eq.s32.totalorder %s22, 0
      %p70 = por %p68, %p69
      %s71 = ssub.s32 %s23, %s42
      %s72 = ssub.s32 %s25, %s34
      %s73 = sor.u32 %s71, %s72
      %p74 = scmp.eq.s32.totalorder %s73, 0
      %s76 = sadd.s32 %s75, 1
      %s77 = scalar_select %p74, %s75, %s76
      %p80 = pneg %p74
      %p81 = scmp.eq.s32.totalorder %s16, 3
      %p82 = por %p80, %p81
      %p83 = scmp.ne.s32.totalorder %s75, %s78
      %p84 = scmp.eq.s32.totalorder %s16, 0
      %p85 = por %p83, %p84
      %p86 = scmp.ne.s32.totalorder %s75, %s78
      %p87 = scmp.eq.s32.totalorder %s21, 3
      %p88 = por %p86, %p87
      %p89 = scmp.ne.s32.totalorder %s78, %s79
      %p90 = scmp.eq.s32.totalorder %s21, 0
      %p91 = por %p89, %p90
      %p92 = scmp.ne.s32.totalorder %s78, %s79
      %p93 = scmp.eq.s32.totalorder %s22, 3
      %p94 = por %p92, %p93
      %p96 = scmp.ne.s32.totalorder %s79, %s95
      %p97 = scmp.eq.s32.totalorder %s22, 0
      %p98 = por %p96, %p97
      %s99 = ssub.s32 %s25, %s34
      %s100 = ssub.s32 %s24, %s38
      %s101 = sor.u32 %s99, %s100
      %p102 = scmp.eq.s32.totalorder %s101, 0
      %s104 = sadd.s32 %s103, 1
      %s105 = scalar_select %p102, %s103, %s104
      %p108 = pneg %p102
      %p109 = scmp.eq.s32.totalorder %s16, 3
      %p110 = por %p108, %p109
      %p111 = scmp.ne.s32.totalorder %s103, %s106
      %p112 = scmp.eq.s32.totalorder %s16, 0
      %p113 = por %p111, %p112
      %p114 = scmp.ne.s32.totalorder %s103, %s106
      %p115 = scmp.eq.s32.totalorder %s21, 3
      %p116 = por %p114, %p115
      %p117 = scmp.ne.s32.totalorder %s106, %s107
      %p118 = scmp.eq.s32.totalorder %s21, 0
      %p119 = por %p117, %p118
      %p120 = scmp.ne.s32.totalorder %s106, %s107
      %p121 = scmp.eq.s32.totalorder %s22, 3
      %p122 = por %p120, %p121
      %p124 = scmp.ne.s32.totalorder %s107, %s123
      %p125 = scmp.eq.s32.totalorder %s22, 0
      %p126 = por %p124, %p125
      %s127 = ssub.s32 %s23, %s42
      %s128 = ssub.s32 %s24, %s38
      %s129 = sor.u32 %s127, %s128
      %p130 = scmp.eq.s32.totalorder %s129, 0
      %s132 = sadd.s32 %s131, 1
      %s133 = scalar_select %p130, %s131, %s132
      %p136 = pneg %p130
      %p137 = scmp.eq.s32.totalorder %s16, 3
      %p138 = por %p136, %p137
      %p139 = scmp.ne.s32.totalorder %s131, %s134
      %p140 = scmp.eq.s32.totalorder %s16, 0
      %p141 = por %p139, %p140
      %p142 = scmp.ne.s32.totalorder %s131, %s134
      %p143 = scmp.eq.s32.totalorder %s21, 3
      %p144 = por %p142, %p143
      %p145 = scmp.ne.s32.totalorder %s134, %s135
      %p146 = scmp.eq.s32.totalorder %s21, 0
      %p147 = por %p145, %p146
      %p148 = scmp.ne.s32.totalorder %s134, %s135
      %p149 = scmp.eq.s32.totalorder %s22, 3
      %p150 = por %p148, %p149
      %p152 = scmp.ne.s32.totalorder %s135, %s151
      %p153 = scmp.eq.s32.totalorder %s22, 0
      %p154 = por %p152, %p153
      %p155 = scmp.le.s32.totalorder 1, %s16
      %p156 = scmp.lt.s32.totalorder %s16, 5
      %p157 = pnand %p155, %p156
      %p158 = pneg %p157
      // Predicated region
      $region9: #{tpu_custom_call.1} parent=5 // pred_check
        _
      $region10: #{tpu_custom_call.1} parent=5 // pred_check_branch
        %160 = sbr.rel (%p157) target = $region12
      $region11: #{tpu_custom_call.1} parent=5 // pred_region
        %s161 = ssub.s32 %s16, 1
        // Predicated region
        $region13: #{tpu_custom_call.1} parent=11 // pred_check
          %p162 = pneg %p63
        $region14: #{tpu_custom_call.1} parent=11 // pred_check_branch
          %164 = sbr.rel (%p162) target = $region16
        $region15: #{tpu_custom_call.1} parent=11 // pred_region
          %s165 = smul.u32 16, %s26
          %s166 = smul.u32 3, %s27
          %s168 = ssub.s32 6144, 6144
          %169 = vsyncadd [#allocation3], %s168
          %s170 = smul.addr %s165, 3
          %s171 = sadd.s32 %s166, %s170
          %s172 = smul.addr %s171, 128
          %s173 = scalar_lea.hbm %s0, %s172
          %s174 = sshll.u32 [#allocation2], 4
          %s175 = int_to_ptr.vmem [resolvable:$true] %s174
          %180 = dma.hbm_to_vmem [thread:$0]  %s173, 6144, %s175, [#allocation3], 384, 384, 24
        $region16: #{tpu_custom_call.1} parent=11 // pred_fallthru
          _
      $region12: #{tpu_custom_call.1} parent=5 // pred_fallthru
        _
      %p181 = scmp.lt.s32.totalorder %s16, 4
      // Predicated region
      $region17: #{tpu_custom_call.1} parent=5 // pred_check
        %p182 = pneg %p181
      $region18: #{tpu_custom_call.1} parent=5 // pred_check_branch
        %184 = sbr.rel (%p182) target = $region20
      $region19: #{tpu_custom_call.1} parent=5 // pred_region
        // Predicated region
        $region21: #{tpu_custom_call.1} parent=19 // pred_check
          %p185 = pneg %p85
        $region22: #{tpu_custom_call.1} parent=19 // pred_check_branch
          %187 = sbr.rel (%p185) target = $region24
        $region23: #{tpu_custom_call.1} parent=19 // pred_region
          %s188 = sand.u32 %s16, 1
          %s189 = scalar_lea.sflag [#allocation6], %s188
          %s190 = sand.u32 %s75, 1
          %s191 = smul.addr %s190, 1024
          %s192 = scalar_lea.vmem [#allocation5], %s191
          %s193 = smul.u32 16, %s23
          %s194 = smul.u32 8, %s25
          %s196 = ssub.s32 16384, 16384
          %197 = vsyncadd %s189, %s196
          %s198 = smul.addr %s193, 16
          %s199 = sadd.s32 %s194, %s198
          %s200 = smul.addr %s199, 128
          %s201 = scalar_lea.hbm %s1, %s200
          %s202 = sshll.u32 %s192, 4
          %s203 = int_to_ptr.vmem [resolvable:$true] %s202
          %208 = dma.hbm_to_vmem [thread:$0]  %s201, 16384, %s203, %s189, 2048, 1024, 64
        $region24: #{tpu_custom_call.1} parent=19 // pred_fallthru
          _
        // Predicated region
        $region25: #{tpu_custom_call.1} parent=19 // pred_check
          %p209 = pneg %p113
        $region26: #{tpu_custom_call.1} parent=19 // pred_check_branch
          %211 = sbr.rel (%p209) target = $region28
        $region27: #{tpu_custom_call.1} parent=19 // pred_region
          %s212 = sand.u32 %s16, 1
          %s213 = scalar_lea.sflag [#allocation6], %s212
          %s214 = sand.u32 %s103, 1
          %s215 = smul.addr %s214, 3072
          %s216 = scalar_lea.vmem [#allocation7], %s215
          %s217 = smul.u32 128, %s25
          %s218 = smul.u32 3, %s24
          %s220 = ssub.s32 49152, 49152
          %221 = vsyncadd %s213, %s220
          %s222 = smul.addr %s217, 3
          %s223 = sadd.s32 %s218, %s222
          %s224 = smul.addr %s223, 128
          %s225 = scalar_lea.hbm %s2, %s224
          %s226 = sshll.u32 %s216, 4
          %s227 = int_to_ptr.vmem [resolvable:$true] %s226
          %232 = dma.hbm_to_vmem [thread:$0]  %s225, 49152, %s227, %s213, 384, 384, 24
        $region28: #{tpu_custom_call.1} parent=19 // pred_fallthru
          _
      $region20: #{tpu_custom_call.1} parent=5 // pred_fallthru
        _
      %p233 = scmp.le.s32.totalorder 1, %s16
      %p234 = scmp.lt.s32.totalorder %s16, 5
      %p235 = pnand %p233, %p234
      %p236 = pneg %p235
      // Predicated region
      $region29: #{tpu_custom_call.1} parent=5 // pred_check
        _
      $region30: #{tpu_custom_call.1} parent=5 // pred_check_branch
        %238 = sbr.rel (%p235) target = $region32
      $region31: #{tpu_custom_call.1} parent=5 // pred_region
        %s239 = ssub.s32 %s16, 1
        // Predicated region
        $region33: #{tpu_custom_call.1} parent=31 // pred_check
          %p240 = pneg %p63
        $region34: #{tpu_custom_call.1} parent=31 // pred_check_branch
          %242 = sbr.rel (%p240) target = $region36
        $region35: #{tpu_custom_call.1} parent=31 // pred_region
          %243 = dma.done [#allocation3], 6144
        $region36: #{tpu_custom_call.1} parent=31 // pred_fallthru
          _
        %s244 = sand.u32 %s21, 1
        %s245 = scalar_lea.sflag [#allocation6], %s244
        %s246 = sand.u32 %s78, 1
        %s247 = smul.addr %s246, 1024
        %s248 = scalar_lea.vmem [#allocation5], %s247
        // Predicated region
        $region37: #{tpu_custom_call.1} parent=31 // pred_check
          %p249 = pneg %p91
        $region38: #{tpu_custom_call.1} parent=31 // pred_check_branch
          %251 = sbr.rel (%p249) target = $region40
        $region39: #{tpu_custom_call.1} parent=31 // pred_region
          %252 = dma.done %s245, 16384
        $region40: #{tpu_custom_call.1} parent=31 // pred_fallthru
          _
        %s253 = sand.u32 %s21, 1
        %s254 = scalar_lea.sflag [#allocation6], %s253
        %s255 = sand.u32 %s106, 1
        %s256 = smul.addr %s255, 3072
        %s257 = scalar_lea.vmem [#allocation7], %s256
        // Predicated region
        $region41: #{tpu_custom_call.1} parent=31 // pred_check
          %p258 = pneg %p119
        $region42: #{tpu_custom_call.1} parent=31 // pred_check_branch
          %260 = sbr.rel (%p258) target = $region44
        $region43: #{tpu_custom_call.1} parent=31 // pred_region
          %261 = dma.done %s254, 49152
        $region44: #{tpu_custom_call.1} parent=31 // pred_fallthru
          _
        %p262 = pneg %p63
        %p263 = pneg %p60
        %s264 = sand.u32 %s21, 1
        %s265 = scalar_lea.sflag [#allocation6], %s264
        %s266 = sand.u32 %s78, 1
        %s267 = smul.addr %s266, 1024
        %s268 = scalar_lea.vmem [#allocation5], %s267
        %p269 = pneg %p91
        %p270 = pneg %p88
        %s271 = sand.u32 %s21, 1
        %s272 = scalar_lea.sflag [#allocation6], %s271
        %s273 = sand.u32 %s106, 1
        %s274 = smul.addr %s273, 3072
        %s275 = scalar_lea.vmem [#allocation7], %s274
        %p276 = pneg %p119
        %p277 = pneg %p116
        %p278 = pneg %p147
        %p279 = pneg %p144
        %s280 = sand.u32 %s134, 1
        %s281 = scalar_lea.sflag [#allocation4], %s280
        %s282 = sand.u32 %s134, 1
        %s283 = smul.addr %s282, 384
        %s284 = scalar_lea.vmem [#allocation8], %s283
        %s285 = smul.u32 16, %s26
        %s286 = smul.u32 3, %s27
        %s287 = smul.u32 16, %s26
        %s288 = smul.u32 8, %s28
        %s289 = smul.u32 128, %s28
        %s290 = smul.u32 3, %s27
        %s291 = smul.u32 16, %s26
        %s292 = smul.u32 3, %s27
        %p293 = scmp.eq.s32.totalorder %s28, 0
        // Predicated region
        $region45: #{tpu_custom_call.1} parent=31 // pred_check
          %p294 = pneg %p293
        $region46: #{tpu_custom_call.1} parent=31 // pred_check_branch
          %296 = sbr.rel (%p294) target = $region48
        $region47: #{tpu_custom_call.1} parent=31 // pred_region
          %297 = vst [vmem:[%s284] sm:$0xff] 0.0
          %298 = vst [vmem:[%s284 + $0x8] sm:$0xff] 0.0
          %299 = vst [vmem:[%s284 + $0x10] sm:$0xff] 0.0
          %300 = vst [vmem:[%s284 + $0x18] sm:$0xff] 0.0
          %301 = vst [vmem:[%s284 + $0x20] sm:$0xff] 0.0
          %302 = vst [vmem:[%s284 + $0x28] sm:$0xff] 0.0
          %303 = vst [vmem:[%s284 + $0x30] sm:$0xff] 0.0
          %304 = vst [vmem:[%s284 + $0x38] sm:$0xff] 0.0
          %305 = vst [vmem:[%s284 + $0x40] sm:$0xff] 0.0
          %306 = vst [vmem:[%s284 + $0x48] sm:$0xff] 0.0
          %307 = vst [vmem:[%s284 + $0x50] sm:$0xff] 0.0
          %308 = vst [vmem:[%s284 + $0x58] sm:$0xff] 0.0
          %309 = vst [vmem:[%s284 + $0x60] sm:$0xff] 0.0
          %310 = vst [vmem:[%s284 + $0x68] sm:$0xff] 0.0
          %311 = vst [vmem:[%s284 + $0x70] sm:$0xff] 0.0
          %312 = vst [vmem:[%s284 + $0x78] sm:$0xff] 0.0
          %313 = vst [vmem:[%s284 + $0x80] sm:$0xff] 0.0
          %314 = vst [vmem:[%s284 + $0x88] sm:$0xff] 0.0
          %315 = vst [vmem:[%s284 + $0x90] sm:$0xff] 0.0
          %316 = vst [vmem:[%s284 + $0x98] sm:$0xff] 0.0
          %317 = vst [vmem:[%s284 + $0xa0] sm:$0xff] 0.0
          %318 = vst [vmem:[%s284 + $0xa8] sm:$0xff] 0.0
          %319 = vst [vmem:[%s284 + $0xb0] sm:$0xff] 0.0
          %320 = vst [vmem:[%s284 + $0xb8] sm:$0xff] 0.0
          %321 = vst [vmem:[%s284 + $0xc0] sm:$0xff] 0.0
          %322 = vst [vmem:[%s284 + $0xc8] sm:$0xff] 0.0
          %323 = vst [vmem:[%s284 + $0xd0] sm:$0xff] 0.0
          %324 = vst [vmem:[%s284 + $0xd8] sm:$0xff] 0.0
          %325 = vst [vmem:[%s284 + $0xe0] sm:$0xff] 0.0
          %326 = vst [vmem:[%s284 + $0xe8] sm:$0xff] 0.0
          %327 = vst [vmem:[%s284 + $0xf0] sm:$0xff] 0.0
          %328 = vst [vmem:[%s284 + $0xf8] sm:$0xff] 0.0
          %329 = vst [vmem:[%s284 + $0x100] sm:$0xff] 0.0
          %330 = vst [vmem:[%s284 + $0x108] sm:$0xff] 0.0
          %331 = vst [vmem:[%s284 + $0x110] sm:$0xff] 0.0
          %332 = vst [vmem:[%s284 + $0x118] sm:$0xff] 0.0
          %333 = vst [vmem:[%s284 + $0x120] sm:$0xff] 0.0
          %334 = vst [vmem:[%s284 + $0x128] sm:$0xff] 0.0
          %335 = vst [vmem:[%s284 + $0x130] sm:$0xff] 0.0
          %336 = vst [vmem:[%s284 + $0x138] sm:$0xff] 0.0
          %337 = vst [vmem:[%s284 + $0x140] sm:$0xff] 0.0
          %338 = vst [vmem:[%s284 + $0x148] sm:$0xff] 0.0
          %339 = vst [vmem:[%s284 + $0x150] sm:$0xff] 0.0
          %340 = vst [vmem:[%s284 + $0x158] sm:$0xff] 0.0
          %341 = vst [vmem:[%s284 + $0x160] sm:$0xff] 0.0
          %342 = vst [vmem:[%s284 + $0x168] sm:$0xff] 0.0
          %343 = vst [vmem:[%s284 + $0x170] sm:$0xff] 0.0
          %344 = vst [vmem:[%s284 + $0x178] sm:$0xff] 0.0
        $region48: #{tpu_custom_call.1} parent=31 // pred_fallthru
          _
        %v345 = vld [vmem:[%s284] sm:$0xff]
        %v346 = vld [vmem:[%s284 + $0x8] sm:$0xff]
        %v347 = vld [vmem:[%s284 + $0x10] sm:$0xff]
        %v348 = vld [vmem:[%s284 + $0x18] sm:$0xff]
        %v349 = vld [vmem:[%s284 + $0x20] sm:$0xff]
        %v350 = vld [vmem:[%s284 + $0x28] sm:$0xff]
        %v351 = vld [vmem:[%s284 + $0x30] sm:$0xff]
        %v352 = vld [vmem:[%s284 + $0x38] sm:$0xff]
        %v353 = vld [vmem:[%s284 + $0x40] sm:$0xff]
        %v354 = vld [vmem:[%s284 + $0x48] sm:$0xff]
        %v355 = vld [vmem:[%s284 + $0x50] sm:$0xff]
        %v356 = vld [vmem:[%s284 + $0x58] sm:$0xff]
        %v357 = vld [vmem:[%s284 + $0x60] sm:$0xff]
        %v358 = vld [vmem:[%s284 + $0x68] sm:$0xff]
        %v359 = vld [vmem:[%s284 + $0x70] sm:$0xff]
        %v360 = vld [vmem:[%s284 + $0x78] sm:$0xff]
        %v361 = vld [vmem:[%s284 + $0x80] sm:$0xff]
        %v362 = vld [vmem:[%s284 + $0x88] sm:$0xff]
        %v363 = vld [vmem:[%s284 + $0x90] sm:$0xff]
        %v364 = vld [vmem:[%s284 + $0x98] sm:$0xff]
        %v365 = vld [vmem:[%s284 + $0xa0] sm:$0xff]
        %v366 = vld [vmem:[%s284 + $0xa8] sm:$0xff]
        %v367 = vld [vmem:[%s284 + $0xb0] sm:$0xff]
        %v368 = vld [vmem:[%s284 + $0xb8] sm:$0xff]
        %v369 = vld [vmem:[%s284 + $0xc0] sm:$0xff]
        %v370 = vld [vmem:[%s284 + $0xc8] sm:$0xff]
        %v371 = vld [vmem:[%s284 + $0xd0] sm:$0xff]
        %v372 = vld [vmem:[%s284 + $0xd8] sm:$0xff]
        %v373 = vld [vmem:[%s284 + $0xe0] sm:$0xff]
        %v374 = vld [vmem:[%s284 + $0xe8] sm:$0xff]
        %v375 = vld [vmem:[%s284 + $0xf0] sm:$0xff]
        %v376 = vld [vmem:[%s284 + $0xf8] sm:$0xff]
        %v377 = vld [vmem:[%s284 + $0x100] sm:$0xff]
        %v378 = vld [vmem:[%s284 + $0x108] sm:$0xff]
        %v379 = vld [vmem:[%s284 + $0x110] sm:$0xff]
        %v380 = vld [vmem:[%s284 + $0x118] sm:$0xff]
        %v381 = vld [vmem:[%s284 + $0x120] sm:$0xff]
        %v382 = vld [vmem:[%s284 + $0x128] sm:$0xff]
        %v383 = vld [vmem:[%s284 + $0x130] sm:$0xff]
        %v384 = vld [vmem:[%s284 + $0x138] sm:$0xff]
        %v385 = vld [vmem:[%s284 + $0x140] sm:$0xff]
        %v386 = vld [vmem:[%s284 + $0x148] sm:$0xff]
        %v387 = vld [vmem:[%s284 + $0x150] sm:$0xff]
        %v388 = vld [vmem:[%s284 + $0x158] sm:$0xff]
        %v389 = vld [vmem:[%s284 + $0x160] sm:$0xff]
        %v390 = vld [vmem:[%s284 + $0x168] sm:$0xff]
        %v391 = vld [vmem:[%s284 + $0x170] sm:$0xff]
        %v392 = vld [vmem:[%s284 + $0x178] sm:$0xff]
        %v393 = vld [vmem:[%s248] sm:$0xff]
        %v394 = vld [vmem:[%s248 + $0x8] sm:$0xff]
        %v395 = vld [vmem:[%s248 + $0x10] sm:$0xff]
        %v396 = vld [vmem:[%s248 + $0x18] sm:$0xff]
        %v397 = vld [vmem:[%s248 + $0x20] sm:$0xff]
        %v398 = vld [vmem:[%s248 + $0x28] sm:$0xff]
        %v399 = vld [vmem:[%s248 + $0x30] sm:$0xff]
        %v400 = vld [vmem:[%s248 + $0x38] sm:$0xff]
        %v401 = vld [vmem:[%s248 + $0x40] sm:$0xff]
        %v402 = vld [vmem:[%s248 + $0x48] sm:$0xff]
        %v403 = vld [vmem:[%s248 + $0x50] sm:$0xff]
        %v404 = vld [vmem:[%s248 + $0x58] sm:$0xff]
        %v405 = vld [vmem:[%s248 + $0x60] sm:$0xff]
        %v406 = vld [vmem:[%s248 + $0x68] sm:$0xff]
        %v407 = vld [vmem:[%s248 + $0x70] sm:$0xff]
        %v408 = vld [vmem:[%s248 + $0x78] sm:$0xff]
        %v409 = vld [vmem:[%s248 + $0x80] sm:$0xff]
        %v410 = vld [vmem:[%s248 + $0x88] sm:$0xff]
        %v411 = vld [vmem:[%s248 + $0x90] sm:$0xff]
        %v412 = vld [vmem:[%s248 + $0x98] sm:$0xff]
        %v413 = vld [vmem:[%s248 + $0xa0] sm:$0xff]
        %v414 = vld [vmem:[%s248 + $0xa8] sm:$0xff]
        %v415 = vld [vmem:[%s248 + $0xb0] sm:$0xff]
        %v416 = vld [vmem:[%s248 + $0xb8] sm:$0xff]
        %v417 = vld [vmem:[%s248 + $0xc0] sm:$0xff]
        %v418 = vld [vmem:[%s248 + $0xc8] sm:$0xff]
        %v419 = vld [vmem:[%s248 + $0xd0] sm:$0xff]
        %v420 = vld [vmem:[%s248 + $0xd8] sm:$0xff]
        %v421 = vld [vmem:[%s248 + $0xe0] sm:$0xff]
        %v422 = vld [vmem:[%s248 + $0xe8] sm:$0xff]
        %v423 = vld [vmem:[%s248 + $0xf0] sm:$0xff]
        %v424 = vld [vmem:[%s248 + $0xf8] sm:$0xff]
        %v425 = vld [vmem:[%s248 + $0x100] sm:$0xff]
        %v426 = vld [vmem:[%s248 + $0x108] sm:$0xff]
        %v427 = vld [vmem:[%s248 + $0x110] sm:$0xff]
        %v428 = vld [vmem:[%s248 + $0x118] sm:$0xff]
        %v429 = vld [vmem:[%s248 + $0x120] sm:$0xff]
        %v430 = vld [vmem:[%s248 + $0x128] sm:$0xff]
        %v431 = vld [vmem:[%s248 + $0x130] sm:$0xff]
        %v432 = vld [vmem:[%s248 + $0x138] sm:$0xff]
        %v433 = vld [vmem:[%s248 + $0x140] sm:$0xff]
        %v434 = vld [vmem:[%s248 + $0x148] sm:$0xff]
        %v435 = vld [vmem:[%s248 + $0x150] sm:$0xff]
        %v436 = vld [vmem:[%s248 + $0x158] sm:$0xff]
        %v437 = vld [vmem:[%s248 + $0x160] sm:$0xff]
        %v438 = vld [vmem:[%s248 + $0x168] sm:$0xff]
        %v439 = vld [vmem:[%s248 + $0x170] sm:$0xff]
        %v440 = vld [vmem:[%s248 + $0x178] sm:$0xff]
        %v441 = vld [vmem:[%s248 + $0x180] sm:$0xff]
        %v442 = vld [vmem:[%s248 + $0x188] sm:$0xff]
        %v443 = vld [vmem:[%s248 + $0x190] sm:$0xff]
        %v444 = vld [vmem:[%s248 + $0x198] sm:$0xff]
        %v445 = vld [vmem:[%s248 + $0x1a0] sm:$0xff]
        %v446 = vld [vmem:[%s248 + $0x1a8] sm:$0xff]
        %v447 = vld [vmem:[%s248 + $0x1b0] sm:$0xff]
        %v448 = vld [vmem:[%s248 + $0x1b8] sm:$0xff]
        %v449 = vld [vmem:[%s248 + $0x1c0] sm:$0xff]
        %v450 = vld [vmem:[%s248 + $0x1c8] sm:$0xff]
        %v451 = vld [vmem:[%s248 + $0x1d0] sm:$0xff]
        %v452 = vld [vmem:[%s248 + $0x1d8] sm:$0xff]
        %v453 = vld [vmem:[%s248 + $0x1e0] sm:$0xff]
        %v454 = vld [vmem:[%s248 + $0x1e8] sm:$0xff]
        %v455 = vld [vmem:[%s248 + $0x1f0] sm:$0xff]
        %v456 = vld [vmem:[%s248 + $0x1f8] sm:$0xff]
        %v457 = vld [vmem:[%s248 + $0x200] sm:$0xff]
        %v458 = vld [vmem:[%s248 + $0x208] sm:$0xff]
        %v459 = vld [vmem:[%s248 + $0x210] sm:$0xff]
        %v460 = vld [vmem:[%s248 + $0x218] sm:$0xff]
        %v461 = vld [vmem:[%s248 + $0x220] sm:$0xff]
        %v462 = vld [vmem:[%s248 + $0x228] sm:$0xff]
        %v463 = vld [vmem:[%s248 + $0x230] sm:$0xff]
        %v464 = vld [vmem:[%s248 + $0x238] sm:$0xff]
        %v465 = vld [vmem:[%s248 + $0x240] sm:$0xff]
        %v466 = vld [vmem:[%s248 + $0x248] sm:$0xff]
        %v467 = vld [vmem:[%s248 + $0x250] sm:$0xff]
        %v468 = vld [vmem:[%s248 + $0x258] sm:$0xff]
        %v469 = vld [vmem:[%s248 + $0x260] sm:$0xff]
        %v470 = vld [vmem:[%s248 + $0x268] sm:$0xff]
        %v471 = vld [vmem:[%s248 + $0x270] sm:$0xff]
        %v472 = vld [vmem:[%s248 + $0x278] sm:$0xff]
        %v473 = vld [vmem:[%s248 + $0x280] sm:$0xff]
        %v474 = vld [vmem:[%s248 + $0x288] sm:$0xff]
        %v475 = vld [vmem:[%s248 + $0x290] sm:$0xff]
        %v476 = vld [vmem:[%s248 + $0x298] sm:$0xff]
        %v477 = vld [vmem:[%s248 + $0x2a0] sm:$0xff]
        %v478 = vld [vmem:[%s248 + $0x2a8] sm:$0xff]
        %v479 = vld [vmem:[%s248 + $0x2b0] sm:$0xff]
        %v480 = vld [vmem:[%s248 + $0x2b8] sm:$0xff]
        %v481 = vld [vmem:[%s248 + $0x2c0] sm:$0xff]
        %v482 = vld [vmem:[%s248 + $0x2c8] sm:$0xff]
        %v483 = vld [vmem:[%s248 + $0x2d0] sm:$0xff]
        %v484 = vld [vmem:[%s248 + $0x2d8] sm:$0xff]
        %v485 = vld [vmem:[%s248 + $0x2e0] sm:$0xff]
        %v486 = vld [vmem:[%s248 + $0x2e8] sm:$0xff]
        %v487 = vld [vmem:[%s248 + $0x2f0] sm:$0xff]
        %v488 = vld [vmem:[%s248 + $0x2f8] sm:$0xff]
        %v489 = vld [vmem:[%s248 + $0x300] sm:$0xff]
        %v490 = vld [vmem:[%s248 + $0x308] sm:$0xff]
        %v491 = vld [vmem:[%s248 + $0x310] sm:$0xff]
        %v492 = vld [vmem:[%s248 + $0x318] sm:$0xff]
        %v493 = vld [vmem:[%s248 + $0x320] sm:$0xff]
        %v494 = vld [vmem:[%s248 + $0x328] sm:$0xff]
        %v495 = vld [vmem:[%s248 + $0x330] sm:$0xff]
        %v496 = vld [vmem:[%s248 + $0x338] sm:$0xff]
        %v497 = vld [vmem:[%s248 + $0x340] sm:$0xff]
        %v498 = vld [vmem:[%s248 + $0x348] sm:$0xff]
        %v499 = vld [vmem:[%s248 + $0x350] sm:$0xff]
        %v500 = vld [vmem:[%s248 + $0x358] sm:$0xff]
        %v501 = vld [vmem:[%s248 + $0x360] sm:$0xff]
        %v502 = vld [vmem:[%s248 + $0x368] sm:$0xff]
        %v503 = vld [vmem:[%s248 + $0x370] sm:$0xff]
        %v504 = vld [vmem:[%s248 + $0x378] sm:$0xff]
        %v505 = vld [vmem:[%s248 + $0x380] sm:$0xff]
        %v506 = vld [vmem:[%s248 + $0x388] sm:$0xff]
        %v507 = vld [vmem:[%s248 + $0x390] sm:$0xff]
        %v508 = vld [vmem:[%s248 + $0x398] sm:$0xff]
        %v509 = vld [vmem:[%s248 + $0x3a0] sm:$0xff]
        %v510 = vld [vmem:[%s248 + $0x3a8] sm:$0xff]
        %v511 = vld [vmem:[%s248 + $0x3b0] sm:$0xff]
        %v512 = vld [vmem:[%s248 + $0x3b8] sm:$0xff]
        %v513 = vld [vmem:[%s248 + $0x3c0] sm:$0xff]
        %v514 = vld [vmem:[%s248 + $0x3c8] sm:$0xff]
        %v515 = vld [vmem:[%s248 + $0x3d0] sm:$0xff]
        %v516 = vld [vmem:[%s248 + $0x3d8] sm:$0xff]
        %v517 = vld [vmem:[%s248 + $0x3e0] sm:$0xff]
        %v518 = vld [vmem:[%s248 + $0x3e8] sm:$0xff]
        %v519 = vld [vmem:[%s248 + $0x3f0] sm:$0xff]
        %v520 = vld [vmem:[%s248 + $0x3f8] sm:$0xff]
        %v521 = vld [vmem:[%s257] sm:$0xff]
        %v522 = vld [vmem:[%s257 + $0x8] sm:$0xff]
        %v523 = vld [vmem:[%s257 + $0x10] sm:$0xff]
        %v524 = vld [vmem:[%s257 + $0x18] sm:$0xff]
        %v525 = vld [vmem:[%s257 + $0x20] sm:$0xff]
        %v526 = vld [vmem:[%s257 + $0x28] sm:$0xff]
        %v527 = vld [vmem:[%s257 + $0x30] sm:$0xff]
        %v528 = vld [vmem:[%s257 + $0x38] sm:$0xff]
        %v529 = vld [vmem:[%s257 + $0x40] sm:$0xff]
        %v530 = vld [vmem:[%s257 + $0x48] sm:$0xff]
        %v531 = vld [vmem:[%s257 + $0x50] sm:$0xff]
        %v532 = vld [vmem:[%s257 + $0x58] sm:$0xff]
        %v533 = vld [vmem:[%s257 + $0x60] sm:$0xff]
        %v534 = vld [vmem:[%s257 + $0x68] sm:$0xff]
        %v535 = vld [vmem:[%s257 + $0x70] sm:$0xff]
        %v536 = vld [vmem:[%s257 + $0x78] sm:$0xff]
        %v537 = vld [vmem:[%s257 + $0x80] sm:$0xff]
        %v538 = vld [vmem:[%s257 + $0x88] sm:$0xff]
        %v539 = vld [vmem:[%s257 + $0x90] sm:$0xff]
        %v540 = vld [vmem:[%s257 + $0x98] sm:$0xff]
        %v541 = vld [vmem:[%s257 + $0xa0] sm:$0xff]
        %v542 = vld [vmem:[%s257 + $0xa8] sm:$0xff]
        %v543 = vld [vmem:[%s257 + $0xb0] sm:$0xff]
        %v544 = vld [vmem:[%s257 + $0xb8] sm:$0xff]
        %v545 = vld [vmem:[%s257 + $0xc0] sm:$0xff]
        %v546 = vld [vmem:[%s257 + $0xc8] sm:$0xff]
        %v547 = vld [vmem:[%s257 + $0xd0] sm:$0xff]
        %v548 = vld [vmem:[%s257 + $0xd8] sm:$0xff]
        %v549 = vld [vmem:[%s257 + $0xe0] sm:$0xff]
        %v550 = vld [vmem:[%s257 + $0xe8] sm:$0xff]
        %v551 = vld [vmem:[%s257 + $0xf0] sm:$0xff]
        %v552 = vld [vmem:[%s257 + $0xf8] sm:$0xff]
        %v553 = vld [vmem:[%s257 + $0x100] sm:$0xff]
        %v554 = vld [vmem:[%s257 + $0x108] sm:$0xff]
        %v555 = vld [vmem:[%s257 + $0x110] sm:$0xff]
        %v556 = vld [vmem:[%s257 + $0x118] sm:$0xff]
        %v557 = vld [vmem:[%s257 + $0x120] sm:$0xff]
        %v558 = vld [vmem:[%s257 + $0x128] sm:$0xff]
        %v559 = vld [vmem:[%s257 + $0x130] sm:$0xff]
        %v560 = vld [vmem:[%s257 + $0x138] sm:$0xff]
        %v561 = vld [vmem:[%s257 + $0x140] sm:$0xff]
        %v562 = vld [vmem:[%s257 + $0x148] sm:$0xff]
        %v563 = vld [vmem:[%s257 + $0x150] sm:$0xff]
        %v564 = vld [vmem:[%s257 + $0x158] sm:$0xff]
        %v565 = vld [vmem:[%s257 + $0x160] sm:$0xff]
        %v566 = vld [vmem:[%s257 + $0x168] sm:$0xff]
        %v567 = vld [vmem:[%s257 + $0x170] sm:$0xff]
        %v568 = vld [vmem:[%s257 + $0x178] sm:$0xff]
        %v569 = vld [vmem:[%s257 + $0x180] sm:$0xff]
        %v570 = vld [vmem:[%s257 + $0x188] sm:$0xff]
        %v571 = vld [vmem:[%s257 + $0x190] sm:$0xff]
        %v572 = vld [vmem:[%s257 + $0x198] sm:$0xff]
        %v573 = vld [vmem:[%s257 + $0x1a0] sm:$0xff]
        %v574 = vld [vmem:[%s257 + $0x1a8] sm:$0xff]
        %v575 = vld [vmem:[%s257 + $0x1b0] sm:$0xff]
        %v576 = vld [vmem:[%s257 + $0x1b8] sm:$0xff]
        %v577 = vld [vmem:[%s257 + $0x1c0] sm:$0xff]
        %v578 = vld [vmem:[%s257 + $0x1c8] sm:$0xff]
        %v579 = vld [vmem:[%s257 + $0x1d0] sm:$0xff]
        %v580 = vld [vmem:[%s257 + $0x1d8] sm:$0xff]
        %v581 = vld [vmem:[%s257 + $0x1e0] sm:$0xff]
        %v582 = vld [vmem:[%s257 + $0x1e8] sm:$0xff]
        %v583 = vld [vmem:[%s257 + $0x1f0] sm:$0xff]
        %v584 = vld [vmem:[%s257 + $0x1f8] sm:$0xff]
        %v585 = vld [vmem:[%s257 + $0x200] sm:$0xff]
        %v586 = vld [vmem:[%s257 + $0x208] sm:$0xff]
        %v587 = vld [vmem:[%s257 + $0x210] sm:$0xff]
        %v588 = vld [vmem:[%s257 + $0x218] sm:$0xff]
        %v589 = vld [vmem:[%s257 + $0x220] sm:$0xff]
        %v590 = vld [vmem:[%s257 + $0x228] sm:$0xff]
        %v591 = vld [vmem:[%s257 + $0x230] sm:$0xff]
        %v592 = vld [vmem:[%s257 + $0x238] sm:$0xff]
        %v593 = vld [vmem:[%s257 + $0x240] sm:$0xff]
        %v594 = vld [vmem:[%s257 + $0x248] sm:$0xff]
        %v595 = vld [vmem:[%s257 + $0x250] sm:$0xff]
        %v596 = vld [vmem:[%s257 + $0x258] sm:$0xff]
        %v597 = vld [vmem:[%s257 + $0x260] sm:$0xff]
        %v598 = vld [vmem:[%s257 + $0x268] sm:$0xff]
        %v599 = vld [vmem:[%s257 + $0x270] sm:$0xff]
        %v600 = vld [vmem:[%s257 + $0x278] sm:$0xff]
        %v601 = vld [vmem:[%s257 + $0x280] sm:$0xff]
        %v602 = vld [vmem:[%s257 + $0x288] sm:$0xff]
        %v603 = vld [vmem:[%s257 + $0x290] sm:$0xff]
        %v604 = vld [vmem:[%s257 + $0x298] sm:$0xff]
        %v605 = vld [vmem:[%s257 + $0x2a0] sm:$0xff]
        %v606 = vld [vmem:[%s257 + $0x2a8] sm:$0xff]
        %v607 = vld [vmem:[%s257 + $0x2b0] sm:$0xff]
        %v608 = vld [vmem:[%s257 + $0x2b8] sm:$0xff]
        %v609 = vld [vmem:[%s257 + $0x2c0] sm:$0xff]
        %v610 = vld [vmem:[%s257 + $0x2c8] sm:$0xff]
        %v611 = vld [vmem:[%s257 + $0x2d0] sm:$0xff]
        %v612 = vld [vmem:[%s257 + $0x2d8] sm:$0xff]
        %v613 = vld [vmem:[%s257 + $0x2e0] sm:$0xff]
        %v614 = vld [vmem:[%s257 + $0x2e8] sm:$0xff]
        %v615 = vld [vmem:[%s257 + $0x2f0] sm:$0xff]
        %v616 = vld [vmem:[%s257 + $0x2f8] sm:$0xff]
        %v617 = vld [vmem:[%s257 + $0x300] sm:$0xff]
        %v618 = vld [vmem:[%s257 + $0x308] sm:$0xff]
        %v619 = vld [vmem:[%s257 + $0x310] sm:$0xff]
        %v620 = vld [vmem:[%s257 + $0x318] sm:$0xff]
        %v621 = vld [vmem:[%s257 + $0x320] sm:$0xff]
        %v622 = vld [vmem:[%s257 + $0x328] sm:$0xff]
        %v623 = vld [vmem:[%s257 + $0x330] sm:$0xff]
        %v624 = vld [vmem:[%s257 + $0x338] sm:$0xff]
        %v625 = vld [vmem:[%s257 + $0x340] sm:$0xff]
        %v626 = vld [vmem:[%s257 + $0x348] sm:$0xff]
        %v627 = vld [vmem:[%s257 + $0x350] sm:$0xff]
        %v628 = vld [vmem:[%s257 + $0x358] sm:$0xff]
        %v629 = vld [vmem:[%s257 + $0x360] sm:$0xff]
        %v630 = vld [vmem:[%s257 + $0x368] sm:$0xff]
        %v631 = vld [vmem:[%s257 + $0x370] sm:$0xff]
        %v632 = vld [vmem:[%s257 + $0x378] sm:$0xff]
        %v633 = vld [vmem:[%s257 + $0x380] sm:$0xff]
        %v634 = vld [vmem:[%s257 + $0x388] sm:$0xff]
        %v635 = vld [vmem:[%s257 + $0x390] sm:$0xff]
        %v636 = vld [vmem:[%s257 + $0x398] sm:$0xff]
        %v637 = vld [vmem:[%s257 + $0x3a0] sm:$0xff]
        %v638 = vld [vmem:[%s257 + $0x3a8] sm:$0xff]
        %v639 = vld [vmem:[%s257 + $0x3b0] sm:$0xff]
        %v640 = vld [vmem:[%s257 + $0x3b8] sm:$0xff]
        %v641 = vld [vmem:[%s257 + $0x3c0] sm:$0xff]
        %v642 = vld [vmem:[%s257 + $0x3c8] sm:$0xff]
        %v643 = vld [vmem:[%s257 + $0x3d0] sm:$0xff]
        %v644 = vld [vmem:[%s257 + $0x3d8] sm:$0xff]
        %v645 = vld [vmem:[%s257 + $0x3e0] sm:$0xff]
        %v646 = vld [vmem:[%s257 + $0x3e8] sm:$0xff]
        %v647 = vld [vmem:[%s257 + $0x3f0] sm:$0xff]
        %v648 = vld [vmem:[%s257 + $0x3f8] sm:$0xff]
        %v649 = vld [vmem:[%s257 + $0x400] sm:$0xff]
        %v650 = vld [vmem:[%s257 + $0x408] sm:$0xff]
        %v651 = vld [vmem:[%s257 + $0x410] sm:$0xff]
        %v652 = vld [vmem:[%s257 + $0x418] sm:$0xff]
        %v653 = vld [vmem:[%s257 + $0x420] sm:$0xff]
        %v654 = vld [vmem:[%s257 + $0x428] sm:$0xff]
        %v655 = vld [vmem:[%s257 + $0x430] sm:$0xff]
        %v656 = vld [vmem:[%s257 + $0x438] sm:$0xff]
        %v657 = vld [vmem:[%s257 + $0x440] sm:$0xff]
        %v658 = vld [vmem:[%s257 + $0x448] sm:$0xff]
        %v659 = vld [vmem:[%s257 + $0x450] sm:$0xff]
        %v660 = vld [vmem:[%s257 + $0x458] sm:$0xff]
        %v661 = vld [vmem:[%s257 + $0x460] sm:$0xff]
        %v662 = vld [vmem:[%s257 + $0x468] sm:$0xff]
        %v663 = vld [vmem:[%s257 + $0x470] sm:$0xff]
        %v664 = vld [vmem:[%s257 + $0x478] sm:$0xff]
        %v665 = vld [vmem:[%s257 + $0x480] sm:$0xff]
        %v666 = vld [vmem:[%s257 + $0x488] sm:$0xff]
        %v667 = vld [vmem:[%s257 + $0x490] sm:$0xff]
        %v668 = vld [vmem:[%s257 + $0x498] sm:$0xff]
        %v669 = vld [vmem:[%s257 + $0x4a0] sm:$0xff]
        %v670 = vld [vmem:[%s257 + $0x4a8] sm:$0xff]
        %v671 = vld [vmem:[%s257 + $0x4b0] sm:$0xff]
        %v672 = vld [vmem:[%s257 + $0x4b8] sm:$0xff]
        %v673 = vld [vmem:[%s257 + $0x4c0] sm:$0xff]
        %v674 = vld [vmem:[%s257 + $0x4c8] sm:$0xff]
        %v675 = vld [vmem:[%s257 + $0x4d0] sm:$0xff]
        %v676 = vld [vmem:[%s257 + $0x4d8] sm:$0xff]
        %v677 = vld [vmem:[%s257 + $0x4e0] sm:$0xff]
        %v678 = vld [vmem:[%s257 + $0x4e8] sm:$0xff]
        %v679 = vld [vmem:[%s257 + $0x4f0] sm:$0xff]
        %v680 = vld [vmem:[%s257 + $0x4f8] sm:$0xff]
        %v681 = vld [vmem:[%s257 + $0x500] sm:$0xff]
        %v682 = vld [vmem:[%s257 + $0x508] sm:$0xff]
        %v683 = vld [vmem:[%s257 + $0x510] sm:$0xff]
        %v684 = vld [vmem:[%s257 + $0x518] sm:$0xff]
        %v685 = vld [vmem:[%s257 + $0x520] sm:$0xff]
        %v686 = vld [vmem:[%s257 + $0x528] sm:$0xff]
        %v687 = vld [vmem:[%s257 + $0x530] sm:$0xff]
        %v688 = vld [vmem:[%s257 + $0x538] sm:$0xff]
        %v689 = vld [vmem:[%s257 + $0x540] sm:$0xff]
        %v690 = vld [vmem:[%s257 + $0x548] sm:$0xff]
        %v691 = vld [vmem:[%s257 + $0x550] sm:$0xff]
        %v692 = vld [vmem:[%s257 + $0x558] sm:$0xff]
        %v693 = vld [vmem:[%s257 + $0x560] sm:$0xff]
        %v694 = vld [vmem:[%s257 + $0x568] sm:$0xff]
        %v695 = vld [vmem:[%s257 + $0x570] sm:$0xff]
        %v696 = vld [vmem:[%s257 + $0x578] sm:$0xff]
        %v697 = vld [vmem:[%s257 + $0x580] sm:$0xff]
        %v698 = vld [vmem:[%s257 + $0x588] sm:$0xff]
        %v699 = vld [vmem:[%s257 + $0x590] sm:$0xff]
        %v700 = vld [vmem:[%s257 + $0x598] sm:$0xff]
        %v701 = vld [vmem:[%s257 + $0x5a0] sm:$0xff]
        %v702 = vld [vmem:[%s257 + $0x5a8] sm:$0xff]
        %v703 = vld [vmem:[%s257 + $0x5b0] sm:$0xff]
        %v704 = vld [vmem:[%s257 + $0x5b8] sm:$0xff]
        %v705 = vld [vmem:[%s257 + $0x5c0] sm:$0xff]
        %v706 = vld [vmem:[%s257 + $0x5c8] sm:$0xff]
        %v707 = vld [vmem:[%s257 + $0x5d0] sm:$0xff]
        %v708 = vld [vmem:[%s257 + $0x5d8] sm:$0xff]
        %v709 = vld [vmem:[%s257 + $0x5e0] sm:$0xff]
        %v710 = vld [vmem:[%s257 + $0x5e8] sm:$0xff]
        %v711 = vld [vmem:[%s257 + $0x5f0] sm:$0xff]
        %v712 = vld [vmem:[%s257 + $0x5f8] sm:$0xff]
        %v713 = vld [vmem:[%s257 + $0x600] sm:$0xff]
        %v714 = vld [vmem:[%s257 + $0x608] sm:$0xff]
        %v715 = vld [vmem:[%s257 + $0x610] sm:$0xff]
        %v716 = vld [vmem:[%s257 + $0x618] sm:$0xff]
        %v717 = vld [vmem:[%s257 + $0x620] sm:$0xff]
        %v718 = vld [vmem:[%s257 + $0x628] sm:$0xff]
        %v719 = vld [vmem:[%s257 + $0x630] sm:$0xff]
        %v720 = vld [vmem:[%s257 + $0x638] sm:$0xff]
        %v721 = vld [vmem:[%s257 + $0x640] sm:$0xff]
        %v722 = vld [vmem:[%s257 + $0x648] sm:$0xff]
        %v723 = vld [vmem:[%s257 + $0x650] sm:$0xff]
        %v724 = vld [vmem:[%s257 + $0x658] sm:$0xff]
        %v725 = vld [vmem:[%s257 + $0x660] sm:$0xff]
        %v726 = vld [vmem:[%s257 + $0x668] sm:$0xff]
        %v727 = vld [vmem:[%s257 + $0x670] sm:$0xff]
        %v728 = vld [vmem:[%s257 + $0x678] sm:$0xff]
        %v729 = vld [vmem:[%s257 + $0x680] sm:$0xff]
        %v730 = vld [vmem:[%s257 + $0x688] sm:$0xff]
        %v731 = vld [vmem:[%s257 + $0x690] sm:$0xff]
        %v732 = vld [vmem:[%s257 + $0x698] sm:$0xff]
        %v733 = vld [vmem:[%s257 + $0x6a0] sm:$0xff]
        %v734 = vld [vmem:[%s257 + $0x6a8] sm:$0xff]
        %v735 = vld [vmem:[%s257 + $0x6b0] sm:$0xff]
        %v736 = vld [vmem:[%s257 + $0x6b8] sm:$0xff]
        %v737 = vld [vmem:[%s257 + $0x6c0] sm:$0xff]
        %v738 = vld [vmem:[%s257 + $0x6c8] sm:$0xff]
        %v739 = vld [vmem:[%s257 + $0x6d0] sm:$0xff]
        %v740 = vld [vmem:[%s257 + $0x6d8] sm:$0xff]
        %v741 = vld [vmem:[%s257 + $0x6e0] sm:$0xff]
        %v742 = vld [vmem:[%s257 + $0x6e8] sm:$0xff]
        %v743 = vld [vmem:[%s257 + $0x6f0] sm:$0xff]
        %v744 = vld [vmem:[%s257 + $0x6f8] sm:$0xff]
        %v745 = vld [vmem:[%s257 + $0x700] sm:$0xff]
        %v746 = vld [vmem:[%s257 + $0x708] sm:$0xff]
        %v747 = vld [vmem:[%s257 + $0x710] sm:$0xff]
        %v748 = vld [vmem:[%s257 + $0x718] sm:$0xff]
        %v749 = vld [vmem:[%s257 + $0x720] sm:$0xff]
        %v750 = vld [vmem:[%s257 + $0x728] sm:$0xff]
        %v751 = vld [vmem:[%s257 + $0x730] sm:$0xff]
        %v752 = vld [vmem:[%s257 + $0x738] sm:$0xff]
        %v753 = vld [vmem:[%s257 + $0x740] sm:$0xff]
        %v754 = vld [vmem:[%s257 + $0x748] sm:$0xff]
        %v755 = vld [vmem:[%s257 + $0x750] sm:$0xff]
        %v756 = vld [vmem:[%s257 + $0x758] sm:$0xff]
        %v757 = vld [vmem:[%s257 + $0x760] sm:$0xff]
        %v758 = vld [vmem:[%s257 + $0x768] sm:$0xff]
        %v759 = vld [vmem:[%s257 + $0x770] sm:$0xff]
        %v760 = vld [vmem:[%s257 + $0x778] sm:$0xff]
        %v761 = vld [vmem:[%s257 + $0x780] sm:$0xff]
        %v762 = vld [vmem:[%s257 + $0x788] sm:$0xff]
        %v763 = vld [vmem:[%s257 + $0x790] sm:$0xff]
        %v764 = vld [vmem:[%s257 + $0x798] sm:$0xff]
        %v765 = vld [vmem:[%s257 + $0x7a0] sm:$0xff]
        %v766 = vld [vmem:[%s257 + $0x7a8] sm:$0xff]
        %v767 = vld [vmem:[%s257 + $0x7b0] sm:$0xff]
        %v768 = vld [vmem:[%s257 + $0x7b8] sm:$0xff]
        %v769 = vld [vmem:[%s257 + $0x7c0] sm:$0xff]
        %v770 = vld [vmem:[%s257 + $0x7c8] sm:$0xff]
        %v771 = vld [vmem:[%s257 + $0x7d0] sm:$0xff]
        %v772 = vld [vmem:[%s257 + $0x7d8] sm:$0xff]
        %v773 = vld [vmem:[%s257 + $0x7e0] sm:$0xff]
        %v774 = vld [vmem:[%s257 + $0x7e8] sm:$0xff]
        %v775 = vld [vmem:[%s257 + $0x7f0] sm:$0xff]
        %v776 = vld [vmem:[%s257 + $0x7f8] sm:$0xff]
        %v777 = vld [vmem:[%s257 + $0x800] sm:$0xff]
        %v778 = vld [vmem:[%s257 + $0x808] sm:$0xff]
        %v779 = vld [vmem:[%s257 + $0x810] sm:$0xff]
        %v780 = vld [vmem:[%s257 + $0x818] sm:$0xff]
        %v781 = vld [vmem:[%s257 + $0x820] sm:$0xff]
        %v782 = vld [vmem:[%s257 + $0x828] sm:$0xff]
        %v783 = vld [vmem:[%s257 + $0x830] sm:$0xff]
        %v784 = vld [vmem:[%s257 + $0x838] sm:$0xff]
        %v785 = vld [vmem:[%s257 + $0x840] sm:$0xff]
        %v786 = vld [vmem:[%s257 + $0x848] sm:$0xff]
        %v787 = vld [vmem:[%s257 + $0x850] sm:$0xff]
        %v788 = vld [vmem:[%s257 + $0x858] sm:$0xff]
        %v789 = vld [vmem:[%s257 + $0x860] sm:$0xff]
        %v790 = vld [vmem:[%s257 + $0x868] sm:$0xff]
        %v791 = vld [vmem:[%s257 + $0x870] sm:$0xff]
        %v792 = vld [vmem:[%s257 + $0x878] sm:$0xff]
        %v793 = vld [vmem:[%s257 + $0x880] sm:$0xff]
        %v794 = vld [vmem:[%s257 + $0x888] sm:$0xff]
        %v795 = vld [vmem:[%s257 + $0x890] sm:$0xff]
        %v796 = vld [vmem:[%s257 + $0x898] sm:$0xff]
        %v797 = vld [vmem:[%s257 + $0x8a0] sm:$0xff]
        %v798 = vld [vmem:[%s257 + $0x8a8] sm:$0xff]
        %v799 = vld [vmem:[%s257 + $0x8b0] sm:$0xff]
        %v800 = vld [vmem:[%s257 + $0x8b8] sm:$0xff]
        %v801 = vld [vmem:[%s257 + $0x8c0] sm:$0xff]
        %v802 = vld [vmem:[%s257 + $0x8c8] sm:$0xff]
        %v803 = vld [vmem:[%s257 + $0x8d0] sm:$0xff]
        %v804 = vld [vmem:[%s257 + $0x8d8] sm:$0xff]
        %v805 = vld [vmem:[%s257 + $0x8e0] sm:$0xff]
        %v806 = vld [vmem:[%s257 + $0x8e8] sm:$0xff]
        %v807 = vld [vmem:[%s257 + $0x8f0] sm:$0xff]
        %v808 = vld [vmem:[%s257 + $0x8f8] sm:$0xff]
        %v809 = vld [vmem:[%s257 + $0x900] sm:$0xff]
        %v810 = vld [vmem:[%s257 + $0x908] sm:$0xff]
        %v811 = vld [vmem:[%s257 + $0x910] sm:$0xff]
        %v812 = vld [vmem:[%s257 + $0x918] sm:$0xff]
        %v813 = vld [vmem:[%s257 + $0x920] sm:$0xff]
        %v814 = vld [vmem:[%s257 + $0x928] sm:$0xff]
        %v815 = vld [vmem:[%s257 + $0x930] sm:$0xff]
        %v816 = vld [vmem:[%s257 + $0x938] sm:$0xff]
        %v817 = vld [vmem:[%s257 + $0x940] sm:$0xff]
        %v818 = vld [vmem:[%s257 + $0x948] sm:$0xff]
        %v819 = vld [vmem:[%s257 + $0x950] sm:$0xff]
        %v820 = vld [vmem:[%s257 + $0x958] sm:$0xff]
        %v821 = vld [vmem:[%s257 + $0x960] sm:$0xff]
        %v822 = vld [vmem:[%s257 + $0x968] sm:$0xff]
        %v823 = vld [vmem:[%s257 + $0x970] sm:$0xff]
        %v824 = vld [vmem:[%s257 + $0x978] sm:$0xff]
        %v825 = vld [vmem:[%s257 + $0x980] sm:$0xff]
        %v826 = vld [vmem:[%s257 + $0x988] sm:$0xff]
        %v827 = vld [vmem:[%s257 + $0x990] sm:$0xff]
        %v828 = vld [vmem:[%s257 + $0x998] sm:$0xff]
        %v829 = vld [vmem:[%s257 + $0x9a0] sm:$0xff]
        %v830 = vld [vmem:[%s257 + $0x9a8] sm:$0xff]
        %v831 = vld [vmem:[%s257 + $0x9b0] sm:$0xff]
        %v832 = vld [vmem:[%s257 + $0x9b8] sm:$0xff]
        %v833 = vld [vmem:[%s257 + $0x9c0] sm:$0xff]
        %v834 = vld [vmem:[%s257 + $0x9c8] sm:$0xff]
        %v835 = vld [vmem:[%s257 + $0x9d0] sm:$0xff]
        %v836 = vld [vmem:[%s257 + $0x9d8] sm:$0xff]
        %v837 = vld [vmem:[%s257 + $0x9e0] sm:$0xff]
        %v838 = vld [vmem:[%s257 + $0x9e8] sm:$0xff]
        %v839 = vld [vmem:[%s257 + $0x9f0] sm:$0xff]
        %v840 = vld [vmem:[%s257 + $0x9f8] sm:$0xff]
        %v841 = vld [vmem:[%s257 + $0xa00] sm:$0xff]
        %v842 = vld [vmem:[%s257 + $0xa08] sm:$0xff]
        %v843 = vld [vmem:[%s257 + $0xa10] sm:$0xff]
        %v844 = vld [vmem:[%s257 + $0xa18] sm:$0xff]
        %v845 = vld [vmem:[%s257 + $0xa20] sm:$0xff]
        %v846 = vld [vmem:[%s257 + $0xa28] sm:$0xff]
        %v847 = vld [vmem:[%s257 + $0xa30] sm:$0xff]
        %v848 = vld [vmem:[%s257 + $0xa38] sm:$0xff]
        %v849 = vld [vmem:[%s257 + $0xa40] sm:$0xff]
        %v850 = vld [vmem:[%s257 + $0xa48] sm:$0xff]
        %v851 = vld [vmem:[%s257 + $0xa50] sm:$0xff]
        %v852 = vld [vmem:[%s257 + $0xa58] sm:$0xff]
        %v853 = vld [vmem:[%s257 + $0xa60] sm:$0xff]
        %v854 = vld [vmem:[%s257 + $0xa68] sm:$0xff]
        %v855 = vld [vmem:[%s257 + $0xa70] sm:$0xff]
        %v856 = vld [vmem:[%s257 + $0xa78] sm:$0xff]
        %v857 = vld [vmem:[%s257 + $0xa80] sm:$0xff]
        %v858 = vld [vmem:[%s257 + $0xa88] sm:$0xff]
        %v859 = vld [vmem:[%s257 + $0xa90] sm:$0xff]
        %v860 = vld [vmem:[%s257 + $0xa98] sm:$0xff]
        %v861 = vld [vmem:[%s257 + $0xaa0] sm:$0xff]
        %v862 = vld [vmem:[%s257 + $0xaa8] sm:$0xff]
        %v863 = vld [vmem:[%s257 + $0xab0] sm:$0xff]
        %v864 = vld [vmem:[%s257 + $0xab8] sm:$0xff]
        %v865 = vld [vmem:[%s257 + $0xac0] sm:$0xff]
        %v866 = vld [vmem:[%s257 + $0xac8] sm:$0xff]
        %v867 = vld [vmem:[%s257 + $0xad0] sm:$0xff]
        %v868 = vld [vmem:[%s257 + $0xad8] sm:$0xff]
        %v869 = vld [vmem:[%s257 + $0xae0] sm:$0xff]
        %v870 = vld [vmem:[%s257 + $0xae8] sm:$0xff]
        %v871 = vld [vmem:[%s257 + $0xaf0] sm:$0xff]
        %v872 = vld [vmem:[%s257 + $0xaf8] sm:$0xff]
        %v873 = vld [vmem:[%s257 + $0xb00] sm:$0xff]
        %v874 = vld [vmem:[%s257 + $0xb08] sm:$0xff]
        %v875 = vld [vmem:[%s257 + $0xb10] sm:$0xff]
        %v876 = vld [vmem:[%s257 + $0xb18] sm:$0xff]
        %v877 = vld [vmem:[%s257 + $0xb20] sm:$0xff]
        %v878 = vld [vmem:[%s257 + $0xb28] sm:$0xff]
        %v879 = vld [vmem:[%s257 + $0xb30] sm:$0xff]
        %v880 = vld [vmem:[%s257 + $0xb38] sm:$0xff]
        %v881 = vld [vmem:[%s257 + $0xb40] sm:$0xff]
        %v882 = vld [vmem:[%s257 + $0xb48] sm:$0xff]
        %v883 = vld [vmem:[%s257 + $0xb50] sm:$0xff]
        %v884 = vld [vmem:[%s257 + $0xb58] sm:$0xff]
        %v885 = vld [vmem:[%s257 + $0xb60] sm:$0xff]
        %v886 = vld [vmem:[%s257 + $0xb68] sm:$0xff]
        %v887 = vld [vmem:[%s257 + $0xb70] sm:$0xff]
        %v888 = vld [vmem:[%s257 + $0xb78] sm:$0xff]
        %v889 = vld [vmem:[%s257 + $0xb80] sm:$0xff]
        %v890 = vld [vmem:[%s257 + $0xb88] sm:$0xff]
        %v891 = vld [vmem:[%s257 + $0xb90] sm:$0xff]
        %v892 = vld [vmem:[%s257 + $0xb98] sm:$0xff]
        %v893 = vld [vmem:[%s257 + $0xba0] sm:$0xff]
        %v894 = vld [vmem:[%s257 + $0xba8] sm:$0xff]
        %v895 = vld [vmem:[%s257 + $0xbb0] sm:$0xff]
        %v896 = vld [vmem:[%s257 + $0xbb8] sm:$0xff]
        %v897 = vld [vmem:[%s257 + $0xbc0] sm:$0xff]
        %v898 = vld [vmem:[%s257 + $0xbc8] sm:$0xff]
        %v899 = vld [vmem:[%s257 + $0xbd0] sm:$0xff]
        %v900 = vld [vmem:[%s257 + $0xbd8] sm:$0xff]
        %v901 = vld [vmem:[%s257 + $0xbe0] sm:$0xff]
        %v902 = vld [vmem:[%s257 + $0xbe8] sm:$0xff]
        %v903 = vld [vmem:[%s257 + $0xbf0] sm:$0xff]
        %v904 = vld [vmem:[%s257 + $0xbf8] sm:$0xff]
        %905 = vmatprep.subr.mxu0 %v567
        %906 = vmatpush1.msra.mxu0 %v566
        %907 = vmatprep.subr.mxu0 %v564
        %908 = vmatpush1.msra.mxu0 %v563
        %909 = vmatprep.subr.mxu0 %v561
        %910 = vmatpush1.msra.mxu0 %v560
        %911 = vmatprep.subr.mxu0 %v558
        %912 = vmatpush1.msra.mxu0 %v557
        %913 = vmatprep.subr.mxu0 %v555
        %914 = vmatpush1.msra.mxu0 %v554
        %915 = vmatprep.subr.mxu0 %v552
        %916 = vmatpush1.msra.mxu0 %v551
        %917 = vmatprep.subr.mxu0 %v549
        %918 = vmatpush1.msra.mxu0 %v548
        %919 = vmatprep.subr.mxu0 %v546
        %920 = vmatpush1.msra.mxu0 %v545
        %921 = vmatprep.subr.mxu0 %v543
        %922 = vmatpush1.msra.mxu0 %v542
        %923 = vmatprep.subr.mxu0 %v540
        %924 = vmatpush1.msra.mxu0 %v539
        %925 = vmatprep.subr.mxu0 %v537
        %926 = vmatpush1.msra.mxu0 %v536
        %927 = vmatprep.subr.mxu0 %v534
        %928 = vmatpush1.msra.mxu0 %v533
        %929 = vmatprep.subr.mxu0 %v531
        %930 = vmatpush1.msra.mxu0 %v530
        %931 = vmatprep.subr.mxu0 %v528
        %932 = vmatpush1.msra.mxu0 %v527
        %933 = vmatprep.subr.mxu0 %v525
        %934 = vmatpush1.msra.mxu0 %v524
        %935 = vmatprep.subr.mxu0 %v522
        %936 = vmatpush1.msra.mxu0 %v521
        %937 = vmatprep.subr.mxu0 %v615
        %938 = vmatpush2.msra.mxu0 %v614
        %939 = vmatprep.subr.mxu0 %v612
        %940 = vmatpush2.msra.mxu0 %v611
        %941 = vmatprep.subr.mxu0 %v609
        %942 = vmatpush2.msra.mxu0 %v608
        %943 = vmatprep.subr.mxu0 %v606
        %944 = vmatpush2.msra.mxu0 %v605
        %945 = vmatprep.subr.mxu0 %v603
        %946 = vmatpush2.msra.mxu0 %v602
        %947 = vmatprep.subr.mxu0 %v600
        %948 = vmatpush2.msra.mxu0 %v599
        %949 = vmatprep.subr.mxu0 %v597
        %950 = vmatpush2.msra.mxu0 %v596
        %951 = vmatprep.subr.mxu0 %v594
        %952 = vmatpush2.msra.mxu0 %v593
        %953 = vmatprep.subr.mxu0 %v591
        %954 = vmatpush2.msra.mxu0 %v590
        %955 = vmatprep.subr.mxu0 %v588
        %956 = vmatpush2.msra.mxu0 %v587
        %957 = vmatprep.subr.mxu0 %v585
        %958 = vmatpush2.msra.mxu0 %v584
        %959 = vmatprep.subr.mxu0 %v582
        %960 = vmatpush2.msra.mxu0 %v581
        %961 = vmatprep.subr.mxu0 %v579
        %962 = vmatpush2.msra.mxu0 %v578
        %963 = vmatprep.subr.mxu0 %v576
        %964 = vmatpush2.msra.mxu0 %v575
        %965 = vmatprep.subr.mxu0 %v573
        %966 = vmatpush2.msra.mxu0 %v572
        %967 = vmatprep.subr.mxu0 %v570
        %968 = vmatpush2.msra.mxu0 %v569
        %969 = vmatprep.mubr.f32.mxu0 %v394
        %970 = vmatmul.mubr.f32.gmra.mxu0 %v393
        %v971 = vpop.f32.mrf.mxu0
        %v972 = vadd.f32 0.0, %v971
        %v973 = vpop.f32.mrf.mxu0
        %v974 = vadd.f32 0.0, %v973
        %975 = vmatprep.mubr.f32.mxu0 %v402
        %976 = vmatmul.mubr.f32.gmra.mxu0 %v401
        %v977 = vpop.f32.mrf.mxu0
        %v978 = vadd.f32 0.0, %v977
        %v979 = vpop.f32.mrf.mxu0
        %v980 = vadd.f32 0.0, %v979
        %981 = vmatprep.mubr.f32.mxu0 %v410
        %982 = vmatmul.mubr.f32.gmra.mxu0 %v409
        %v983 = vpop.f32.mrf.mxu0
        %v984 = vadd.f32 0.0, %v983
        %v985 = vpop.f32.mrf.mxu0
        %v986 = vadd.f32 0.0, %v985
        %987 = vmatprep.mubr.f32.mxu0 %v418
        %988 = vmatmul.mubr.f32.gmra.mxu0 %v417
        %v989 = vpop.f32.mrf.mxu0
        %v990 = vadd.f32 0.0, %v989
        %v991 = vpop.f32.mrf.mxu0
        %v992 = vadd.f32 0.0, %v991
        %993 = vmatprep.mubr.f32.mxu0 %v426
        %994 = vmatmul.mubr.f32.gmra.mxu0 %v425
        %v995 = vpop.f32.mrf.mxu0
        %v996 = vadd.f32 0.0, %v995
        %v997 = vpop.f32.mrf.mxu0
        %v998 = vadd.f32 0.0, %v997
        %999 = vmatprep.mubr.f32.mxu0 %v434
        %1000 = vmatmul.mubr.f32.gmra.mxu0 %v433
        %v1001 = vpop.f32.mrf.mxu0
        %v1002 = vadd.f32 0.0, %v1001
        %v1003 = vpop.f32.mrf.mxu0
        %v1004 = vadd.f32 0.0, %v1003
        %1005 = vmatprep.mubr.f32.mxu0 %v442
        %1006 = vmatmul.mubr.f32.gmra.mxu0 %v441
        %v1007 = vpop.f32.mrf.mxu0
        %v1008 = vadd.f32 0.0, %v1007
        %v1009 = vpop.f32.mrf.mxu0
        %v1010 = vadd.f32 0.0, %v1009
        %1011 = vmatprep.mubr.f32.mxu0 %v450
        %1012 = vmatmul.mubr.f32.gmra.mxu0 %v449
        %v1013 = vpop.f32.mrf.mxu0
        %v1014 = vadd.f32 0.0, %v1013
        %v1015 = vpop.f32.mrf.mxu0
        %v1016 = vadd.f32 0.0, %v1015
        %1017 = vmatprep.mubr.f32.mxu0 %v458
        %1018 = vmatmul.mubr.f32.gmra.mxu0 %v457
        %v1019 = vpop.f32.mrf.mxu0
        %v1020 = vadd.f32 0.0, %v1019
        %v1021 = vpop.f32.mrf.mxu0
        %v1022 = vadd.f32 0.0, %v1021
        %1023 = vmatprep.mubr.f32.mxu0 %v466
        %1024 = vmatmul.mubr.f32.gmra.mxu0 %v465
        %v1025 = vpop.f32.mrf.mxu0
        %v1026 = vadd.f32 0.0, %v1025
        %v1027 = vpop.f32.mrf.mxu0
        %v1028 = vadd.f32 0.0, %v1027
        %1029 = vmatprep.mubr.f32.mxu0 %v474
        %1030 = vmatmul.mubr.f32.gmra.mxu0 %v473
        %v1031 = vpop.f32.mrf.mxu0
        %v1032 = vadd.f32 0.0, %v1031
        %v1033 = vpop.f32.mrf.mxu0
        %v1034 = vadd.f32 0.0, %v1033
        %1035 = vmatprep.mubr.f32.mxu0 %v482
        %1036 = vmatmul.mubr.f32.gmra.mxu0 %v481
        %v1037 = vpop.f32.mrf.mxu0
        %v1038 = vadd.f32 0.0, %v1037
        %v1039 = vpop.f32.mrf.mxu0
        %v1040 = vadd.f32 0.0, %v1039
        %1041 = vmatprep.mubr.f32.mxu0 %v490
        %1042 = vmatmul.mubr.f32.gmra.mxu0 %v489
        %v1043 = vpop.f32.mrf.mxu0
        %v1044 = vadd.f32 0.0, %v1043
        %v1045 = vpop.f32.mrf.mxu0
        %v1046 = vadd.f32 0.0, %v1045
        %1047 = vmatprep.mubr.f32.mxu0 %v498
        %1048 = vmatmul.mubr.f32.gmra.mxu0 %v497
        %v1049 = vpop.f32.mrf.mxu0
        %v1050 = vadd.f32 0.0, %v1049
        %v1051 = vpop.f32.mrf.mxu0
        %v1052 = vadd.f32 0.0, %v1051
        %1053 = vmatprep.mubr.f32.mxu0 %v506
        %1054 = vmatmul.mubr.f32.gmra.mxu0 %v505
        %v1055 = vpop.f32.mrf.mxu0
        %v1056 = vadd.f32 0.0, %v1055
        %v1057 = vpop.f32.mrf.mxu0
        %v1058 = vadd.f32 0.0, %v1057
        %1059 = vmatprep.mubr.f32.mxu0 %v514
        %1060 = vmatmul.mubr.f32.gmra.mxu0 %v513
        %v1061 = vpop.f32.mrf.mxu0
        %v1062 = vadd.f32 0.0, %v1061
        %v1063 = vpop.f32.mrf.mxu0
        %v1064 = vadd.f32 0.0, %v1063
        %1065 = vdwg.mxu0
        %1066 = vmatprep.subr.mxu0 %v663
        %1067 = vmatpush1.msra.mxu0 %v662
        %1068 = vmatprep.subr.mxu0 %v660
        %1069 = vmatpush1.msra.mxu0 %v659
        %1070 = vmatprep.subr.mxu0 %v657
        %1071 = vmatpush1.msra.mxu0 %v656
        %1072 = vmatprep.subr.mxu0 %v654
        %1073 = vmatpush1.msra.mxu0 %v653
        %1074 = vmatprep.subr.mxu0 %v651
        %1075 = vmatpush1.msra.mxu0 %v650
        %1076 = vmatprep.subr.mxu0 %v648
        %1077 = vmatpush1.msra.mxu0 %v647
        %1078 = vmatprep.subr.mxu0 %v645
        %1079 = vmatpush1.msra.mxu0 %v644
        %1080 = vmatprep.subr.mxu0 %v642
        %1081 = vmatpush1.msra.mxu0 %v641
        %1082 = vmatprep.subr.mxu0 %v639
        %1083 = vmatpush1.msra.mxu0 %v638
        %1084 = vmatprep.subr.mxu0 %v636
        %1085 = vmatpush1.msra.mxu0 %v635
        %1086 = vmatprep.subr.mxu0 %v633
        %1087 = vmatpush1.msra.mxu0 %v632
        %1088 = vmatprep.subr.mxu0 %v630
        %1089 = vmatpush1.msra.mxu0 %v629
        %1090 = vmatprep.subr.mxu0 %v627
        %1091 = vmatpush1.msra.mxu0 %v626
        %1092 = vmatprep.subr.mxu0 %v624
        %1093 = vmatpush1.msra.mxu0 %v623
        %1094 = vmatprep.subr.mxu0 %v621
        %1095 = vmatpush1.msra.mxu0 %v620
        %1096 = vmatprep.subr.mxu0 %v618
        %1097 = vmatpush1.msra.mxu0 %v617
        %1098 = vmatprep.subr.mxu0 %v711
        %1099 = vmatpush2.msra.mxu0 %v710
        %1100 = vmatprep.subr.mxu0 %v708
        %1101 = vmatpush2.msra.mxu0 %v707
        %1102 = vmatprep.subr.mxu0 %v705
        %1103 = vmatpush2.msra.mxu0 %v704
        %1104 = vmatprep.subr.mxu0 %v702
        %1105 = vmatpush2.msra.mxu0 %v701
        %1106 = vmatprep.subr.mxu0 %v699
        %1107 = vmatpush2.msra.mxu0 %v698
        %1108 = vmatprep.subr.mxu0 %v696
        %1109 = vmatpush2.msra.mxu0 %v695
        %1110 = vmatprep.subr.mxu0 %v693
        %1111 = vmatpush2.msra.mxu0 %v692
        %1112 = vmatprep.subr.mxu0 %v690
        %1113 = vmatpush2.msra.mxu0 %v689
        %1114 = vmatprep.subr.mxu0 %v687
        %1115 = vmatpush2.msra.mxu0 %v686
        %1116 = vmatprep.subr.mxu0 %v684
        %1117 = vmatpush2.msra.mxu0 %v683
        %1118 = vmatprep.subr.mxu0 %v681
        %1119 = vmatpush2.msra.mxu0 %v680
        %1120 = vmatprep.subr.mxu0 %v678
        %1121 = vmatpush2.msra.mxu0 %v677
        %1122 = vmatprep.subr.mxu0 %v675
        %1123 = vmatpush2.msra.mxu0 %v674
        %1124 = vmatprep.subr.mxu0 %v672
        %1125 = vmatpush2.msra.mxu0 %v671
        %1126 = vmatprep.subr.mxu0 %v669
        %1127 = vmatpush2.msra.mxu0 %v668
        %1128 = vmatprep.subr.mxu0 %v666
        %1129 = vmatpush2.msra.mxu0 %v665
        %1130 = vmatprep.mubr.f32.mxu0 %v396
        %1131 = vmatmul.mubr.f32.gmra.mxu0 %v395
        %v1132 = vpop.f32.mrf.mxu0
        %v1133 = vadd.f32 %v972, %v1132
        %v1134 = vpop.f32.mrf.mxu0
        %v1135 = vadd.f32 %v974, %v1134
        %1136 = vmatprep.mubr.f32.mxu0 %v404
        %1137 = vmatmul.mubr.f32.gmra.mxu0 %v403
        %v1138 = vpop.f32.mrf.mxu0
        %v1139 = vadd.f32 %v978, %v1138
        %v1140 = vpop.f32.mrf.mxu0
        %v1141 = vadd.f32 %v980, %v1140
        %1142 = vmatprep.mubr.f32.mxu0 %v412
        %1143 = vmatmul.mubr.f32.gmra.mxu0 %v411
        %v1144 = vpop.f32.mrf.mxu0
        %v1145 = vadd.f32 %v984, %v1144
        %v1146 = vpop.f32.mrf.mxu0
        %v1147 = vadd.f32 %v986, %v1146
        %1148 = vmatprep.mubr.f32.mxu0 %v420
        %1149 = vmatmul.mubr.f32.gmra.mxu0 %v419
        %v1150 = vpop.f32.mrf.mxu0
        %v1151 = vadd.f32 %v990, %v1150
        %v1152 = vpop.f32.mrf.mxu0
        %v1153 = vadd.f32 %v992, %v1152
        %1154 = vmatprep.mubr.f32.mxu0 %v428
        %1155 = vmatmul.mubr.f32.gmra.mxu0 %v427
        %v1156 = vpop.f32.mrf.mxu0
        %v1157 = vadd.f32 %v996, %v1156
        %v1158 = vpop.f32.mrf.mxu0
        %v1159 = vadd.f32 %v998, %v1158
        %1160 = vmatprep.mubr.f32.mxu0 %v436
        %1161 = vmatmul.mubr.f32.gmra.mxu0 %v435
        %v1162 = vpop.f32.mrf.mxu0
        %v1163 = vadd.f32 %v1002, %v1162
        %v1164 = vpop.f32.mrf.mxu0
        %v1165 = vadd.f32 %v1004, %v1164
        %1166 = vmatprep.mubr.f32.mxu0 %v444
        %1167 = vmatmul.mubr.f32.gmra.mxu0 %v443
        %v1168 = vpop.f32.mrf.mxu0
        %v1169 = vadd.f32 %v1008, %v1168
        %v1170 = vpop.f32.mrf.mxu0
        %v1171 = vadd.f32 %v1010, %v1170
        %1172 = vmatprep.mubr.f32.mxu0 %v452
        %1173 = vmatmul.mubr.f32.gmra.mxu0 %v451
        %v1174 = vpop.f32.mrf.mxu0
        %v1175 = vadd.f32 %v1014, %v1174
        %v1176 = vpop.f32.mrf.mxu0
        %v1177 = vadd.f32 %v1016, %v1176
        %1178 = vmatprep.mubr.f32.mxu0 %v460
        %1179 = vmatmul.mubr.f32.gmra.mxu0 %v459
        %v1180 = vpop.f32.mrf.mxu0
        %v1181 = vadd.f32 %v1020, %v1180
        %v1182 = vpop.f32.mrf.mxu0
        %v1183 = vadd.f32 %v1022, %v1182
        %1184 = vmatprep.mubr.f32.mxu0 %v468
        %1185 = vmatmul.mubr.f32.gmra.mxu0 %v467
        %v1186 = vpop.f32.mrf.mxu0
        %v1187 = vadd.f32 %v1026, %v1186
        %v1188 = vpop.f32.mrf.mxu0
        %v1189 = vadd.f32 %v1028, %v1188
        %1190 = vmatprep.mubr.f32.mxu0 %v476
        %1191 = vmatmul.mubr.f32.gmra.mxu0 %v475
        %v1192 = vpop.f32.mrf.mxu0
        %v1193 = vadd.f32 %v1032, %v1192
        %v1194 = vpop.f32.mrf.mxu0
        %v1195 = vadd.f32 %v1034, %v1194
        %1196 = vmatprep.mubr.f32.mxu0 %v484
        %1197 = vmatmul.mubr.f32.gmra.mxu0 %v483
        %v1198 = vpop.f32.mrf.mxu0
        %v1199 = vadd.f32 %v1038, %v1198
        %v1200 = vpop.f32.mrf.mxu0
        %v1201 = vadd.f32 %v1040, %v1200
        %1202 = vmatprep.mubr.f32.mxu0 %v492
        %1203 = vmatmul.mubr.f32.gmra.mxu0 %v491
        %v1204 = vpop.f32.mrf.mxu0
        %v1205 = vadd.f32 %v1044, %v1204
        %v1206 = vpop.f32.mrf.mxu0
        %v1207 = vadd.f32 %v1046, %v1206
        %1208 = vmatprep.mubr.f32.mxu0 %v500
        %1209 = vmatmul.mubr.f32.gmra.mxu0 %v499
        %v1210 = vpop.f32.mrf.mxu0
        %v1211 = vadd.f32 %v1050, %v1210
        %v1212 = vpop.f32.mrf.mxu0
        %v1213 = vadd.f32 %v1052, %v1212
        %1214 = vmatprep.mubr.f32.mxu0 %v508
        %1215 = vmatmul.mubr.f32.gmra.mxu0 %v507
        %v1216 = vpop.f32.mrf.mxu0
        %v1217 = vadd.f32 %v1056, %v1216
        %v1218 = vpop.f32.mrf.mxu0
        %v1219 = vadd.f32 %v1058, %v1218
        %1220 = vmatprep.mubr.f32.mxu0 %v516
        %1221 = vmatmul.mubr.f32.gmra.mxu0 %v515
        %v1222 = vpop.f32.mrf.mxu0
        %v1223 = vadd.f32 %v1062, %v1222
        %v1224 = vpop.f32.mrf.mxu0
        %v1225 = vadd.f32 %v1064, %v1224
        %1226 = vdwg.mxu0
        %1227 = vmatprep.subr.mxu0 %v759
        %1228 = vmatpush1.msra.mxu0 %v758
        %1229 = vmatprep.subr.mxu0 %v756
        %1230 = vmatpush1.msra.mxu0 %v755
        %1231 = vmatprep.subr.mxu0 %v753
        %1232 = vmatpush1.msra.mxu0 %v752
        %1233 = vmatprep.subr.mxu0 %v750
        %1234 = vmatpush1.msra.mxu0 %v749
        %1235 = vmatprep.subr.mxu0 %v747
        %1236 = vmatpush1.msra.mxu0 %v746
        %1237 = vmatprep.subr.mxu0 %v744
        %1238 = vmatpush1.msra.mxu0 %v743
        %1239 = vmatprep.subr.mxu0 %v741
        %1240 = vmatpush1.msra.mxu0 %v740
        %1241 = vmatprep.subr.mxu0 %v738
        %1242 = vmatpush1.msra.mxu0 %v737
        %1243 = vmatprep.subr.mxu0 %v735
        %1244 = vmatpush1.msra.mxu0 %v734
        %1245 = vmatprep.subr.mxu0 %v732
        %1246 = vmatpush1.msra.mxu0 %v731
        %1247 = vmatprep.subr.mxu0 %v729
        %1248 = vmatpush1.msra.mxu0 %v728
        %1249 = vmatprep.subr.mxu0 %v726
        %1250 = vmatpush1.msra.mxu0 %v725
        %1251 = vmatprep.subr.mxu0 %v723
        %1252 = vmatpush1.msra.mxu0 %v722
        %1253 = vmatprep.subr.mxu0 %v720
        %1254 = vmatpush1.msra.mxu0 %v719
        %1255 = vmatprep.subr.mxu0 %v717
        %1256 = vmatpush1.msra.mxu0 %v716
        %1257 = vmatprep.subr.mxu0 %v714
        %1258 = vmatpush1.msra.mxu0 %v713
        %1259 = vmatprep.subr.mxu0 %v807
        %1260 = vmatpush2.msra.mxu0 %v806
        %1261 = vmatprep.subr.mxu0 %v804
        %1262 = vmatpush2.msra.mxu0 %v803
        %1263 = vmatprep.subr.mxu0 %v801
        %1264 = vmatpush2.msra.mxu0 %v800
        %1265 = vmatprep.subr.mxu0 %v798
        %1266 = vmatpush2.msra.mxu0 %v797
        %1267 = vmatprep.subr.mxu0 %v795
        %1268 = vmatpush2.msra.mxu0 %v794
        %1269 = vmatprep.subr.mxu0 %v792
        %1270 = vmatpush2.msra.mxu0 %v791
        %1271 = vmatprep.subr.mxu0 %v789
        %1272 = vmatpush2.msra.mxu0 %v788
        %1273 = vmatprep.subr.mxu0 %v786
        %1274 = vmatpush2.msra.mxu0 %v785
        %1275 = vmatprep.subr.mxu0 %v783
        %1276 = vmatpush2.msra.mxu0 %v782
        %1277 = vmatprep.subr.mxu0 %v780
        %1278 = vmatpush2.msra.mxu0 %v779
        %1279 = vmatprep.subr.mxu0 %v777
        %1280 = vmatpush2.msra.mxu0 %v776
        %1281 = vmatprep.subr.mxu0 %v774
        %1282 = vmatpush2.msra.mxu0 %v773
        %1283 = vmatprep.subr.mxu0 %v771
        %1284 = vmatpush2.msra.mxu0 %v770
        %1285 = vmatprep.subr.mxu0 %v768
        %1286 = vmatpush2.msra.mxu0 %v767
        %1287 = vmatprep.subr.mxu0 %v765
        %1288 = vmatpush2.msra.mxu0 %v764
        %1289 = vmatprep.subr.mxu0 %v762
        %1290 = vmatpush2.msra.mxu0 %v761
        %1291 = vmatprep.mubr.f32.mxu0 %v398
        %1292 = vmatmul.mubr.f32.gmra.mxu0 %v397
        %v1293 = vpop.f32.mrf.mxu0
        %v1294 = vadd.f32 %v1133, %v1293
        %v1295 = vpop.f32.mrf.mxu0
        %v1296 = vadd.f32 %v1135, %v1295
        %1297 = vmatprep.mubr.f32.mxu0 %v406
        %1298 = vmatmul.mubr.f32.gmra.mxu0 %v405
        %v1299 = vpop.f32.mrf.mxu0
        %v1300 = vadd.f32 %v1139, %v1299
        %v1301 = vpop.f32.mrf.mxu0
        %v1302 = vadd.f32 %v1141, %v1301
        %1303 = vmatprep.mubr.f32.mxu0 %v414
        %1304 = vmatmul.mubr.f32.gmra.mxu0 %v413
        %v1305 = vpop.f32.mrf.mxu0
        %v1306 = vadd.f32 %v1145, %v1305
        %v1307 = vpop.f32.mrf.mxu0
        %v1308 = vadd.f32 %v1147, %v1307
        %1309 = vmatprep.mubr.f32.mxu0 %v422
        %1310 = vmatmul.mubr.f32.gmra.mxu0 %v421
        %v1311 = vpop.f32.mrf.mxu0
        %v1312 = vadd.f32 %v1151, %v1311
        %v1313 = vpop.f32.mrf.mxu0
        %v1314 = vadd.f32 %v1153, %v1313
        %1315 = vmatprep.mubr.f32.mxu0 %v430
        %1316 = vmatmul.mubr.f32.gmra.mxu0 %v429
        %v1317 = vpop.f32.mrf.mxu0
        %v1318 = vadd.f32 %v1157, %v1317
        %v1319 = vpop.f32.mrf.mxu0
        %v1320 = vadd.f32 %v1159, %v1319
        %1321 = vmatprep.mubr.f32.mxu0 %v438
        %1322 = vmatmul.mubr.f32.gmra.mxu0 %v437
        %v1323 = vpop.f32.mrf.mxu0
        %v1324 = vadd.f32 %v1163, %v1323
        %v1325 = vpop.f32.mrf.mxu0
        %v1326 = vadd.f32 %v1165, %v1325
        %1327 = vmatprep.mubr.f32.mxu0 %v446
        %1328 = vmatmul.mubr.f32.gmra.mxu0 %v445
        %v1329 = vpop.f32.mrf.mxu0
        %v1330 = vadd.f32 %v1169, %v1329
        %v1331 = vpop.f32.mrf.mxu0
        %v1332 = vadd.f32 %v1171, %v1331
        %1333 = vmatprep.mubr.f32.mxu0 %v454
        %1334 = vmatmul.mubr.f32.gmra.mxu0 %v453
        %v1335 = vpop.f32.mrf.mxu0
        %v1336 = vadd.f32 %v1175, %v1335
        %v1337 = vpop.f32.mrf.mxu0
        %v1338 = vadd.f32 %v1177, %v1337
        %1339 = vmatprep.mubr.f32.mxu0 %v462
        %1340 = vmatmul.mubr.f32.gmra.mxu0 %v461
        %v1341 = vpop.f32.mrf.mxu0
        %v1342 = vadd.f32 %v1181, %v1341
        %v1343 = vpop.f32.mrf.mxu0
        %v1344 = vadd.f32 %v1183, %v1343
        %1345 = vmatprep.mubr.f32.mxu0 %v470
        %1346 = vmatmul.mubr.f32.gmra.mxu0 %v469
        %v1347 = vpop.f32.mrf.mxu0
        %v1348 = vadd.f32 %v1187, %v1347
        %v1349 = vpop.f32.mrf.mxu0
        %v1350 = vadd.f32 %v1189, %v1349
        %1351 = vmatprep.mubr.f32.mxu0 %v478
        %1352 = vmatmul.mubr.f32.gmra.mxu0 %v477
        %v1353 = vpop.f32.mrf.mxu0
        %v1354 = vadd.f32 %v1193, %v1353
        %v1355 = vpop.f32.mrf.mxu0
        %v1356 = vadd.f32 %v1195, %v1355
        %1357 = vmatprep.mubr.f32.mxu0 %v486
        %1358 = vmatmul.mubr.f32.gmra.mxu0 %v485
        %v1359 = vpop.f32.mrf.mxu0
        %v1360 = vadd.f32 %v1199, %v1359
        %v1361 = vpop.f32.mrf.mxu0
        %v1362 = vadd.f32 %v1201, %v1361
        %1363 = vmatprep.mubr.f32.mxu0 %v494
        %1364 = vmatmul.mubr.f32.gmra.mxu0 %v493
        %v1365 = vpop.f32.mrf.mxu0
        %v1366 = vadd.f32 %v1205, %v1365
        %v1367 = vpop.f32.mrf.mxu0
        %v1368 = vadd.f32 %v1207, %v1367
        %1369 = vmatprep.mubr.f32.mxu0 %v502
        %1370 = vmatmul.mubr.f32.gmra.mxu0 %v501
        %v1371 = vpop.f32.mrf.mxu0
        %v1372 = vadd.f32 %v1211, %v1371
        %v1373 = vpop.f32.mrf.mxu0
        %v1374 = vadd.f32 %v1213, %v1373
        %1375 = vmatprep.mubr.f32.mxu0 %v510
        %1376 = vmatmul.mubr.f32.gmra.mxu0 %v509
        %v1377 = vpop.f32.mrf.mxu0
        %v1378 = vadd.f32 %v1217, %v1377
        %v1379 = vpop.f32.mrf.mxu0
        %v1380 = vadd.f32 %v1219, %v1379
        %1381 = vmatprep.mubr.f32.mxu0 %v518
        %1382 = vmatmul.mubr.f32.gmra.mxu0 %v517
        %v1383 = vpop.f32.mrf.mxu0
        %v1384 = vadd.f32 %v1223, %v1383
        %v1385 = vpop.f32.mrf.mxu0
        %v1386 = vadd.f32 %v1225, %v1385
        %1387 = vdwg.mxu0
        %1388 = vmatprep.subr.mxu0 %v855
        %1389 = vmatpush1.msra.mxu0 %v854
        %1390 = vmatprep.subr.mxu0 %v852
        %1391 = vmatpush1.msra.mxu0 %v851
        %1392 = vmatprep.subr.mxu0 %v849
        %1393 = vmatpush1.msra.mxu0 %v848
        %1394 = vmatprep.subr.mxu0 %v846
        %1395 = vmatpush1.msra.mxu0 %v845
        %1396 = vmatprep.subr.mxu0 %v843
        %1397 = vmatpush1.msra.mxu0 %v842
        %1398 = vmatprep.subr.mxu0 %v840
        %1399 = vmatpush1.msra.mxu0 %v839
        %1400 = vmatprep.subr.mxu0 %v837
        %1401 = vmatpush1.msra.mxu0 %v836
        %1402 = vmatprep.subr.mxu0 %v834
        %1403 = vmatpush1.msra.mxu0 %v833
        %1404 = vmatprep.subr.mxu0 %v831
        %1405 = vmatpush1.msra.mxu0 %v830
        %1406 = vmatprep.subr.mxu0 %v828
        %1407 = vmatpush1.msra.mxu0 %v827
        %1408 = vmatprep.subr.mxu0 %v825
        %1409 = vmatpush1.msra.mxu0 %v824
        %1410 = vmatprep.subr.mxu0 %v822
        %1411 = vmatpush1.msra.mxu0 %v821
        %1412 = vmatprep.subr.mxu0 %v819
        %1413 = vmatpush1.msra.mxu0 %v818
        %1414 = vmatprep.subr.mxu0 %v816
        %1415 = vmatpush1.msra.mxu0 %v815
        %1416 = vmatprep.subr.mxu0 %v813
        %1417 = vmatpush1.msra.mxu0 %v812
        %1418 = vmatprep.subr.mxu0 %v810
        %1419 = vmatpush1.msra.mxu0 %v809
        %1420 = vmatprep.subr.mxu0 %v903
        %1421 = vmatpush2.msra.mxu0 %v902
        %1422 = vmatprep.subr.mxu0 %v900
        %1423 = vmatpush2.msra.mxu0 %v899
        %1424 = vmatprep.subr.mxu0 %v897
        %1425 = vmatpush2.msra.mxu0 %v896
        %1426 = vmatprep.subr.mxu0 %v894
        %1427 = vmatpush2.msra.mxu0 %v893
        %1428 = vmatprep.subr.mxu0 %v891
        %1429 = vmatpush2.msra.mxu0 %v890
        %1430 = vmatprep.subr.mxu0 %v888
        %1431 = vmatpush2.msra.mxu0 %v887
        %1432 = vmatprep.subr.mxu0 %v885
        %1433 = vmatpush2.msra.mxu0 %v884
        %1434 = vmatprep.subr.mxu0 %v882
        %1435 = vmatpush2.msra.mxu0 %v881
        %1436 = vmatprep.subr.mxu0 %v879
        %1437 = vmatpush2.msra.mxu0 %v878
        %1438 = vmatprep.subr.mxu0 %v876
        %1439 = vmatpush2.msra.mxu0 %v875
        %1440 = vmatprep.subr.mxu0 %v873
        %1441 = vmatpush2.msra.mxu0 %v872
        %1442 = vmatprep.subr.mxu0 %v870
        %1443 = vmatpush2.msra.mxu0 %v869
        %1444 = vmatprep.subr.mxu0 %v867
        %1445 = vmatpush2.msra.mxu0 %v866
        %1446 = vmatprep.subr.mxu0 %v864
        %1447 = vmatpush2.msra.mxu0 %v863
        %1448 = vmatprep.subr.mxu0 %v861
        %1449 = vmatpush2.msra.mxu0 %v860
        %1450 = vmatprep.subr.mxu0 %v858
        %1451 = vmatpush2.msra.mxu0 %v857
        %1452 = vmatprep.mubr.f32.mxu0 %v400
        %1453 = vmatmul.mubr.f32.gmra.mxu0 %v399
        %v1454 = vpop.f32.mrf.mxu0
        %v1455 = vadd.f32 %v1294, %v1454
        %v1456 = vpop.f32.mrf.mxu0
        %v1457 = vadd.f32 %v1296, %v1456
        %1458 = vmatprep.mubr.f32.mxu0 %v408
        %1459 = vmatmul.mubr.f32.gmra.mxu0 %v407
        %v1460 = vpop.f32.mrf.mxu0
        %v1461 = vadd.f32 %v1300, %v1460
        %v1462 = vpop.f32.mrf.mxu0
        %v1463 = vadd.f32 %v1302, %v1462
        %1464 = vmatprep.mubr.f32.mxu0 %v416
        %1465 = vmatmul.mubr.f32.gmra.mxu0 %v415
        %v1466 = vpop.f32.mrf.mxu0
        %v1467 = vadd.f32 %v1306, %v1466
        %v1468 = vpop.f32.mrf.mxu0
        %v1469 = vadd.f32 %v1308, %v1468
        %1470 = vmatprep.mubr.f32.mxu0 %v424
        %1471 = vmatmul.mubr.f32.gmra.mxu0 %v423
        %v1472 = vpop.f32.mrf.mxu0
        %v1473 = vadd.f32 %v1312, %v1472
        %v1474 = vpop.f32.mrf.mxu0
        %v1475 = vadd.f32 %v1314, %v1474
        %1476 = vmatprep.mubr.f32.mxu0 %v432
        %1477 = vmatmul.mubr.f32.gmra.mxu0 %v431
        %v1478 = vpop.f32.mrf.mxu0
        %v1479 = vadd.f32 %v1318, %v1478
        %v1480 = vpop.f32.mrf.mxu0
        %v1481 = vadd.f32 %v1320, %v1480
        %1482 = vmatprep.mubr.f32.mxu0 %v440
        %1483 = vmatmul.mubr.f32.gmra.mxu0 %v439
        %v1484 = vpop.f32.mrf.mxu0
        %v1485 = vadd.f32 %v1324, %v1484
        %v1486 = vpop.f32.mrf.mxu0
        %v1487 = vadd.f32 %v1326, %v1486
        %1488 = vmatprep.mubr.f32.mxu0 %v448
        %1489 = vmatmul.mubr.f32.gmra.mxu0 %v447
        %v1490 = vpop.f32.mrf.mxu0
        %v1491 = vadd.f32 %v1330, %v1490
        %v1492 = vpop.f32.mrf.mxu0
        %v1493 = vadd.f32 %v1332, %v1492
        %1494 = vmatprep.mubr.f32.mxu0 %v456
        %1495 = vmatmul.mubr.f32.gmra.mxu0 %v455
        %v1496 = vpop.f32.mrf.mxu0
        %v1497 = vadd.f32 %v1336, %v1496
        %v1498 = vpop.f32.mrf.mxu0
        %v1499 = vadd.f32 %v1338, %v1498
        %1500 = vmatprep.mubr.f32.mxu0 %v464
        %1501 = vmatmul.mubr.f32.gmra.mxu0 %v463
        %v1502 = vpop.f32.mrf.mxu0
        %v1503 = vadd.f32 %v1342, %v1502
        %v1504 = vpop.f32.mrf.mxu0
        %v1505 = vadd.f32 %v1344, %v1504
        %1506 = vmatprep.mubr.f32.mxu0 %v472
        %1507 = vmatmul.mubr.f32.gmra.mxu0 %v471
        %v1508 = vpop.f32.mrf.mxu0
        %v1509 = vadd.f32 %v1348, %v1508
        %v1510 = vpop.f32.mrf.mxu0
        %v1511 = vadd.f32 %v1350, %v1510
        %1512 = vmatprep.mubr.f32.mxu0 %v480
        %1513 = vmatmul.mubr.f32.gmra.mxu0 %v479
        %v1514 = vpop.f32.mrf.mxu0
        %v1515 = vadd.f32 %v1354, %v1514
        %v1516 = vpop.f32.mrf.mxu0
        %v1517 = vadd.f32 %v1356, %v1516
        %1518 = vmatprep.mubr.f32.mxu0 %v488
        %1519 = vmatmul.mubr.f32.gmra.mxu0 %v487
        %v1520 = vpop.f32.mrf.mxu0
        %v1521 = vadd.f32 %v1360, %v1520
        %v1522 = vpop.f32.mrf.mxu0
        %v1523 = vadd.f32 %v1362, %v1522
        %1524 = vmatprep.mubr.f32.mxu0 %v496
        %1525 = vmatmul.mubr.f32.gmra.mxu0 %v495
        %v1526 = vpop.f32.mrf.mxu0
        %v1527 = vadd.f32 %v1366, %v1526
        %v1528 = vpop.f32.mrf.mxu0
        %v1529 = vadd.f32 %v1368, %v1528
        %1530 = vmatprep.mubr.f32.mxu0 %v504
        %1531 = vmatmul.mubr.f32.gmra.mxu0 %v503
        %v1532 = vpop.f32.mrf.mxu0
        %v1533 = vadd.f32 %v1372, %v1532
        %v1534 = vpop.f32.mrf.mxu0
        %v1535 = vadd.f32 %v1374, %v1534
        %1536 = vmatprep.mubr.f32.mxu0 %v512
        %1537 = vmatmul.mubr.f32.gmra.mxu0 %v511
        %v1538 = vpop.f32.mrf.mxu0
        %v1539 = vadd.f32 %v1378, %v1538
        %v1540 = vpop.f32.mrf.mxu0
        %v1541 = vadd.f32 %v1380, %v1540
        %1542 = vmatprep.mubr.f32.mxu0 %v520
        %1543 = vmatmul.mubr.f32.gmra.mxu0 %v519
        %v1544 = vpop.f32.mrf.mxu0
        %v1545 = vadd.f32 %v1384, %v1544
        %v1546 = vpop.f32.mrf.mxu0
        %v1547 = vadd.f32 %v1386, %v1546
        %1548 = vdwg.mxu0
        %1549 = vmatprep.subr.mxu0 0.0
        %1550 = vmatpush1.msra.mxu0 %v568
        %1551 = vmatprep.subr.mxu0 0.0
        %1552 = vmatpush1.msra.mxu0 %v565
        %1553 = vmatprep.subr.mxu0 0.0
        %1554 = vmatpush1.msra.mxu0 %v562
        %1555 = vmatprep.subr.mxu0 0.0
        %1556 = vmatpush1.msra.mxu0 %v559
        %1557 = vmatprep.subr.mxu0 0.0
        %1558 = vmatpush1.msra.mxu0 %v556
        %1559 = vmatprep.subr.mxu0 0.0
        %1560 = vmatpush1.msra.mxu0 %v553
        %1561 = vmatprep.subr.mxu0 0.0
        %1562 = vmatpush1.msra.mxu0 %v550
        %1563 = vmatprep.subr.mxu0 0.0
        %1564 = vmatpush1.msra.mxu0 %v547
        %1565 = vmatprep.subr.mxu0 0.0
        %1566 = vmatpush1.msra.mxu0 %v544
        %1567 = vmatprep.subr.mxu0 0.0
        %1568 = vmatpush1.msra.mxu0 %v541
        %1569 = vmatprep.subr.mxu0 0.0
        %1570 = vmatpush1.msra.mxu0 %v538
        %1571 = vmatprep.subr.mxu0 0.0
        %1572 = vmatpush1.msra.mxu0 %v535
        %1573 = vmatprep.subr.mxu0 0.0
        %1574 = vmatpush1.msra.mxu0 %v532
        %1575 = vmatprep.subr.mxu0 0.0
        %1576 = vmatpush1.msra.mxu0 %v529
        %1577 = vmatprep.subr.mxu0 0.0
        %1578 = vmatpush1.msra.mxu0 %v526
        %1579 = vmatprep.subr.mxu0 0.0
        %1580 = vmatpush1.msra.mxu0 %v523
        %1581 = vmatprep.subr.mxu0 0.0
        %1582 = vmatpush2.msra.mxu0 %v616
        %1583 = vmatprep.subr.mxu0 0.0
        %1584 = vmatpush2.msra.mxu0 %v613
        %1585 = vmatprep.subr.mxu0 0.0
        %1586 = vmatpush2.msra.mxu0 %v610
        %1587 = vmatprep.subr.mxu0 0.0
        %1588 = vmatpush2.msra.mxu0 %v607
        %1589 = vmatprep.subr.mxu0 0.0
        %1590 = vmatpush2.msra.mxu0 %v604
        %1591 = vmatprep.subr.mxu0 0.0
        %1592 = vmatpush2.msra.mxu0 %v601
        %1593 = vmatprep.subr.mxu0 0.0
        %1594 = vmatpush2.msra.mxu0 %v598
        %1595 = vmatprep.subr.mxu0 0.0
        %1596 = vmatpush2.msra.mxu0 %v595
        %1597 = vmatprep.subr.mxu0 0.0
        %1598 = vmatpush2.msra.mxu0 %v592
        %1599 = vmatprep.subr.mxu0 0.0
        %1600 = vmatpush2.msra.mxu0 %v589
        %1601 = vmatprep.subr.mxu0 0.0
        %1602 = vmatpush2.msra.mxu0 %v586
        %1603 = vmatprep.subr.mxu0 0.0
        %1604 = vmatpush2.msra.mxu0 %v583
        %1605 = vmatprep.subr.mxu0 0.0
        %1606 = vmatpush2.msra.mxu0 %v580
        %1607 = vmatprep.subr.mxu0 0.0
        %1608 = vmatpush2.msra.mxu0 %v577
        %1609 = vmatprep.subr.mxu0 0.0
        %1610 = vmatpush2.msra.mxu0 %v574
        %1611 = vmatprep.subr.mxu0 0.0
        %1612 = vmatpush2.msra.mxu0 %v571
        %1613 = vmatprep.mubr.f32.mxu0 %v394
        %1614 = vmatmul.mubr.f32.gmra.mxu0 %v393
        %v1615 = vpop.f32.mrf.mxu0
        %v1616 = vadd.f32 0.0, %v1615
        %v1617 = vpop.f32.mrf.mxu0
        %1618 = vmatprep.mubr.f32.mxu0 %v402
        %1619 = vmatmul.mubr.f32.gmra.mxu0 %v401
        %v1620 = vpop.f32.mrf.mxu0
        %v1621 = vadd.f32 0.0, %v1620
        %v1622 = vpop.f32.mrf.mxu0
        %1623 = vmatprep.mubr.f32.mxu0 %v410
        %1624 = vmatmul.mubr.f32.gmra.mxu0 %v409
        %v1625 = vpop.f32.mrf.mxu0
        %v1626 = vadd.f32 0.0, %v1625
        %v1627 = vpop.f32.mrf.mxu0
        %1628 = vmatprep.mubr.f32.mxu0 %v418
        %1629 = vmatmul.mubr.f32.gmra.mxu0 %v417
        %v1630 = vpop.f32.mrf.mxu0
        %v1631 = vadd.f32 0.0, %v1630
        %v1632 = vpop.f32.mrf.mxu0
        %1633 = vmatprep.mubr.f32.mxu0 %v426
        %1634 = vmatmul.mubr.f32.gmra.mxu0 %v425
        %v1635 = vpop.f32.mrf.mxu0
        %v1636 = vadd.f32 0.0, %v1635
        %v1637 = vpop.f32.mrf.mxu0
        %1638 = vmatprep.mubr.f32.mxu0 %v434
        %1639 = vmatmul.mubr.f32.gmra.mxu0 %v433
        %v1640 = vpop.f32.mrf.mxu0
        %v1641 = vadd.f32 0.0, %v1640
        %v1642 = vpop.f32.mrf.mxu0
        %1643 = vmatprep.mubr.f32.mxu0 %v442
        %1644 = vmatmul.mubr.f32.gmra.mxu0 %v441
        %v1645 = vpop.f32.mrf.mxu0
        %v1646 = vadd.f32 0.0, %v1645
        %v1647 = vpop.f32.mrf.mxu0
        %1648 = vmatprep.mubr.f32.mxu0 %v450
        %1649 = vmatmul.mubr.f32.gmra.mxu0 %v449
        %v1650 = vpop.f32.mrf.mxu0
        %v1651 = vadd.f32 0.0, %v1650
        %v1652 = vpop.f32.mrf.mxu0
        %1653 = vmatprep.mubr.f32.mxu0 %v458
        %1654 = vmatmul.mubr.f32.gmra.mxu0 %v457
        %v1655 = vpop.f32.mrf.mxu0
        %v1656 = vadd.f32 0.0, %v1655
        %v1657 = vpop.f32.mrf.mxu0
        %1658 = vmatprep.mubr.f32.mxu0 %v466
        %1659 = vmatmul.mubr.f32.gmra.mxu0 %v465
        %v1660 = vpop.f32.mrf.mxu0
        %v1661 = vadd.f32 0.0, %v1660
        %v1662 = vpop.f32.mrf.mxu0
        %1663 = vmatprep.mubr.f32.mxu0 %v474
        %1664 = vmatmul.mubr.f32.gmra.mxu0 %v473
        %v1665 = vpop.f32.mrf.mxu0
        %v1666 = vadd.f32 0.0, %v1665
        %v1667 = vpop.f32.mrf.mxu0
        %1668 = vmatprep.mubr.f32.mxu0 %v482
        %1669 = vmatmul.mubr.f32.gmra.mxu0 %v481
        %v1670 = vpop.f32.mrf.mxu0
        %v1671 = vadd.f32 0.0, %v1670
        %v1672 = vpop.f32.mrf.mxu0
        %1673 = vmatprep.mubr.f32.mxu0 %v490
        %1674 = vmatmul.mubr.f32.gmra.mxu0 %v489
        %v1675 = vpop.f32.mrf.mxu0
        %v1676 = vadd.f32 0.0, %v1675
        %v1677 = vpop.f32.mrf.mxu0
        %1678 = vmatprep.mubr.f32.mxu0 %v498
        %1679 = vmatmul.mubr.f32.gmra.mxu0 %v497
        %v1680 = vpop.f32.mrf.mxu0
        %v1681 = vadd.f32 0.0, %v1680
        %v1682 = vpop.f32.mrf.mxu0
        %1683 = vmatprep.mubr.f32.mxu0 %v506
        %1684 = vmatmul.mubr.f32.gmra.mxu0 %v505
        %v1685 = vpop.f32.mrf.mxu0
        %v1686 = vadd.f32 0.0, %v1685
        %v1687 = vpop.f32.mrf.mxu0
        %1688 = vmatprep.mubr.f32.mxu0 %v514
        %1689 = vmatmul.mubr.f32.gmra.mxu0 %v513
        %v1690 = vpop.f32.mrf.mxu0
        %v1691 = vadd.f32 0.0, %v1690
        %v1692 = vpop.f32.mrf.mxu0
        %1693 = vdwg.mxu0
        %1694 = vmatprep.subr.mxu0 0.0
        %1695 = vmatpush1.msra.mxu0 %v664
        %1696 = vmatprep.subr.mxu0 0.0
        %1697 = vmatpush1.msra.mxu0 %v661
        %1698 = vmatprep.subr.mxu0 0.0
        %1699 = vmatpush1.msra.mxu0 %v658
        %1700 = vmatprep.subr.mxu0 0.0
        %1701 = vmatpush1.msra.mxu0 %v655
        %1702 = vmatprep.subr.mxu0 0.0
        %1703 = vmatpush1.msra.mxu0 %v652
        %1704 = vmatprep.subr.mxu0 0.0
        %1705 = vmatpush1.msra.mxu0 %v649
        %1706 = vmatprep.subr.mxu0 0.0
        %1707 = vmatpush1.msra.mxu0 %v646
        %1708 = vmatprep.subr.mxu0 0.0
        %1709 = vmatpush1.msra.mxu0 %v643
        %1710 = vmatprep.subr.mxu0 0.0
        %1711 = vmatpush1.msra.mxu0 %v640
        %1712 = vmatprep.subr.mxu0 0.0
        %1713 = vmatpush1.msra.mxu0 %v637
        %1714 = vmatprep.subr.mxu0 0.0
        %1715 = vmatpush1.msra.mxu0 %v634
        %1716 = vmatprep.subr.mxu0 0.0
        %1717 = vmatpush1.msra.mxu0 %v631
        %1718 = vmatprep.subr.mxu0 0.0
        %1719 = vmatpush1.msra.mxu0 %v628
        %1720 = vmatprep.subr.mxu0 0.0
        %1721 = vmatpush1.msra.mxu0 %v625
        %1722 = vmatprep.subr.mxu0 0.0
        %1723 = vmatpush1.msra.mxu0 %v622
        %1724 = vmatprep.subr.mxu0 0.0
        %1725 = vmatpush1.msra.mxu0 %v619
        %1726 = vmatprep.subr.mxu0 0.0
        %1727 = vmatpush2.msra.mxu0 %v712
        %1728 = vmatprep.subr.mxu0 0.0
        %1729 = vmatpush2.msra.mxu0 %v709
        %1730 = vmatprep.subr.mxu0 0.0
        %1731 = vmatpush2.msra.mxu0 %v706
        %1732 = vmatprep.subr.mxu0 0.0
        %1733 = vmatpush2.msra.mxu0 %v703
        %1734 = vmatprep.subr.mxu0 0.0
        %1735 = vmatpush2.msra.mxu0 %v700
        %1736 = vmatprep.subr.mxu0 0.0
        %1737 = vmatpush2.msra.mxu0 %v697
        %1738 = vmatprep.subr.mxu0 0.0
        %1739 = vmatpush2.msra.mxu0 %v694
        %1740 = vmatprep.subr.mxu0 0.0
        %1741 = vmatpush2.msra.mxu0 %v691
        %1742 = vmatprep.subr.mxu0 0.0
        %1743 = vmatpush2.msra.mxu0 %v688
        %1744 = vmatprep.subr.mxu0 0.0
        %1745 = vmatpush2.msra.mxu0 %v685
        %1746 = vmatprep.subr.mxu0 0.0
        %1747 = vmatpush2.msra.mxu0 %v682
        %1748 = vmatprep.subr.mxu0 0.0
        %1749 = vmatpush2.msra.mxu0 %v679
        %1750 = vmatprep.subr.mxu0 0.0
        %1751 = vmatpush2.msra.mxu0 %v676
        %1752 = vmatprep.subr.mxu0 0.0
        %1753 = vmatpush2.msra.mxu0 %v673
        %1754 = vmatprep.subr.mxu0 0.0
        %1755 = vmatpush2.msra.mxu0 %v670
        %1756 = vmatprep.subr.mxu0 0.0
        %1757 = vmatpush2.msra.mxu0 %v667
        %1758 = vmatprep.mubr.f32.mxu0 %v396
        %1759 = vmatmul.mubr.f32.gmra.mxu0 %v395
        %v1760 = vpop.f32.mrf.mxu0
        %v1761 = vadd.f32 %v1616, %v1760
        %v1762 = vpop.f32.mrf.mxu0
        %1763 = vmatprep.mubr.f32.mxu0 %v404
        %1764 = vmatmul.mubr.f32.gmra.mxu0 %v403
        %v1765 = vpop.f32.mrf.mxu0
        %v1766 = vadd.f32 %v1621, %v1765
        %v1767 = vpop.f32.mrf.mxu0
        %1768 = vmatprep.mubr.f32.mxu0 %v412
        %1769 = vmatmul.mubr.f32.gmra.mxu0 %v411
        %v1770 = vpop.f32.mrf.mxu0
        %v1771 = vadd.f32 %v1626, %v1770
        %v1772 = vpop.f32.mrf.mxu0
        %1773 = vmatprep.mubr.f32.mxu0 %v420
        %1774 = vmatmul.mubr.f32.gmra.mxu0 %v419
        %v1775 = vpop.f32.mrf.mxu0
        %v1776 = vadd.f32 %v1631, %v1775
        %v1777 = vpop.f32.mrf.mxu0
        %1778 = vmatprep.mubr.f32.mxu0 %v428
        %1779 = vmatmul.mubr.f32.gmra.mxu0 %v427
        %v1780 = vpop.f32.mrf.mxu0
        %v1781 = vadd.f32 %v1636, %v1780
        %v1782 = vpop.f32.mrf.mxu0
        %1783 = vmatprep.mubr.f32.mxu0 %v436
        %1784 = vmatmul.mubr.f32.gmra.mxu0 %v435
        %v1785 = vpop.f32.mrf.mxu0
        %v1786 = vadd.f32 %v1641, %v1785
        %v1787 = vpop.f32.mrf.mxu0
        %1788 = vmatprep.mubr.f32.mxu0 %v444
        %1789 = vmatmul.mubr.f32.gmra.mxu0 %v443
        %v1790 = vpop.f32.mrf.mxu0
        %v1791 = vadd.f32 %v1646, %v1790
        %v1792 = vpop.f32.mrf.mxu0
        %1793 = vmatprep.mubr.f32.mxu0 %v452
        %1794 = vmatmul.mubr.f32.gmra.mxu0 %v451
        %v1795 = vpop.f32.mrf.mxu0
        %v1796 = vadd.f32 %v1651, %v1795
        %v1797 = vpop.f32.mrf.mxu0
        %1798 = vmatprep.mubr.f32.mxu0 %v460
        %1799 = vmatmul.mubr.f32.gmra.mxu0 %v459
        %v1800 = vpop.f32.mrf.mxu0
        %v1801 = vadd.f32 %v1656, %v1800
        %v1802 = vpop.f32.mrf.mxu0
        %1803 = vmatprep.mubr.f32.mxu0 %v468
        %1804 = vmatmul.mubr.f32.gmra.mxu0 %v467
        %v1805 = vpop.f32.mrf.mxu0
        %v1806 = vadd.f32 %v1661, %v1805
        %v1807 = vpop.f32.mrf.mxu0
        %1808 = vmatprep.mubr.f32.mxu0 %v476
        %1809 = vmatmul.mubr.f32.gmra.mxu0 %v475
        %v1810 = vpop.f32.mrf.mxu0
        %v1811 = vadd.f32 %v1666, %v1810
        %v1812 = vpop.f32.mrf.mxu0
        %1813 = vmatprep.mubr.f32.mxu0 %v484
        %1814 = vmatmul.mubr.f32.gmra.mxu0 %v483
        %v1815 = vpop.f32.mrf.mxu0
        %v1816 = vadd.f32 %v1671, %v1815
        %v1817 = vpop.f32.mrf.mxu0
        %1818 = vmatprep.mubr.f32.mxu0 %v492
        %1819 = vmatmul.mubr.f32.gmra.mxu0 %v491
        %v1820 = vpop.f32.mrf.mxu0
        %v1821 = vadd.f32 %v1676, %v1820
        %v1822 = vpop.f32.mrf.mxu0
        %1823 = vmatprep.mubr.f32.mxu0 %v500
        %1824 = vmatmul.mubr.f32.gmra.mxu0 %v499
        %v1825 = vpop.f32.mrf.mxu0
        %v1826 = vadd.f32 %v1681, %v1825
        %v1827 = vpop.f32.mrf.mxu0
        %1828 = vmatprep.mubr.f32.mxu0 %v508
        %1829 = vmatmul.mubr.f32.gmra.mxu0 %v507
        %v1830 = vpop.f32.mrf.mxu0
        %v1831 = vadd.f32 %v1686, %v1830
        %v1832 = vpop.f32.mrf.mxu0
        %1833 = vmatprep.mubr.f32.mxu0 %v516
        %1834 = vmatmul.mubr.f32.gmra.mxu0 %v515
        %v1835 = vpop.f32.mrf.mxu0
        %v1836 = vadd.f32 %v1691, %v1835
        %v1837 = vpop.f32.mrf.mxu0
        %1838 = vdwg.mxu0
        %1839 = vmatprep.subr.mxu0 0.0
        %1840 = vmatpush1.msra.mxu0 %v760
        %1841 = vmatprep.subr.mxu0 0.0
        %1842 = vmatpush1.msra.mxu0 %v757
        %1843 = vmatprep.subr.mxu0 0.0
        %1844 = vmatpush1.msra.mxu0 %v754
        %1845 = vmatprep.subr.mxu0 0.0
        %1846 = vmatpush1.msra.mxu0 %v751
        %1847 = vmatprep.subr.mxu0 0.0
        %1848 = vmatpush1.msra.mxu0 %v748
        %1849 = vmatprep.subr.mxu0 0.0
        %1850 = vmatpush1.msra.mxu0 %v745
        %1851 = vmatprep.subr.mxu0 0.0
        %1852 = vmatpush1.msra.mxu0 %v742
        %1853 = vmatprep.subr.mxu0 0.0
        %1854 = vmatpush1.msra.mxu0 %v739
        %1855 = vmatprep.subr.mxu0 0.0
        %1856 = vmatpush1.msra.mxu0 %v736
        %1857 = vmatprep.subr.mxu0 0.0
        %1858 = vmatpush1.msra.mxu0 %v733
        %1859 = vmatprep.subr.mxu0 0.0
        %1860 = vmatpush1.msra.mxu0 %v730
        %1861 = vmatprep.subr.mxu0 0.0
        %1862 = vmatpush1.msra.mxu0 %v727
        %1863 = vmatprep.subr.mxu0 0.0
        %1864 = vmatpush1.msra.mxu0 %v724
        %1865 = vmatprep.subr.mxu0 0.0
        %1866 = vmatpush1.msra.mxu0 %v721
        %1867 = vmatprep.subr.mxu0 0.0
        %1868 = vmatpush1.msra.mxu0 %v718
        %1869 = vmatprep.subr.mxu0 0.0
        %1870 = vmatpush1.msra.mxu0 %v715
        %1871 = vmatprep.subr.mxu0 0.0
        %1872 = vmatpush2.msra.mxu0 %v808
        %1873 = vmatprep.subr.mxu0 0.0
        %1874 = vmatpush2.msra.mxu0 %v805
        %1875 = vmatprep.subr.mxu0 0.0
        %1876 = vmatpush2.msra.mxu0 %v802
        %1877 = vmatprep.subr.mxu0 0.0
        %1878 = vmatpush2.msra.mxu0 %v799
        %1879 = vmatprep.subr.mxu0 0.0
        %1880 = vmatpush2.msra.mxu0 %v796
        %1881 = vmatprep.subr.mxu0 0.0
        %1882 = vmatpush2.msra.mxu0 %v793
        %1883 = vmatprep.subr.mxu0 0.0
        %1884 = vmatpush2.msra.mxu0 %v790
        %1885 = vmatprep.subr.mxu0 0.0
        %1886 = vmatpush2.msra.mxu0 %v787
        %1887 = vmatprep.subr.mxu0 0.0
        %1888 = vmatpush2.msra.mxu0 %v784
        %1889 = vmatprep.subr.mxu0 0.0
        %1890 = vmatpush2.msra.mxu0 %v781
        %1891 = vmatprep.subr.mxu0 0.0
        %1892 = vmatpush2.msra.mxu0 %v778
        %1893 = vmatprep.subr.mxu0 0.0
        %1894 = vmatpush2.msra.mxu0 %v775
        %1895 = vmatprep.subr.mxu0 0.0
        %1896 = vmatpush2.msra.mxu0 %v772
        %1897 = vmatprep.subr.mxu0 0.0
        %1898 = vmatpush2.msra.mxu0 %v769
        %1899 = vmatprep.subr.mxu0 0.0
        %1900 = vmatpush2.msra.mxu0 %v766
        %1901 = vmatprep.subr.mxu0 0.0
        %1902 = vmatpush2.msra.mxu0 %v763
        %1903 = vmatprep.mubr.f32.mxu0 %v398
        %1904 = vmatmul.mubr.f32.gmra.mxu0 %v397
        %v1905 = vpop.f32.mrf.mxu0
        %v1906 = vadd.f32 %v1761, %v1905
        %v1907 = vpop.f32.mrf.mxu0
        %1908 = vmatprep.mubr.f32.mxu0 %v406
        %1909 = vmatmul.mubr.f32.gmra.mxu0 %v405
        %v1910 = vpop.f32.mrf.mxu0
        %v1911 = vadd.f32 %v1766, %v1910
        %v1912 = vpop.f32.mrf.mxu0
        %1913 = vmatprep.mubr.f32.mxu0 %v414
        %1914 = vmatmul.mubr.f32.gmra.mxu0 %v413
        %v1915 = vpop.f32.mrf.mxu0
        %v1916 = vadd.f32 %v1771, %v1915
        %v1917 = vpop.f32.mrf.mxu0
        %1918 = vmatprep.mubr.f32.mxu0 %v422
        %1919 = vmatmul.mubr.f32.gmra.mxu0 %v421
        %v1920 = vpop.f32.mrf.mxu0
        %v1921 = vadd.f32 %v1776, %v1920
        %v1922 = vpop.f32.mrf.mxu0
        %1923 = vmatprep.mubr.f32.mxu0 %v430
        %1924 = vmatmul.mubr.f32.gmra.mxu0 %v429
        %v1925 = vpop.f32.mrf.mxu0
        %v1926 = vadd.f32 %v1781, %v1925
        %v1927 = vpop.f32.mrf.mxu0
        %1928 = vmatprep.mubr.f32.mxu0 %v438
        %1929 = vmatmul.mubr.f32.gmra.mxu0 %v437
        %v1930 = vpop.f32.mrf.mxu0
        %v1931 = vadd.f32 %v1786, %v1930
        %v1932 = vpop.f32.mrf.mxu0
        %1933 = vmatprep.mubr.f32.mxu0 %v446
        %1934 = vmatmul.mubr.f32.gmra.mxu0 %v445
        %v1935 = vpop.f32.mrf.mxu0
        %v1936 = vadd.f32 %v1791, %v1935
        %v1937 = vpop.f32.mrf.mxu0
        %1938 = vmatprep.mubr.f32.mxu0 %v454
        %1939 = vmatmul.mubr.f32.gmra.mxu0 %v453
        %v1940 = vpop.f32.mrf.mxu0
        %v1941 = vadd.f32 %v1796, %v1940
        %v1942 = vpop.f32.mrf.mxu0
        %1943 = vmatprep.mubr.f32.mxu0 %v462
        %1944 = vmatmul.mubr.f32.gmra.mxu0 %v461
        %v1945 = vpop.f32.mrf.mxu0
        %v1946 = vadd.f32 %v1801, %v1945
        %v1947 = vpop.f32.mrf.mxu0
        %1948 = vmatprep.mubr.f32.mxu0 %v470
        %1949 = vmatmul.mubr.f32.gmra.mxu0 %v469
        %v1950 = vpop.f32.mrf.mxu0
        %v1951 = vadd.f32 %v1806, %v1950
        %v1952 = vpop.f32.mrf.mxu0
        %1953 = vmatprep.mubr.f32.mxu0 %v478
        %1954 = vmatmul.mubr.f32.gmra.mxu0 %v477
        %v1955 = vpop.f32.mrf.mxu0
        %v1956 = vadd.f32 %v1811, %v1955
        %v1957 = vpop.f32.mrf.mxu0
        %1958 = vmatprep.mubr.f32.mxu0 %v486
        %1959 = vmatmul.mubr.f32.gmra.mxu0 %v485
        %v1960 = vpop.f32.mrf.mxu0
        %v1961 = vadd.f32 %v1816, %v1960
        %v1962 = vpop.f32.mrf.mxu0
        %1963 = vmatprep.mubr.f32.mxu0 %v494
        %1964 = vmatmul.mubr.f32.gmra.mxu0 %v493
        %v1965 = vpop.f32.mrf.mxu0
        %v1966 = vadd.f32 %v1821, %v1965
        %v1967 = vpop.f32.mrf.mxu0
        %1968 = vmatprep.mubr.f32.mxu0 %v502
        %1969 = vmatmul.mubr.f32.gmra.mxu0 %v501
        %v1970 = vpop.f32.mrf.mxu0
        %v1971 = vadd.f32 %v1826, %v1970
        %v1972 = vpop.f32.mrf.mxu0
        %1973 = vmatprep.mubr.f32.mxu0 %v510
        %1974 = vmatmul.mubr.f32.gmra.mxu0 %v509
        %v1975 = vpop.f32.mrf.mxu0
        %v1976 = vadd.f32 %v1831, %v1975
        %v1977 = vpop.f32.mrf.mxu0
        %1978 = vmatprep.mubr.f32.mxu0 %v518
        %1979 = vmatmul.mubr.f32.gmra.mxu0 %v517
        %v1980 = vpop.f32.mrf.mxu0
        %v1981 = vadd.f32 %v1836, %v1980
        %v1982 = vpop.f32.mrf.mxu0
        %1983 = vdwg.mxu0
        %1984 = vmatprep.subr.mxu0 0.0
        %1985 = vmatpush1.msra.mxu0 %v856
        %1986 = vmatprep.subr.mxu0 0.0
        %1987 = vmatpush1.msra.mxu0 %v853
        %1988 = vmatprep.subr.mxu0 0.0
        %1989 = vmatpush1.msra.mxu0 %v850
        %1990 = vmatprep.subr.mxu0 0.0
        %1991 = vmatpush1.msra.mxu0 %v847
        %1992 = vmatprep.subr.mxu0 0.0
        %1993 = vmatpush1.msra.mxu0 %v844
        %1994 = vmatprep.subr.mxu0 0.0
        %1995 = vmatpush1.msra.mxu0 %v841
        %1996 = vmatprep.subr.mxu0 0.0
        %1997 = vmatpush1.msra.mxu0 %v838
        %1998 = vmatprep.subr.mxu0 0.0
        %1999 = vmatpush1.msra.mxu0 %v835
        %2000 = vmatprep.subr.mxu0 0.0
        %2001 = vmatpush1.msra.mxu0 %v832
        %2002 = vmatprep.subr.mxu0 0.0
        %2003 = vmatpush1.msra.mxu0 %v829
        %2004 = vmatprep.subr.mxu0 0.0
        %2005 = vmatpush1.msra.mxu0 %v826
        %2006 = vmatprep.subr.mxu0 0.0
        %2007 = vmatpush1.msra.mxu0 %v823
        %2008 = vmatprep.subr.mxu0 0.0
        %2009 = vmatpush1.msra.mxu0 %v820
        %2010 = vmatprep.subr.mxu0 0.0
        %2011 = vmatpush1.msra.mxu0 %v817
        %2012 = vmatprep.subr.mxu0 0.0
        %2013 = vmatpush1.msra.mxu0 %v814
        %2014 = vmatprep.subr.mxu0 0.0
        %2015 = vmatpush1.msra.mxu0 %v811
        %2016 = vmatprep.subr.mxu0 0.0
        %2017 = vmatpush2.msra.mxu0 %v904
        %2018 = vmatprep.subr.mxu0 0.0
        %2019 = vmatpush2.msra.mxu0 %v901
        %2020 = vmatprep.subr.mxu0 0.0
        %2021 = vmatpush2.msra.mxu0 %v898
        %2022 = vmatprep.subr.mxu0 0.0
        %2023 = vmatpush2.msra.mxu0 %v895
        %2024 = vmatprep.subr.mxu0 0.0
        %2025 = vmatpush2.msra.mxu0 %v892
        %2026 = vmatprep.subr.mxu0 0.0
        %2027 = vmatpush2.msra.mxu0 %v889
        %2028 = vmatprep.subr.mxu0 0.0
        %2029 = vmatpush2.msra.mxu0 %v886
        %2030 = vmatprep.subr.mxu0 0.0
        %2031 = vmatpush2.msra.mxu0 %v883
        %2032 = vmatprep.subr.mxu0 0.0
        %2033 = vmatpush2.msra.mxu0 %v880
        %2034 = vmatprep.subr.mxu0 0.0
        %2035 = vmatpush2.msra.mxu0 %v877
        %2036 = vmatprep.subr.mxu0 0.0
        %2037 = vmatpush2.msra.mxu0 %v874
        %2038 = vmatprep.subr.mxu0 0.0
        %2039 = vmatpush2.msra.mxu0 %v871
        %2040 = vmatprep.subr.mxu0 0.0
        %2041 = vmatpush2.msra.mxu0 %v868
        %2042 = vmatprep.subr.mxu0 0.0
        %2043 = vmatpush2.msra.mxu0 %v865
        %2044 = vmatprep.subr.mxu0 0.0
        %2045 = vmatpush2.msra.mxu0 %v862
        %2046 = vmatprep.subr.mxu0 0.0
        %2047 = vmatpush2.msra.mxu0 %v859
        %2048 = vmatprep.mubr.f32.mxu0 %v400
        %2049 = vmatmul.mubr.f32.gmra.mxu0 %v399
        %v2050 = vpop.f32.mrf.mxu0
        %v2051 = vadd.f32 %v1906, %v2050
        %v2052 = vpop.f32.mrf.mxu0
        %2053 = vmatprep.mubr.f32.mxu0 %v408
        %2054 = vmatmul.mubr.f32.gmra.mxu0 %v407
        %v2055 = vpop.f32.mrf.mxu0
        %v2056 = vadd.f32 %v1911, %v2055
        %v2057 = vpop.f32.mrf.mxu0
        %2058 = vmatprep.mubr.f32.mxu0 %v416
        %2059 = vmatmul.mubr.f32.gmra.mxu0 %v415
        %v2060 = vpop.f32.mrf.mxu0
        %v2061 = vadd.f32 %v1916, %v2060
        %v2062 = vpop.f32.mrf.mxu0
        %2063 = vmatprep.mubr.f32.mxu0 %v424
        %2064 = vmatmul.mubr.f32.gmra.mxu0 %v423
        %v2065 = vpop.f32.mrf.mxu0
        %v2066 = vadd.f32 %v1921, %v2065
        %v2067 = vpop.f32.mrf.mxu0
        %2068 = vmatprep.mubr.f32.mxu0 %v432
        %2069 = vmatmul.mubr.f32.gmra.mxu0 %v431
        %v2070 = vpop.f32.mrf.mxu0
        %v2071 = vadd.f32 %v1926, %v2070
        %v2072 = vpop.f32.mrf.mxu0
        %2073 = vmatprep.mubr.f32.mxu0 %v440
        %2074 = vmatmul.mubr.f32.gmra.mxu0 %v439
        %v2075 = vpop.f32.mrf.mxu0
        %v2076 = vadd.f32 %v1931, %v2075
        %v2077 = vpop.f32.mrf.mxu0
        %2078 = vmatprep.mubr.f32.mxu0 %v448
        %2079 = vmatmul.mubr.f32.gmra.mxu0 %v447
        %v2080 = vpop.f32.mrf.mxu0
        %v2081 = vadd.f32 %v1936, %v2080
        %v2082 = vpop.f32.mrf.mxu0
        %2083 = vmatprep.mubr.f32.mxu0 %v456
        %2084 = vmatmul.mubr.f32.gmra.mxu0 %v455
        %v2085 = vpop.f32.mrf.mxu0
        %v2086 = vadd.f32 %v1941, %v2085
        %v2087 = vpop.f32.mrf.mxu0
        %2088 = vmatprep.mubr.f32.mxu0 %v464
        %2089 = vmatmul.mubr.f32.gmra.mxu0 %v463
        %v2090 = vpop.f32.mrf.mxu0
        %v2091 = vadd.f32 %v1946, %v2090
        %v2092 = vpop.f32.mrf.mxu0
        %2093 = vmatprep.mubr.f32.mxu0 %v472
        %2094 = vmatmul.mubr.f32.gmra.mxu0 %v471
        %v2095 = vpop.f32.mrf.mxu0
        %v2096 = vadd.f32 %v1951, %v2095
        %v2097 = vpop.f32.mrf.mxu0
        %2098 = vmatprep.mubr.f32.mxu0 %v480
        %2099 = vmatmul.mubr.f32.gmra.mxu0 %v479
        %v2100 = vpop.f32.mrf.mxu0
        %v2101 = vadd.f32 %v1956, %v2100
        %v2102 = vpop.f32.mrf.mxu0
        %2103 = vmatprep.mubr.f32.mxu0 %v488
        %2104 = vmatmul.mubr.f32.gmra.mxu0 %v487
        %v2105 = vpop.f32.mrf.mxu0
        %v2106 = vadd.f32 %v1961, %v2105
        %v2107 = vpop.f32.mrf.mxu0
        %2108 = vmatprep.mubr.f32.mxu0 %v496
        %2109 = vmatmul.mubr.f32.gmra.mxu0 %v495
        %v2110 = vpop.f32.mrf.mxu0
        %v2111 = vadd.f32 %v1966, %v2110
        %v2112 = vpop.f32.mrf.mxu0
        %2113 = vmatprep.mubr.f32.mxu0 %v504
        %2114 = vmatmul.mubr.f32.gmra.mxu0 %v503
        %v2115 = vpop.f32.mrf.mxu0
        %v2116 = vadd.f32 %v1971, %v2115
        %v2117 = vpop.f32.mrf.mxu0
        %2118 = vmatprep.mubr.f32.mxu0 %v512
        %2119 = vmatmul.mubr.f32.gmra.mxu0 %v511
        %v2120 = vpop.f32.mrf.mxu0
        %v2121 = vadd.f32 %v1976, %v2120
        %v2122 = vpop.f32.mrf.mxu0
        %2123 = vmatprep.mubr.f32.mxu0 %v520
        %2124 = vmatmul.mubr.f32.gmra.mxu0 %v519
        %v2125 = vpop.f32.mrf.mxu0
        %v2126 = vadd.f32 %v1981, %v2125
        %v2127 = vpop.f32.mrf.mxu0
        %2128 = vdwg.mxu0
        %v2129 = vadd.f32 %v345, %v1455
        %v2130 = vadd.f32 %v346, %v1457
        %v2131 = vadd.f32 %v347, %v2051
        %v2132 = vadd.f32 %v348, %v1461
        %v2133 = vadd.f32 %v349, %v1463
        %v2134 = vadd.f32 %v350, %v2056
        %v2135 = vadd.f32 %v351, %v1467
        %v2136 = vadd.f32 %v352, %v1469
        %v2137 = vadd.f32 %v353, %v2061
        %v2138 = vadd.f32 %v354, %v1473
        %v2139 = vadd.f32 %v355, %v1475
        %v2140 = vadd.f32 %v356, %v2066
        %v2141 = vadd.f32 %v357, %v1479
        %v2142 = vadd.f32 %v358, %v1481
        %v2143 = vadd.f32 %v359, %v2071
        %v2144 = vadd.f32 %v360, %v1485
        %v2145 = vadd.f32 %v361, %v1487
        %v2146 = vadd.f32 %v362, %v2076
        %v2147 = vadd.f32 %v363, %v1491
        %v2148 = vadd.f32 %v364, %v1493
        %v2149 = vadd.f32 %v365, %v2081
        %v2150 = vadd.f32 %v366, %v1497
        %v2151 = vadd.f32 %v367, %v1499
        %v2152 = vadd.f32 %v368, %v2086
        %v2153 = vadd.f32 %v369, %v1503
        %v2154 = vadd.f32 %v370, %v1505
        %v2155 = vadd.f32 %v371, %v2091
        %v2156 = vadd.f32 %v372, %v1509
        %v2157 = vadd.f32 %v373, %v1511
        %v2158 = vadd.f32 %v374, %v2096
        %v2159 = vadd.f32 %v375, %v1515
        %v2160 = vadd.f32 %v376, %v1517
        %v2161 = vadd.f32 %v377, %v2101
        %v2162 = vadd.f32 %v378, %v1521
        %v2163 = vadd.f32 %v379, %v1523
        %v2164 = vadd.f32 %v380, %v2106
        %v2165 = vadd.f32 %v381, %v1527
        %v2166 = vadd.f32 %v382, %v1529
        %v2167 = vadd.f32 %v383, %v2111
        %v2168 = vadd.f32 %v384, %v1533
        %v2169 = vadd.f32 %v385, %v1535
        %v2170 = vadd.f32 %v386, %v2116
        %v2171 = vadd.f32 %v387, %v1539
        %v2172 = vadd.f32 %v388, %v1541
        %v2173 = vadd.f32 %v389, %v2121
        %v2174 = vadd.f32 %v390, %v1545
        %v2175 = vadd.f32 %v391, %v1547
        %v2176 = vadd.f32 %v392, %v2126
        %2177 = vst [vmem:[%s284] sm:$0xff] %v2129
        %2178 = vst [vmem:[%s284 + $0x8] sm:$0xff] %v2130
        %2179 = vst [vmem:[%s284 + $0x10] sm:$0xff] %v2131
        %2180 = vst [vmem:[%s284 + $0x18] sm:$0xff] %v2132
        %2181 = vst [vmem:[%s284 + $0x20] sm:$0xff] %v2133
        %2182 = vst [vmem:[%s284 + $0x28] sm:$0xff] %v2134
        %2183 = vst [vmem:[%s284 + $0x30] sm:$0xff] %v2135
        %2184 = vst [vmem:[%s284 + $0x38] sm:$0xff] %v2136
        %2185 = vst [vmem:[%s284 + $0x40] sm:$0xff] %v2137
        %2186 = vst [vmem:[%s284 + $0x48] sm:$0xff] %v2138
        %2187 = vst [vmem:[%s284 + $0x50] sm:$0xff] %v2139
        %2188 = vst [vmem:[%s284 + $0x58] sm:$0xff] %v2140
        %2189 = vst [vmem:[%s284 + $0x60] sm:$0xff] %v2141
        %2190 = vst [vmem:[%s284 + $0x68] sm:$0xff] %v2142
        %2191 = vst [vmem:[%s284 + $0x70] sm:$0xff] %v2143
        %2192 = vst [vmem:[%s284 + $0x78] sm:$0xff] %v2144
        %2193 = vst [vmem:[%s284 + $0x80] sm:$0xff] %v2145
        %2194 = vst [vmem:[%s284 + $0x88] sm:$0xff] %v2146
        %2195 = vst [vmem:[%s284 + $0x90] sm:$0xff] %v2147
        %2196 = vst [vmem:[%s284 + $0x98] sm:$0xff] %v2148
        %2197 = vst [vmem:[%s284 + $0xa0] sm:$0xff] %v2149
        %2198 = vst [vmem:[%s284 + $0xa8] sm:$0xff] %v2150
        %2199 = vst [vmem:[%s284 + $0xb0] sm:$0xff] %v2151
        %2200 = vst [vmem:[%s284 + $0xb8] sm:$0xff] %v2152
        %2201 = vst [vmem:[%s284 + $0xc0] sm:$0xff] %v2153
        %2202 = vst [vmem:[%s284 + $0xc8] sm:$0xff] %v2154
        %2203 = vst [vmem:[%s284 + $0xd0] sm:$0xff] %v2155
        %2204 = vst [vmem:[%s284 + $0xd8] sm:$0xff] %v2156
        %2205 = vst [vmem:[%s284 + $0xe0] sm:$0xff] %v2157
        %2206 = vst [vmem:[%s284 + $0xe8] sm:$0xff] %v2158
        %2207 = vst [vmem:[%s284 + $0xf0] sm:$0xff] %v2159
        %2208 = vst [vmem:[%s284 + $0xf8] sm:$0xff] %v2160
        %2209 = vst [vmem:[%s284 + $0x100] sm:$0xff] %v2161
        %2210 = vst [vmem:[%s284 + $0x108] sm:$0xff] %v2162
        %2211 = vst [vmem:[%s284 + $0x110] sm:$0xff] %v2163
        %2212 = vst [vmem:[%s284 + $0x118] sm:$0xff] %v2164
        %2213 = vst [vmem:[%s284 + $0x120] sm:$0xff] %v2165
        %2214 = vst [vmem:[%s284 + $0x128] sm:$0xff] %v2166
        %2215 = vst [vmem:[%s284 + $0x130] sm:$0xff] %v2167
        %2216 = vst [vmem:[%s284 + $0x138] sm:$0xff] %v2168
        %2217 = vst [vmem:[%s284 + $0x140] sm:$0xff] %v2169
        %2218 = vst [vmem:[%s284 + $0x148] sm:$0xff] %v2170
        %2219 = vst [vmem:[%s284 + $0x150] sm:$0xff] %v2171
        %2220 = vst [vmem:[%s284 + $0x158] sm:$0xff] %v2172
        %2221 = vst [vmem:[%s284 + $0x160] sm:$0xff] %v2173
        %2222 = vst [vmem:[%s284 + $0x168] sm:$0xff] %v2174
        %2223 = vst [vmem:[%s284 + $0x170] sm:$0xff] %v2175
        %2224 = vst [vmem:[%s284 + $0x178] sm:$0xff] %v2176
        %p2225 = scmp.eq.s32.totalorder %s28, 1
        // Predicated region
        $region49: #{tpu_custom_call.1} parent=31 // pred_check
          %p2226 = pneg %p2225
        $region50: #{tpu_custom_call.1} parent=31 // pred_check_branch
          %2228 = sbr.rel (%p2226) target = $region52
        $region51: #{tpu_custom_call.1} parent=31 // pred_region
          %v2229 = vld [vmem:[#allocation2] sm:$0xff]
          %v2230 = vld [vmem:[#allocation2 + $0x8] sm:$0xff]
          %v2231 = vld [vmem:[#allocation2 + $0x10] sm:$0xff]
          %v2232 = vld [vmem:[#allocation2 + $0x18] sm:$0xff]
          %v2233 = vld [vmem:[#allocation2 + $0x20] sm:$0xff]
          %v2234 = vld [vmem:[#allocation2 + $0x28] sm:$0xff]
          %v2235 = vld [vmem:[#allocation2 + $0x30] sm:$0xff]
          %v2236 = vld [vmem:[#allocation2 + $0x38] sm:$0xff]
          %v2237 = vld [vmem:[#allocation2 + $0x40] sm:$0xff]
          %v2238 = vld [vmem:[#allocation2 + $0x48] sm:$0xff]
          %v2239 = vld [vmem:[#allocation2 + $0x50] sm:$0xff]
          %v2240 = vld [vmem:[#allocation2 + $0x58] sm:$0xff]
          %v2241 = vld [vmem:[#allocation2 + $0x60] sm:$0xff]
          %v2242 = vld [vmem:[#allocation2 + $0x68] sm:$0xff]
          %v2243 = vld [vmem:[#allocation2 + $0x70] sm:$0xff]
          %v2244 = vld [vmem:[#allocation2 + $0x78] sm:$0xff]
          %v2245 = vld [vmem:[#allocation2 + $0x80] sm:$0xff]
          %v2246 = vld [vmem:[#allocation2 + $0x88] sm:$0xff]
          %v2247 = vld [vmem:[#allocation2 + $0x90] sm:$0xff]
          %v2248 = vld [vmem:[#allocation2 + $0x98] sm:$0xff]
          %v2249 = vld [vmem:[#allocation2 + $0xa0] sm:$0xff]
          %v2250 = vld [vmem:[#allocation2 + $0xa8] sm:$0xff]
          %v2251 = vld [vmem:[#allocation2 + $0xb0] sm:$0xff]
          %v2252 = vld [vmem:[#allocation2 + $0xb8] sm:$0xff]
          %v2253 = vld [vmem:[#allocation2 + $0xc0] sm:$0xff]
          %v2254 = vld [vmem:[#allocation2 + $0xc8] sm:$0xff]
          %v2255 = vld [vmem:[#allocation2 + $0xd0] sm:$0xff]
          %v2256 = vld [vmem:[#allocation2 + $0xd8] sm:$0xff]
          %v2257 = vld [vmem:[#allocation2 + $0xe0] sm:$0xff]
          %v2258 = vld [vmem:[#allocation2 + $0xe8] sm:$0xff]
          %v2259 = vld [vmem:[#allocation2 + $0xf0] sm:$0xff]
          %v2260 = vld [vmem:[#allocation2 + $0xf8] sm:$0xff]
          %v2261 = vld [vmem:[#allocation2 + $0x100] sm:$0xff]
          %v2262 = vld [vmem:[#allocation2 + $0x108] sm:$0xff]
          %v2263 = vld [vmem:[#allocation2 + $0x110] sm:$0xff]
          %v2264 = vld [vmem:[#allocation2 + $0x118] sm:$0xff]
          %v2265 = vld [vmem:[#allocation2 + $0x120] sm:$0xff]
          %v2266 = vld [vmem:[#allocation2 + $0x128] sm:$0xff]
          %v2267 = vld [vmem:[#allocation2 + $0x130] sm:$0xff]
          %v2268 = vld [vmem:[#allocation2 + $0x138] sm:$0xff]
          %v2269 = vld [vmem:[#allocation2 + $0x140] sm:$0xff]
          %v2270 = vld [vmem:[#allocation2 + $0x148] sm:$0xff]
          %v2271 = vld [vmem:[#allocation2 + $0x150] sm:$0xff]
          %v2272 = vld [vmem:[#allocation2 + $0x158] sm:$0xff]
          %v2273 = vld [vmem:[#allocation2 + $0x160] sm:$0xff]
          %v2274 = vld [vmem:[#allocation2 + $0x168] sm:$0xff]
          %v2275 = vld [vmem:[#allocation2 + $0x170] sm:$0xff]
          %v2276 = vld [vmem:[#allocation2 + $0x178] sm:$0xff]
          %v2277 = vmul.f32 %v2229, 3.0
          %v2278 = vmul.f32 %v2230, 3.0
          %v2279 = vmul.f32 %v2231, 3.0
          %v2280 = vmul.f32 %v2232, 3.0
          %v2281 = vmul.f32 %v2233, 3.0
          %v2282 = vmul.f32 %v2234, 3.0
          %v2283 = vmul.f32 %v2235, 3.0
          %v2284 = vmul.f32 %v2236, 3.0
          %v2285 = vmul.f32 %v2237, 3.0
          %v2286 = vmul.f32 %v2238, 3.0
          %v2287 = vmul.f32 %v2239, 3.0
          %v2288 = vmul.f32 %v2240, 3.0
          %v2289 = vmul.f32 %v2241, 3.0
          %v2290 = vmul.f32 %v2242, 3.0
          %v2291 = vmul.f32 %v2243, 3.0
          %v2292 = vmul.f32 %v2244, 3.0
          %v2293 = vmul.f32 %v2245, 3.0
          %v2294 = vmul.f32 %v2246, 3.0
          %v2295 = vmul.f32 %v2247, 3.0
          %v2296 = vmul.f32 %v2248, 3.0
          %v2297 = vmul.f32 %v2249, 3.0
          %v2298 = vmul.f32 %v2250, 3.0
          %v2299 = vmul.f32 %v2251, 3.0
          %v2300 = vmul.f32 %v2252, 3.0
          %v2301 = vmul.f32 %v2253, 3.0
          %v2302 = vmul.f32 %v2254, 3.0
          %v2303 = vmul.f32 %v2255, 3.0
          %v2304 = vmul.f32 %v2256, 3.0
          %v2305 = vmul.f32 %v2257, 3.0
          %v2306 = vmul.f32 %v2258, 3.0
          %v2307 = vmul.f32 %v2259, 3.0
          %v2308 = vmul.f32 %v2260, 3.0
          %v2309 = vmul.f32 %v2261, 3.0
          %v2310 = vmul.f32 %v2262, 3.0
          %v2311 = vmul.f32 %v2263, 3.0
          %v2312 = vmul.f32 %v2264, 3.0
          %v2313 = vmul.f32 %v2265, 3.0
          %v2314 = vmul.f32 %v2266, 3.0
          %v2315 = vmul.f32 %v2267, 3.0
          %v2316 = vmul.f32 %v2268, 3.0
          %v2317 = vmul.f32 %v2269, 3.0
          %v2318 = vmul.f32 %v2270, 3.0
          %v2319 = vmul.f32 %v2271, 3.0
          %v2320 = vmul.f32 %v2272, 3.0
          %v2321 = vmul.f32 %v2273, 3.0
          %v2322 = vmul.f32 %v2274, 3.0
          %v2323 = vmul.f32 %v2275, 3.0
          %v2324 = vmul.f32 %v2276, 3.0
          %v2325 = vld [vmem:[%s284] sm:$0xff]
          %v2326 = vld [vmem:[%s284 + $0x8] sm:$0xff]
          %v2327 = vld [vmem:[%s284 + $0x10] sm:$0xff]
          %v2328 = vld [vmem:[%s284 + $0x18] sm:$0xff]
          %v2329 = vld [vmem:[%s284 + $0x20] sm:$0xff]
          %v2330 = vld [vmem:[%s284 + $0x28] sm:$0xff]
          %v2331 = vld [vmem:[%s284 + $0x30] sm:$0xff]
          %v2332 = vld [vmem:[%s284 + $0x38] sm:$0xff]
          %v2333 = vld [vmem:[%s284 + $0x40] sm:$0xff]
          %v2334 = vld [vmem:[%s284 + $0x48] sm:$0xff]
          %v2335 = vld [vmem:[%s284 + $0x50] sm:$0xff]
          %v2336 = vld [vmem:[%s284 + $0x58] sm:$0xff]
          %v2337 = vld [vmem:[%s284 + $0x60] sm:$0xff]
          %v2338 = vld [vmem:[%s284 + $0x68] sm:$0xff]
          %v2339 = vld [vmem:[%s284 + $0x70] sm:$0xff]
          %v2340 = vld [vmem:[%s284 + $0x78] sm:$0xff]
          %v2341 = vld [vmem:[%s284 + $0x80] sm:$0xff]
          %v2342 = vld [vmem:[%s284 + $0x88] sm:$0xff]
          %v2343 = vld [vmem:[%s284 + $0x90] sm:$0xff]
          %v2344 = vld [vmem:[%s284 + $0x98] sm:$0xff]
          %v2345 = vld [vmem:[%s284 + $0xa0] sm:$0xff]
          %v2346 = vld [vmem:[%s284 + $0xa8] sm:$0xff]
          %v2347 = vld [vmem:[%s284 + $0xb0] sm:$0xff]
          %v2348 = vld [vmem:[%s284 + $0xb8] sm:$0xff]
          %v2349 = vld [vmem:[%s284 + $0xc0] sm:$0xff]
          %v2350 = vld [vmem:[%s284 + $0xc8] sm:$0xff]
          %v2351 = vld [vmem:[%s284 + $0xd0] sm:$0xff]
          %v2352 = vld [vmem:[%s284 + $0xd8] sm:$0xff]
          %v2353 = vld [vmem:[%s284 + $0xe0] sm:$0xff]
          %v2354 = vld [vmem:[%s284 + $0xe8] sm:$0xff]
          %v2355 = vld [vmem:[%s284 + $0xf0] sm:$0xff]
          %v2356 = vld [vmem:[%s284 + $0xf8] sm:$0xff]
          %v2357 = vld [vmem:[%s284 + $0x100] sm:$0xff]
          %v2358 = vld [vmem:[%s284 + $0x108] sm:$0xff]
          %v2359 = vld [vmem:[%s284 + $0x110] sm:$0xff]
          %v2360 = vld [vmem:[%s284 + $0x118] sm:$0xff]
          %v2361 = vld [vmem:[%s284 + $0x120] sm:$0xff]
          %v2362 = vld [vmem:[%s284 + $0x128] sm:$0xff]
          %v2363 = vld [vmem:[%s284 + $0x130] sm:$0xff]
          %v2364 = vld [vmem:[%s284 + $0x138] sm:$0xff]
          %v2365 = vld [vmem:[%s284 + $0x140] sm:$0xff]
          %v2366 = vld [vmem:[%s284 + $0x148] sm:$0xff]
          %v2367 = vld [vmem:[%s284 + $0x150] sm:$0xff]
          %v2368 = vld [vmem:[%s284 + $0x158] sm:$0xff]
          %v2369 = vld [vmem:[%s284 + $0x160] sm:$0xff]
          %v2370 = vld [vmem:[%s284 + $0x168] sm:$0xff]
          %v2371 = vld [vmem:[%s284 + $0x170] sm:$0xff]
          %v2372 = vld [vmem:[%s284 + $0x178] sm:$0xff]
          %v2373 = vmul.f32 %v2325, 7.0
          %v2374 = vmul.f32 %v2326, 7.0
          %v2375 = vmul.f32 %v2327, 7.0
          %v2376 = vmul.f32 %v2328, 7.0
          %v2377 = vmul.f32 %v2329, 7.0
          %v2378 = vmul.f32 %v2330, 7.0
          %v2379 = vmul.f32 %v2331, 7.0
          %v2380 = vmul.f32 %v2332, 7.0
          %v2381 = vmul.f32 %v2333, 7.0
          %v2382 = vmul.f32 %v2334, 7.0
          %v2383 = vmul.f32 %v2335, 7.0
          %v2384 = vmul.f32 %v2336, 7.0
          %v2385 = vmul.f32 %v2337, 7.0
          %v2386 = vmul.f32 %v2338, 7.0
          %v2387 = vmul.f32 %v2339, 7.0
          %v2388 = vmul.f32 %v2340, 7.0
          %v2389 = vmul.f32 %v2341, 7.0
          %v2390 = vmul.f32 %v2342, 7.0
          %v2391 = vmul.f32 %v2343, 7.0
          %v2392 = vmul.f32 %v2344, 7.0
          %v2393 = vmul.f32 %v2345, 7.0
          %v2394 = vmul.f32 %v2346, 7.0
          %v2395 = vmul.f32 %v2347, 7.0
          %v2396 = vmul.f32 %v2348, 7.0
          %v2397 = vmul.f32 %v2349, 7.0
          %v2398 = vmul.f32 %v2350, 7.0
          %v2399 = vmul.f32 %v2351, 7.0
          %v2400 = vmul.f32 %v2352, 7.0
          %v2401 = vmul.f32 %v2353, 7.0
          %v2402 = vmul.f32 %v2354, 7.0
          %v2403 = vmul.f32 %v2355, 7.0
          %v2404 = vmul.f32 %v2356, 7.0
          %v2405 = vmul.f32 %v2357, 7.0
          %v2406 = vmul.f32 %v2358, 7.0
          %v2407 = vmul.f32 %v2359, 7.0
          %v2408 = vmul.f32 %v2360, 7.0
          %v2409 = vmul.f32 %v2361, 7.0
          %v2410 = vmul.f32 %v2362, 7.0
          %v2411 = vmul.f32 %v2363, 7.0
          %v2412 = vmul.f32 %v2364, 7.0
          %v2413 = vmul.f32 %v2365, 7.0
          %v2414 = vmul.f32 %v2366, 7.0
          %v2415 = vmul.f32 %v2367, 7.0
          %v2416 = vmul.f32 %v2368, 7.0
          %v2417 = vmul.f32 %v2369, 7.0
          %v2418 = vmul.f32 %v2370, 7.0
          %v2419 = vmul.f32 %v2371, 7.0
          %v2420 = vmul.f32 %v2372, 7.0
          %v2421 = vadd.f32 %v2277, %v2373
          %v2422 = vadd.f32 %v2278, %v2374
          %v2423 = vadd.f32 %v2279, %v2375
          %v2424 = vadd.f32 %v2280, %v2376
          %v2425 = vadd.f32 %v2281, %v2377
          %v2426 = vadd.f32 %v2282, %v2378
          %v2427 = vadd.f32 %v2283, %v2379
          %v2428 = vadd.f32 %v2284, %v2380
          %v2429 = vadd.f32 %v2285, %v2381
          %v2430 = vadd.f32 %v2286, %v2382
          %v2431 = vadd.f32 %v2287, %v2383
          %v2432 = vadd.f32 %v2288, %v2384
          %v2433 = vadd.f32 %v2289, %v2385
          %v2434 = vadd.f32 %v2290, %v2386
          %v2435 = vadd.f32 %v2291, %v2387
          %v2436 = vadd.f32 %v2292, %v2388
          %v2437 = vadd.f32 %v2293, %v2389
          %v2438 = vadd.f32 %v2294, %v2390
          %v2439 = vadd.f32 %v2295, %v2391
          %v2440 = vadd.f32 %v2296, %v2392
          %v2441 = vadd.f32 %v2297, %v2393
          %v2442 = vadd.f32 %v2298, %v2394
          %v2443 = vadd.f32 %v2299, %v2395
          %v2444 = vadd.f32 %v2300, %v2396
          %v2445 = vadd.f32 %v2301, %v2397
          %v2446 = vadd.f32 %v2302, %v2398
          %v2447 = vadd.f32 %v2303, %v2399
          %v2448 = vadd.f32 %v2304, %v2400
          %v2449 = vadd.f32 %v2305, %v2401
          %v2450 = vadd.f32 %v2306, %v2402
          %v2451 = vadd.f32 %v2307, %v2403
          %v2452 = vadd.f32 %v2308, %v2404
          %v2453 = vadd.f32 %v2309, %v2405
          %v2454 = vadd.f32 %v2310, %v2406
          %v2455 = vadd.f32 %v2311, %v2407
          %v2456 = vadd.f32 %v2312, %v2408
          %v2457 = vadd.f32 %v2313, %v2409
          %v2458 = vadd.f32 %v2314, %v2410
          %v2459 = vadd.f32 %v2315, %v2411
          %v2460 = vadd.f32 %v2316, %v2412
          %v2461 = vadd.f32 %v2317, %v2413
          %v2462 = vadd.f32 %v2318, %v2414
          %v2463 = vadd.f32 %v2319, %v2415
          %v2464 = vadd.f32 %v2320, %v2416
          %v2465 = vadd.f32 %v2321, %v2417
          %v2466 = vadd.f32 %v2322, %v2418
          %v2467 = vadd.f32 %v2323, %v2419
          %v2468 = vadd.f32 %v2324, %v2420
          %2469 = vst [vmem:[%s284] sm:$0xff] %v2421
          %2470 = vst [vmem:[%s284 + $0x8] sm:$0xff] %v2422
          %2471 = vst [vmem:[%s284 + $0x10] sm:$0xff] %v2423
          %2472 = vst [vmem:[%s284 + $0x18] sm:$0xff] %v2424
          %2473 = vst [vmem:[%s284 + $0x20] sm:$0xff] %v2425
          %2474 = vst [vmem:[%s284 + $0x28] sm:$0xff] %v2426
          %2475 = vst [vmem:[%s284 + $0x30] sm:$0xff] %v2427
          %2476 = vst [vmem:[%s284 + $0x38] sm:$0xff] %v2428
          %2477 = vst [vmem:[%s284 + $0x40] sm:$0xff] %v2429
          %2478 = vst [vmem:[%s284 + $0x48] sm:$0xff] %v2430
          %2479 = vst [vmem:[%s284 + $0x50] sm:$0xff] %v2431
          %2480 = vst [vmem:[%s284 + $0x58] sm:$0xff] %v2432
          %2481 = vst [vmem:[%s284 + $0x60] sm:$0xff] %v2433
          %2482 = vst [vmem:[%s284 + $0x68] sm:$0xff] %v2434
          %2483 = vst [vmem:[%s284 + $0x70] sm:$0xff] %v2435
          %2484 = vst [vmem:[%s284 + $0x78] sm:$0xff] %v2436
          %2485 = vst [vmem:[%s284 + $0x80] sm:$0xff] %v2437
          %2486 = vst [vmem:[%s284 + $0x88] sm:$0xff] %v2438
          %2487 = vst [vmem:[%s284 + $0x90] sm:$0xff] %v2439
          %2488 = vst [vmem:[%s284 + $0x98] sm:$0xff] %v2440
          %2489 = vst [vmem:[%s284 + $0xa0] sm:$0xff] %v2441
          %2490 = vst [vmem:[%s284 + $0xa8] sm:$0xff] %v2442
          %2491 = vst [vmem:[%s284 + $0xb0] sm:$0xff] %v2443
          %2492 = vst [vmem:[%s284 + $0xb8] sm:$0xff] %v2444
          %2493 = vst [vmem:[%s284 + $0xc0] sm:$0xff] %v2445
          %2494 = vst [vmem:[%s284 + $0xc8] sm:$0xff] %v2446
          %2495 = vst [vmem:[%s284 + $0xd0] sm:$0xff] %v2447
          %2496 = vst [vmem:[%s284 + $0xd8] sm:$0xff] %v2448
          %2497 = vst [vmem:[%s284 + $0xe0] sm:$0xff] %v2449
          %2498 = vst [vmem:[%s284 + $0xe8] sm:$0xff] %v2450
          %2499 = vst [vmem:[%s284 + $0xf0] sm:$0xff] %v2451
          %2500 = vst [vmem:[%s284 + $0xf8] sm:$0xff] %v2452
          %2501 = vst [vmem:[%s284 + $0x100] sm:$0xff] %v2453
          %2502 = vst [vmem:[%s284 + $0x108] sm:$0xff] %v2454
          %2503 = vst [vmem:[%s284 + $0x110] sm:$0xff] %v2455
          %2504 = vst [vmem:[%s284 + $0x118] sm:$0xff] %v2456
          %2505 = vst [vmem:[%s284 + $0x120] sm:$0xff] %v2457
          %2506 = vst [vmem:[%s284 + $0x128] sm:$0xff] %v2458
          %2507 = vst [vmem:[%s284 + $0x130] sm:$0xff] %v2459
          %2508 = vst [vmem:[%s284 + $0x138] sm:$0xff] %v2460
          %2509 = vst [vmem:[%s284 + $0x140] sm:$0xff] %v2461
          %2510 = vst [vmem:[%s284 + $0x148] sm:$0xff] %v2462
          %2511 = vst [vmem:[%s284 + $0x150] sm:$0xff] %v2463
          %2512 = vst [vmem:[%s284 + $0x158] sm:$0xff] %v2464
          %2513 = vst [vmem:[%s284 + $0x160] sm:$0xff] %v2465
          %2514 = vst [vmem:[%s284 + $0x168] sm:$0xff] %v2466
          %2515 = vst [vmem:[%s284 + $0x170] sm:$0xff] %v2467
          %2516 = vst [vmem:[%s284 + $0x178] sm:$0xff] %v2468
        $region52: #{tpu_custom_call.1} parent=31 // pred_fallthru
          _
        %s2517 = sand.u32 %s134, 1
        %s2518 = scalar_lea.sflag [#allocation4], %s2517
        %s2519 = sand.u32 %s134, 1
        %s2520 = smul.addr %s2519, 384
        %s2521 = scalar_lea.vmem [#allocation8], %s2520
        // Predicated region
        $region53: #{tpu_custom_call.1} parent=31 // pred_check
          %p2522 = pneg %p144
        $region54: #{tpu_custom_call.1} parent=31 // pred_check_branch
          %2524 = sbr.rel (%p2522) target = $region56
        $region55: #{tpu_custom_call.1} parent=31 // pred_region
          %s2525 = smul.u32 16, %s26
          %s2526 = smul.u32 3, %s27
          %s2528 = ssub.s32 6144, 6144
          %2529 = vsyncadd %s2518, %s2528
          %s2530 = smul.addr %s2525, 3
          %s2531 = sadd.s32 %s2526, %s2530
          %s2532 = smul.addr %s2531, 128
          %s2533 = scalar_lea.hbm %s3, %s2532
          %s2534 = sshll.u32 %s2521, 4
          %s2535 = int_to_ptr.vmem [resolvable:$true] %s2534
          %2540 = dma.vmem_to_hbm [thread:$0]  %s2535, 6144, %s2533, %s2518, 384, 384, 24
        $region56: #{tpu_custom_call.1} parent=31 // pred_fallthru
          _
      $region32: #{tpu_custom_call.1} parent=5 // pred_fallthru
        _
      %p2541 = scmp.le.s32.totalorder 2, %s16
      // Predicated region
      $region57: #{tpu_custom_call.1} parent=5 // pred_check
        %p2542 = pneg %p2541
      $region58: #{tpu_custom_call.1} parent=5 // pred_check_branch
        %2544 = sbr.rel (%p2542) target = $region60
      $region59: #{tpu_custom_call.1} parent=5 // pred_region
        %s2545 = ssub.s32 %s16, 2
        // Predicated region
        $region61: #{tpu_custom_call.1} parent=59 // pred_check
          %p2546 = pneg %p150
        $region62: #{tpu_custom_call.1} parent=59 // pred_check_branch
          %2548 = sbr.rel (%p2546) target = $region64
        $region63: #{tpu_custom_call.1} parent=59 // pred_region
          %s2549 = sand.u32 %s135, 1
          %s2550 = scalar_lea.sflag [#allocation4], %s2549
          %s2551 = sand.u32 %s135, 1
          %s2552 = smul.addr %s2551, 384
          %s2553 = scalar_lea.vmem [#allocation8], %s2552
          %2554 = dma.done %s2550, 6144
        $region64: #{tpu_custom_call.1} parent=59 // pred_fallthru
          _
      $region60: #{tpu_custom_call.1} parent=5 // pred_fallthru
        _
    $region6: #{tpu_custom_call.1} parent=1 // loop_footer
      %s20 = sadd.s32 1, %s16
    $region7: #{tpu_custom_call.1} parent=1 // loop_footer_branch
      %15 = sbr.rel target = $region3
    $region8: #{tpu_custom_call.1} parent=1 // loop_exit
      _
    %2555 = vsyncpa [#allocation3], 1
    %s2556 = scalar_lea.sflag [#allocation3], 1
    %2557 = vsyncpa %s2556, 1
    %2558 = vsyncpa [#allocation6], 1
    %s2559 = scalar_lea.sflag [#allocation6], 1
    %2560 = vsyncpa %s2559, 1
    %2561 = vsyncpa [#allocation4], 1
    %s2562 = scalar_lea.sflag [#allocation4], 1
    %2563 = vsyncpa %s2562, 1

// kernel: tpu_custom_call.1
$region0: #{tpu_custom_call.1}
  #allocation0 [shape = 'u32[]', space=smem, size = 0x4, offset = 0x4, fixed_abs, tag = 'smem constant byte address 0x4 - core index']
  #allocation1 [shape = 'u32[144,128]{1,0:T(1,128)}', space=vmem, size = 0x12000, scoped, tag = 'internal scratch']
  %s0 = inlined_call_operand.hbm [shape: f32[256,384], index: 0, kind: input, shape index: {}]
  %s1 = inlined_call_operand.hbm [shape: f32[256,2048], index: 1, kind: input, shape index: {}]
  %s2 = inlined_call_operand.hbm [shape: f32[2048,384], index: 2, kind: input, shape index: {}]
  %s3 = inlined_call_operand.hbm [shape: f32[256,384], index: 3, kind: output, shape index: {}]
  %s4 = sld [smem:[#allocation0]]
  $region65: #{tpu_custom_call.1} parent=0
    _
  %s6 = ssub.s32 1, %s4
  %s7 = scalar_select 0, %s6, %s4
  $region1: #{tpu_custom_call.1} parent=0
    #allocation2 [shape = 'u8[393216]{0}', space=vmem, size = 0x60000, scoped, tag = 'input window, operand 0']
    #allocation3 [shape = 's32[2]{0}', space=sflag, size = 0x8, scoped, tag = 'scoped memory for tpu_custom_call.1']
    #allocation4 [shape = 's32[2]{0}', space=sflag, size = 0x8, scoped, tag = 'scoped memory for tpu_custom_call.1']
    #allocation5 [shape = 'u8[1048576]{0}', space=vmem, size = 0x100000, scoped, tag = 'input window, operand 1']
    #allocation6 [shape = 's32[2]{0}', space=sflag, size = 0x8, scoped, tag = 'scoped memory for tpu_custom_call.1']
    #allocation7 [shape = 'u8[3145728]{0}', space=vmem, size = 0x300000, scoped, tag = 'input window, operand 2']
    #allocation8 [shape = 'u8[393216]{0}', space=vmem, size = 0x60000, scoped, tag = 'output window, operand 0']
    %8 = vsyncpa [#allocation3], 0
    %s9 = scalar_lea.sflag [#allocation3], 1
    %10 = vsyncpa %s9, 0
    %11 = vsyncpa [#allocation6], 0
    %s12 = scalar_lea.sflag [#allocation6], 1
    %13 = vsyncpa %s12, 0
    %14 = vsyncpa [#allocation4], 0
    %s15 = scalar_lea.sflag [#allocation4], 1
    %16 = vsyncpa %s15, 0
    loop: start=0, step=1, limit=6
    $region2: #{tpu_custom_call.1} parent=1 // loop_pre_header
      _
    $region3: #{tpu_custom_call.1} parent=1 // loop_header
      %s18 = sphi 0, %s22
      %p19 = scmp.ge.s32.totalorder %s18, 6
      %s25 = sphi 0, %s44
      %s26 = sphi 0, %s40
      %s27 = sphi 0, %s36
      %s28 = sphi 0, %s25
      %s29 = sphi 0, %s26
      %s30 = sphi 0, %s27
      %s31 = sphi 0, %s28
      %s32 = sphi 0, %s29
      %s33 = sphi 0, %s30
      %s49 = sphi 0, %s51
      %s52 = sphi 0, %s49
      %s53 = sphi 0, %s52
      %s69 = sphi 0, %s53
      %s77 = sphi 0, %s79
      %s80 = sphi 0, %s77
      %s81 = sphi 0, %s80
      %s97 = sphi 0, %s81
      %s105 = sphi 0, %s107
      %s108 = sphi 0, %s105
      %s109 = sphi 0, %s108
      %s125 = sphi 0, %s109
      %s133 = sphi 0, %s135
      %s136 = sphi 0, %s133
      %s137 = sphi 0, %s136
      %s153 = sphi 0, %s137
    $region4: #{tpu_custom_call.1} parent=1 // loop_header_branch
      %21 = sbr.rel (%p19) target = $region8
    $region5: #{tpu_custom_call.1} parent=1 // loop_body
      %s23 = ssub.s32 %s18, 1
      %s24 = ssub.s32 %s18, 2
      %s34 = sadd.s32 1, %s27
      %p35 = scmp.ge.s32.totalorder %s34, 2
      %s36 = scalar_select %p35, 0, %s34
      %s37 = sadd.s32 1, %s26
      %s38 = scalar_select %p35, %s37, %s26
      %p39 = scmp.ge.s32.totalorder %s38, 1
      %s40 = scalar_select %p39, 0, %s38
      %s41 = sadd.s32 1, %s25
      %s42 = scalar_select %p39, %s41, %s25
      %p43 = scmp.ge.s32.totalorder %s42, 2
      %s44 = scalar_select %p43, 0, %s42
      %s45 = ssub.s32 %s25, %s44
      %s46 = ssub.s32 %s26, %s40
      %s47 = sor.u32 %s45, %s46
      %p48 = scmp.eq.s32.totalorder %s47, 0
      %s50 = sadd.s32 %s49, 1
      %s51 = scalar_select %p48, %s49, %s50
      %p54 = pneg %p48
      %p55 = scmp.eq.s32.totalorder %s18, 3
      %p56 = por %p54, %p55
      %p57 = scmp.ne.s32.totalorder %s49, %s52
      %p58 = scmp.eq.s32.totalorder %s18, 0
      %p59 = por %p57, %p58
      %p60 = scmp.ne.s32.totalorder %s49, %s52
      %p61 = scmp.eq.s32.totalorder %s23, 3
      %p62 = por %p60, %p61
      %p63 = scmp.ne.s32.totalorder %s52, %s53
      %p64 = scmp.eq.s32.totalorder %s23, 0
      %p65 = por %p63, %p64
      %p66 = scmp.ne.s32.totalorder %s52, %s53
      %p67 = scmp.eq.s32.totalorder %s24, 3
      %p68 = por %p66, %p67
      %p70 = scmp.ne.s32.totalorder %s53, %s69
      %p71 = scmp.eq.s32.totalorder %s24, 0
      %p72 = por %p70, %p71
      %s73 = ssub.s32 %s25, %s44
      %s74 = ssub.s32 %s27, %s36
      %s75 = sor.u32 %s73, %s74
      %p76 = scmp.eq.s32.totalorder %s75, 0
      %s78 = sadd.s32 %s77, 1
      %s79 = scalar_select %p76, %s77, %s78
      %p82 = pneg %p76
      %p83 = scmp.eq.s32.totalorder %s18, 3
      %p84 = por %p82, %p83
      %p85 = scmp.ne.s32.totalorder %s77, %s80
      %p86 = scmp.eq.s32.totalorder %s18, 0
      %p87 = por %p85, %p86
      %p88 = scmp.ne.s32.totalorder %s77, %s80
      %p89 = scmp.eq.s32.totalorder %s23, 3
      %p90 = por %p88, %p89
      %p91 = scmp.ne.s32.totalorder %s80, %s81
      %p92 = scmp.eq.s32.totalorder %s23, 0
      %p93 = por %p91, %p92
      %p94 = scmp.ne.s32.totalorder %s80, %s81
      %p95 = scmp.eq.s32.totalorder %s24, 3
      %p96 = por %p94, %p95
      %p98 = scmp.ne.s32.totalorder %s81, %s97
      %p99 = scmp.eq.s32.totalorder %s24, 0
      %p100 = por %p98, %p99
      %s101 = ssub.s32 %s27, %s36
      %s102 = ssub.s32 %s26, %s40
      %s103 = sor.u32 %s101, %s102
      %p104 = scmp.eq.s32.totalorder %s103, 0
      %s106 = sadd.s32 %s105, 1
      %s107 = scalar_select %p104, %s105, %s106
      %p110 = pneg %p104
      %p111 = scmp.eq.s32.totalorder %s18, 3
      %p112 = por %p110, %p111
      %p113 = scmp.ne.s32.totalorder %s105, %s108
      %p114 = scmp.eq.s32.totalorder %s18, 0
      %p115 = por %p113, %p114
      %p116 = scmp.ne.s32.totalorder %s105, %s108
      %p117 = scmp.eq.s32.totalorder %s23, 3
      %p118 = por %p116, %p117
      %p119 = scmp.ne.s32.totalorder %s108, %s109
      %p120 = scmp.eq.s32.totalorder %s23, 0
      %p121 = por %p119, %p120
      %p122 = scmp.ne.s32.totalorder %s108, %s109
      %p123 = scmp.eq.s32.totalorder %s24, 3
      %p124 = por %p122, %p123
      %p126 = scmp.ne.s32.totalorder %s109, %s125
      %p127 = scmp.eq.s32.totalorder %s24, 0
      %p128 = por %p126, %p127
      %s129 = ssub.s32 %s25, %s44
      %s130 = ssub.s32 %s26, %s40
      %s131 = sor.u32 %s129, %s130
      %p132 = scmp.eq.s32.totalorder %s131, 0
      %s134 = sadd.s32 %s133, 1
      %s135 = scalar_select %p132, %s133, %s134
      %p138 = pneg %p132
      %p139 = scmp.eq.s32.totalorder %s18, 3
      %p140 = por %p138, %p139
      %p141 = scmp.ne.s32.totalorder %s133, %s136
      %p142 = scmp.eq.s32.totalorder %s18, 0
      %p143 = por %p141, %p142
      %p144 = scmp.ne.s32.totalorder %s133, %s136
      %p145 = scmp.eq.s32.totalorder %s23, 3
      %p146 = por %p144, %p145
      %p147 = scmp.ne.s32.totalorder %s136, %s137
      %p148 = scmp.eq.s32.totalorder %s23, 0
      %p149 = por %p147, %p148
      %p150 = scmp.ne.s32.totalorder %s136, %s137
      %p151 = scmp.eq.s32.totalorder %s24, 3
      %p152 = por %p150, %p151
      %p154 = scmp.ne.s32.totalorder %s137, %s153
      %p155 = scmp.eq.s32.totalorder %s24, 0
      %p156 = por %p154, %p155
      %p157 = scmp.le.s32.totalorder 1, %s18
      %p158 = scmp.lt.s32.totalorder %s18, 5
      %p159 = pnand %p157, %p158
      %p160 = pneg %p159
      // Predicated region
      $region9: #{tpu_custom_call.1} parent=5 // pred_check
        _
      $region10: #{tpu_custom_call.1} parent=5 // pred_check_branch
        %162 = sbr.rel (%p159) target = $region12
      $region11: #{tpu_custom_call.1} parent=5 // pred_region
        %s163 = ssub.s32 %s18, 1
      $region12: #{tpu_custom_call.1} parent=5 // pred_fallthru
        _
      %p164 = scmp.lt.s32.totalorder %s18, 4
      // Predicated region
      $region13: #{tpu_custom_call.1} parent=5 // pred_check
        %p165 = pneg %p164
      $region14: #{tpu_custom_call.1} parent=5 // pred_check_branch
        %167 = sbr.rel (%p165) target = $region16
      $region15: #{tpu_custom_call.1} parent=5 // pred_region
        // Predicated region
        $region17: #{tpu_custom_call.1} parent=15 // pred_check
          %p168 = pneg %p59
        $region18: #{tpu_custom_call.1} parent=15 // pred_check_branch
          %170 = sbr.rel (%p168) target = $region20
        $region19: #{tpu_custom_call.1} parent=15 // pred_region
          %s171 = sand.u32 %s49, 1
          %s172 = scalar_lea.sflag [#allocation3], %s171
          %s173 = sand.u32 %s49, 1
          %s174 = smul.addr %s173, 384
          %s175 = scalar_lea.vmem [#allocation2], %s174
          %s176 = smul.u32 16, %s25
          %s177 = smul.u32 3, %s26
          %s179 = ssub.s32 6144, 6144
          %180 = vsyncadd %s172, %s179
          %s181 = smul.addr %s176, 3
          %s182 = sadd.s32 %s177, %s181
          %s183 = smul.addr %s182, 128
          %s184 = scalar_lea.hbm %s0, %s183
          %s185 = sshll.u32 %s175, 4
          %s186 = int_to_ptr.vmem [resolvable:$true] %s185
          %191 = dma.hbm_to_vmem [thread:$0]  %s184, 6144, %s186, %s172, 384, 384, 24
        $region20: #{tpu_custom_call.1} parent=15 // pred_fallthru
          _
        // Predicated region
        $region21: #{tpu_custom_call.1} parent=15 // pred_check
          %p192 = pneg %p87
        $region22: #{tpu_custom_call.1} parent=15 // pred_check_branch
          %194 = sbr.rel (%p192) target = $region24
        $region23: #{tpu_custom_call.1} parent=15 // pred_region
          %s195 = sand.u32 %s18, 1
          %s196 = scalar_lea.sflag [#allocation6], %s195
          %s197 = sand.u32 %s77, 1
          %s198 = smul.addr %s197, 1024
          %s199 = scalar_lea.vmem [#allocation5], %s198
          %s200 = smul.u32 16, %s25
          %s201 = smul.u32 8, %s27
          %s203 = ssub.s32 16384, 16384
          %204 = vsyncadd %s196, %s203
          %s205 = smul.addr %s200, 16
          %s206 = sadd.s32 %s201, %s205
          %s207 = smul.addr %s206, 128
          %s208 = scalar_lea.hbm %s1, %s207
          %s209 = sshll.u32 %s199, 4
          %s210 = int_to_ptr.vmem [resolvable:$true] %s209
          %215 = dma.hbm_to_vmem [thread:$0]  %s208, 16384, %s210, %s196, 2048, 1024, 64
        $region24: #{tpu_custom_call.1} parent=15 // pred_fallthru
          _
        // Predicated region
        $region25: #{tpu_custom_call.1} parent=15 // pred_check
          %p216 = pneg %p115
        $region26: #{tpu_custom_call.1} parent=15 // pred_check_branch
          %218 = sbr.rel (%p216) target = $region28
        $region27: #{tpu_custom_call.1} parent=15 // pred_region
          %s219 = sand.u32 %s18, 1
          %s220 = scalar_lea.sflag [#allocation6], %s219
          %s221 = sand.u32 %s105, 1
          %s222 = smul.addr %s221, 3072
          %s223 = scalar_lea.vmem [#allocation7], %s222
          %s224 = smul.u32 128, %s27
          %s225 = smul.u32 3, %s26
          %s227 = ssub.s32 49152, 49152
          %228 = vsyncadd %s220, %s227
          %s229 = smul.addr %s224, 3
          %s230 = sadd.s32 %s225, %s229
          %s231 = smul.addr %s230, 128
          %s232 = scalar_lea.hbm %s2, %s231
          %s233 = sshll.u32 %s223, 4
          %s234 = int_to_ptr.vmem [resolvable:$true] %s233
          %239 = dma.hbm_to_vmem [thread:$0]  %s232, 49152, %s234, %s220, 384, 384, 24
        $region28: #{tpu_custom_call.1} parent=15 // pred_fallthru
          _
      $region16: #{tpu_custom_call.1} parent=5 // pred_fallthru
        _
      %p240 = scmp.le.s32.totalorder 1, %s18
      %p241 = scmp.lt.s32.totalorder %s18, 5
      %p242 = pnand %p240, %p241
      %p243 = pneg %p242
      // Predicated region
      $region29: #{tpu_custom_call.1} parent=5 // pred_check
        _
      $region30: #{tpu_custom_call.1} parent=5 // pred_check_branch
        %245 = sbr.rel (%p242) target = $region32
      $region31: #{tpu_custom_call.1} parent=5 // pred_region
        %s246 = ssub.s32 %s18, 1
        %s247 = sand.u32 %s52, 1
        %s248 = scalar_lea.sflag [#allocation3], %s247
        %s249 = sand.u32 %s52, 1
        %s250 = smul.addr %s249, 384
        %s251 = scalar_lea.vmem [#allocation2], %s250
        // Predicated region
        $region33: #{tpu_custom_call.1} parent=31 // pred_check
          %p252 = pneg %p65
        $region34: #{tpu_custom_call.1} parent=31 // pred_check_branch
          %254 = sbr.rel (%p252) target = $region36
        $region35: #{tpu_custom_call.1} parent=31 // pred_region
          %255 = dma.done %s248, 6144
        $region36: #{tpu_custom_call.1} parent=31 // pred_fallthru
          _
        %s256 = sand.u32 %s23, 1
        %s257 = scalar_lea.sflag [#allocation6], %s256
        %s258 = sand.u32 %s80, 1
        %s259 = smul.addr %s258, 1024
        %s260 = scalar_lea.vmem [#allocation5], %s259
        // Predicated region
        $region37: #{tpu_custom_call.1} parent=31 // pred_check
          %p261 = pneg %p93
        $region38: #{tpu_custom_call.1} parent=31 // pred_check_branch
          %263 = sbr.rel (%p261) target = $region40
        $region39: #{tpu_custom_call.1} parent=31 // pred_region
          %264 = dma.done %s257, 16384
        $region40: #{tpu_custom_call.1} parent=31 // pred_fallthru
          _
        %s265 = sand.u32 %s23, 1
        %s266 = scalar_lea.sflag [#allocation6], %s265
        %s267 = sand.u32 %s108, 1
        %s268 = smul.addr %s267, 3072
        %s269 = scalar_lea.vmem [#allocation7], %s268
        // Predicated region
        $region41: #{tpu_custom_call.1} parent=31 // pred_check
          %p270 = pneg %p121
        $region42: #{tpu_custom_call.1} parent=31 // pred_check_branch
          %272 = sbr.rel (%p270) target = $region44
        $region43: #{tpu_custom_call.1} parent=31 // pred_region
          %273 = dma.done %s266, 49152
        $region44: #{tpu_custom_call.1} parent=31 // pred_fallthru
          _
        %s274 = sand.u32 %s52, 1
        %s275 = scalar_lea.sflag [#allocation3], %s274
        %s276 = sand.u32 %s52, 1
        %s277 = smul.addr %s276, 384
        %s278 = scalar_lea.vmem [#allocation2], %s277
        %p279 = pneg %p65
        %p280 = pneg %p62
        %s281 = sand.u32 %s23, 1
        %s282 = scalar_lea.sflag [#allocation6], %s281
        %s283 = sand.u32 %s80, 1
        %s284 = smul.addr %s283, 1024
        %s285 = scalar_lea.vmem [#allocation5], %s284
        %p286 = pneg %p93
        %p287 = pneg %p90
        %s288 = sand.u32 %s23, 1
        %s289 = scalar_lea.sflag [#allocation6], %s288
        %s290 = sand.u32 %s108, 1
        %s291 = smul.addr %s290, 3072
        %s292 = scalar_lea.vmem [#allocation7], %s291
        %p293 = pneg %p121
        %p294 = pneg %p118
        %p295 = pneg %p149
        %p296 = pneg %p146
        %s297 = sand.u32 %s136, 1
        %s298 = scalar_lea.sflag [#allocation4], %s297
        %s299 = sand.u32 %s136, 1
        %s300 = smul.addr %s299, 384
        %s301 = scalar_lea.vmem [#allocation8], %s300
        %s302 = smul.u32 16, %s28
        %s303 = smul.u32 3, %s29
        %s304 = smul.u32 16, %s28
        %s305 = smul.u32 8, %s30
        %s306 = smul.u32 128, %s30
        %s307 = smul.u32 3, %s29
        %s308 = smul.u32 16, %s28
        %s309 = smul.u32 3, %s29
        %p310 = scmp.eq.s32.totalorder %s30, 0
        // Predicated region
        $region45: #{tpu_custom_call.1} parent=31 // pred_check
          %p311 = pneg %p310
        $region46: #{tpu_custom_call.1} parent=31 // pred_check_branch
          %313 = sbr.rel (%p311) target = $region48
        $region47: #{tpu_custom_call.1} parent=31 // pred_region
          %314 = vst [vmem:[%s301] sm:$0xff] 0.0
          %315 = vst [vmem:[%s301 + $0x8] sm:$0xff] 0.0
          %316 = vst [vmem:[%s301 + $0x10] sm:$0xff] 0.0
          %317 = vst [vmem:[%s301 + $0x18] sm:$0xff] 0.0
          %318 = vst [vmem:[%s301 + $0x20] sm:$0xff] 0.0
          %319 = vst [vmem:[%s301 + $0x28] sm:$0xff] 0.0
          %320 = vst [vmem:[%s301 + $0x30] sm:$0xff] 0.0
          %321 = vst [vmem:[%s301 + $0x38] sm:$0xff] 0.0
          %322 = vst [vmem:[%s301 + $0x40] sm:$0xff] 0.0
          %323 = vst [vmem:[%s301 + $0x48] sm:$0xff] 0.0
          %324 = vst [vmem:[%s301 + $0x50] sm:$0xff] 0.0
          %325 = vst [vmem:[%s301 + $0x58] sm:$0xff] 0.0
          %326 = vst [vmem:[%s301 + $0x60] sm:$0xff] 0.0
          %327 = vst [vmem:[%s301 + $0x68] sm:$0xff] 0.0
          %328 = vst [vmem:[%s301 + $0x70] sm:$0xff] 0.0
          %329 = vst [vmem:[%s301 + $0x78] sm:$0xff] 0.0
          %330 = vst [vmem:[%s301 + $0x80] sm:$0xff] 0.0
          %331 = vst [vmem:[%s301 + $0x88] sm:$0xff] 0.0
          %332 = vst [vmem:[%s301 + $0x90] sm:$0xff] 0.0
          %333 = vst [vmem:[%s301 + $0x98] sm:$0xff] 0.0
          %334 = vst [vmem:[%s301 + $0xa0] sm:$0xff] 0.0
          %335 = vst [vmem:[%s301 + $0xa8] sm:$0xff] 0.0
          %336 = vst [vmem:[%s301 + $0xb0] sm:$0xff] 0.0
          %337 = vst [vmem:[%s301 + $0xb8] sm:$0xff] 0.0
          %338 = vst [vmem:[%s301 + $0xc0] sm:$0xff] 0.0
          %339 = vst [vmem:[%s301 + $0xc8] sm:$0xff] 0.0
          %340 = vst [vmem:[%s301 + $0xd0] sm:$0xff] 0.0
          %341 = vst [vmem:[%s301 + $0xd8] sm:$0xff] 0.0
          %342 = vst [vmem:[%s301 + $0xe0] sm:$0xff] 0.0
          %343 = vst [vmem:[%s301 + $0xe8] sm:$0xff] 0.0
          %344 = vst [vmem:[%s301 + $0xf0] sm:$0xff] 0.0
          %345 = vst [vmem:[%s301 + $0xf8] sm:$0xff] 0.0
          %346 = vst [vmem:[%s301 + $0x100] sm:$0xff] 0.0
          %347 = vst [vmem:[%s301 + $0x108] sm:$0xff] 0.0
          %348 = vst [vmem:[%s301 + $0x110] sm:$0xff] 0.0
          %349 = vst [vmem:[%s301 + $0x118] sm:$0xff] 0.0
          %350 = vst [vmem:[%s301 + $0x120] sm:$0xff] 0.0
          %351 = vst [vmem:[%s301 + $0x128] sm:$0xff] 0.0
          %352 = vst [vmem:[%s301 + $0x130] sm:$0xff] 0.0
          %353 = vst [vmem:[%s301 + $0x138] sm:$0xff] 0.0
          %354 = vst [vmem:[%s301 + $0x140] sm:$0xff] 0.0
          %355 = vst [vmem:[%s301 + $0x148] sm:$0xff] 0.0
          %356 = vst [vmem:[%s301 + $0x150] sm:$0xff] 0.0
          %357 = vst [vmem:[%s301 + $0x158] sm:$0xff] 0.0
          %358 = vst [vmem:[%s301 + $0x160] sm:$0xff] 0.0
          %359 = vst [vmem:[%s301 + $0x168] sm:$0xff] 0.0
          %360 = vst [vmem:[%s301 + $0x170] sm:$0xff] 0.0
          %361 = vst [vmem:[%s301 + $0x178] sm:$0xff] 0.0
        $region48: #{tpu_custom_call.1} parent=31 // pred_fallthru
          _
        %v362 = vld [vmem:[%s301] sm:$0xff]
        %v363 = vld [vmem:[%s301 + $0x8] sm:$0xff]
        %v364 = vld [vmem:[%s301 + $0x10] sm:$0xff]
        %v365 = vld [vmem:[%s301 + $0x18] sm:$0xff]
        %v366 = vld [vmem:[%s301 + $0x20] sm:$0xff]
        %v367 = vld [vmem:[%s301 + $0x28] sm:$0xff]
        %v368 = vld [vmem:[%s301 + $0x30] sm:$0xff]
        %v369 = vld [vmem:[%s301 + $0x38] sm:$0xff]
        %v370 = vld [vmem:[%s301 + $0x40] sm:$0xff]
        %v371 = vld [vmem:[%s301 + $0x48] sm:$0xff]
        %v372 = vld [vmem:[%s301 + $0x50] sm:$0xff]
        %v373 = vld [vmem:[%s301 + $0x58] sm:$0xff]
        %v374 = vld [vmem:[%s301 + $0x60] sm:$0xff]
        %v375 = vld [vmem:[%s301 + $0x68] sm:$0xff]
        %v376 = vld [vmem:[%s301 + $0x70] sm:$0xff]
        %v377 = vld [vmem:[%s301 + $0x78] sm:$0xff]
        %v378 = vld [vmem:[%s301 + $0x80] sm:$0xff]
        %v379 = vld [vmem:[%s301 + $0x88] sm:$0xff]
        %v380 = vld [vmem:[%s301 + $0x90] sm:$0xff]
        %v381 = vld [vmem:[%s301 + $0x98] sm:$0xff]
        %v382 = vld [vmem:[%s301 + $0xa0] sm:$0xff]
        %v383 = vld [vmem:[%s301 + $0xa8] sm:$0xff]
        %v384 = vld [vmem:[%s301 + $0xb0] sm:$0xff]
        %v385 = vld [vmem:[%s301 + $0xb8] sm:$0xff]
        %v386 = vld [vmem:[%s301 + $0xc0] sm:$0xff]
        %v387 = vld [vmem:[%s301 + $0xc8] sm:$0xff]
        %v388 = vld [vmem:[%s301 + $0xd0] sm:$0xff]
        %v389 = vld [vmem:[%s301 + $0xd8] sm:$0xff]
        %v390 = vld [vmem:[%s301 + $0xe0] sm:$0xff]
        %v391 = vld [vmem:[%s301 + $0xe8] sm:$0xff]
        %v392 = vld [vmem:[%s301 + $0xf0] sm:$0xff]
        %v393 = vld [vmem:[%s301 + $0xf8] sm:$0xff]
        %v394 = vld [vmem:[%s301 + $0x100] sm:$0xff]
        %v395 = vld [vmem:[%s301 + $0x108] sm:$0xff]
        %v396 = vld [vmem:[%s301 + $0x110] sm:$0xff]
        %v397 = vld [vmem:[%s301 + $0x118] sm:$0xff]
        %v398 = vld [vmem:[%s301 + $0x120] sm:$0xff]
        %v399 = vld [vmem:[%s301 + $0x128] sm:$0xff]
        %v400 = vld [vmem:[%s301 + $0x130] sm:$0xff]
        %v401 = vld [vmem:[%s301 + $0x138] sm:$0xff]
        %v402 = vld [vmem:[%s301 + $0x140] sm:$0xff]
        %v403 = vld [vmem:[%s301 + $0x148] sm:$0xff]
        %v404 = vld [vmem:[%s301 + $0x150] sm:$0xff]
        %v405 = vld [vmem:[%s301 + $0x158] sm:$0xff]
        %v406 = vld [vmem:[%s301 + $0x160] sm:$0xff]
        %v407 = vld [vmem:[%s301 + $0x168] sm:$0xff]
        %v408 = vld [vmem:[%s301 + $0x170] sm:$0xff]
        %v409 = vld [vmem:[%s301 + $0x178] sm:$0xff]
        %v410 = vld [vmem:[%s260] sm:$0xff]
        %v411 = vld [vmem:[%s260 + $0x8] sm:$0xff]
        %v412 = vld [vmem:[%s260 + $0x10] sm:$0xff]
        %v413 = vld [vmem:[%s260 + $0x18] sm:$0xff]
        %v414 = vld [vmem:[%s260 + $0x20] sm:$0xff]
        %v415 = vld [vmem:[%s260 + $0x28] sm:$0xff]
        %v416 = vld [vmem:[%s260 + $0x30] sm:$0xff]
        %v417 = vld [vmem:[%s260 + $0x38] sm:$0xff]
        %v418 = vld [vmem:[%s260 + $0x40] sm:$0xff]
        %v419 = vld [vmem:[%s260 + $0x48] sm:$0xff]
        %v420 = vld [vmem:[%s260 + $0x50] sm:$0xff]
        %v421 = vld [vmem:[%s260 + $0x58] sm:$0xff]
        %v422 = vld [vmem:[%s260 + $0x60] sm:$0xff]
        %v423 = vld [vmem:[%s260 + $0x68] sm:$0xff]
        %v424 = vld [vmem:[%s260 + $0x70] sm:$0xff]
        %v425 = vld [vmem:[%s260 + $0x78] sm:$0xff]
        %v426 = vld [vmem:[%s260 + $0x80] sm:$0xff]
        %v427 = vld [vmem:[%s260 + $0x88] sm:$0xff]
        %v428 = vld [vmem:[%s260 + $0x90] sm:$0xff]
        %v429 = vld [vmem:[%s260 + $0x98] sm:$0xff]
        %v430 = vld [vmem:[%s260 + $0xa0] sm:$0xff]
        %v431 = vld [vmem:[%s260 + $0xa8] sm:$0xff]
        %v432 = vld [vmem:[%s260 + $0xb0] sm:$0xff]
        %v433 = vld [vmem:[%s260 + $0xb8] sm:$0xff]
        %v434 = vld [vmem:[%s260 + $0xc0] sm:$0xff]
        %v435 = vld [vmem:[%s260 + $0xc8] sm:$0xff]
        %v436 = vld [vmem:[%s260 + $0xd0] sm:$0xff]
        %v437 = vld [vmem:[%s260 + $0xd8] sm:$0xff]
        %v438 = vld [vmem:[%s260 + $0xe0] sm:$0xff]
        %v439 = vld [vmem:[%s260 + $0xe8] sm:$0xff]
        %v440 = vld [vmem:[%s260 + $0xf0] sm:$0xff]
        %v441 = vld [vmem:[%s260 + $0xf8] sm:$0xff]
        %v442 = vld [vmem:[%s260 + $0x100] sm:$0xff]
        %v443 = vld [vmem:[%s260 + $0x108] sm:$0xff]
        %v444 = vld [vmem:[%s260 + $0x110] sm:$0xff]
        %v445 = vld [vmem:[%s260 + $0x118] sm:$0xff]
        %v446 = vld [vmem:[%s260 + $0x120] sm:$0xff]
        %v447 = vld [vmem:[%s260 + $0x128] sm:$0xff]
        %v448 = vld [vmem:[%s260 + $0x130] sm:$0xff]
        %v449 = vld [vmem:[%s260 + $0x138] sm:$0xff]
        %v450 = vld [vmem:[%s260 + $0x140] sm:$0xff]
        %v451 = vld [vmem:[%s260 + $0x148] sm:$0xff]
        %v452 = vld [vmem:[%s260 + $0x150] sm:$0xff]
        %v453 = vld [vmem:[%s260 + $0x158] sm:$0xff]
        %v454 = vld [vmem:[%s260 + $0x160] sm:$0xff]
        %v455 = vld [vmem:[%s260 + $0x168] sm:$0xff]
        %v456 = vld [vmem:[%s260 + $0x170] sm:$0xff]
        %v457 = vld [vmem:[%s260 + $0x178] sm:$0xff]
        %v458 = vld [vmem:[%s260 + $0x180] sm:$0xff]
        %v459 = vld [vmem:[%s260 + $0x188] sm:$0xff]
        %v460 = vld [vmem:[%s260 + $0x190] sm:$0xff]
        %v461 = vld [vmem:[%s260 + $0x198] sm:$0xff]
        %v462 = vld [vmem:[%s260 + $0x1a0] sm:$0xff]
        %v463 = vld [vmem:[%s260 + $0x1a8] sm:$0xff]
        %v464 = vld [vmem:[%s260 + $0x1b0] sm:$0xff]
        %v465 = vld [vmem:[%s260 + $0x1b8] sm:$0xff]
        %v466 = vld [vmem:[%s260 + $0x1c0] sm:$0xff]
        %v467 = vld [vmem:[%s260 + $0x1c8] sm:$0xff]
        %v468 = vld [vmem:[%s260 + $0x1d0] sm:$0xff]
        %v469 = vld [vmem:[%s260 + $0x1d8] sm:$0xff]
        %v470 = vld [vmem:[%s260 + $0x1e0] sm:$0xff]
        %v471 = vld [vmem:[%s260 + $0x1e8] sm:$0xff]
        %v472 = vld [vmem:[%s260 + $0x1f0] sm:$0xff]
        %v473 = vld [vmem:[%s260 + $0x1f8] sm:$0xff]
        %v474 = vld [vmem:[%s260 + $0x200] sm:$0xff]
        %v475 = vld [vmem:[%s260 + $0x208] sm:$0xff]
        %v476 = vld [vmem:[%s260 + $0x210] sm:$0xff]
        %v477 = vld [vmem:[%s260 + $0x218] sm:$0xff]
        %v478 = vld [vmem:[%s260 + $0x220] sm:$0xff]
        %v479 = vld [vmem:[%s260 + $0x228] sm:$0xff]
        %v480 = vld [vmem:[%s260 + $0x230] sm:$0xff]
        %v481 = vld [vmem:[%s260 + $0x238] sm:$0xff]
        %v482 = vld [vmem:[%s260 + $0x240] sm:$0xff]
        %v483 = vld [vmem:[%s260 + $0x248] sm:$0xff]
        %v484 = vld [vmem:[%s260 + $0x250] sm:$0xff]
        %v485 = vld [vmem:[%s260 + $0x258] sm:$0xff]
        %v486 = vld [vmem:[%s260 + $0x260] sm:$0xff]
        %v487 = vld [vmem:[%s260 + $0x268] sm:$0xff]
        %v488 = vld [vmem:[%s260 + $0x270] sm:$0xff]
        %v489 = vld [vmem:[%s260 + $0x278] sm:$0xff]
        %v490 = vld [vmem:[%s260 + $0x280] sm:$0xff]
        %v491 = vld [vmem:[%s260 + $0x288] sm:$0xff]
        %v492 = vld [vmem:[%s260 + $0x290] sm:$0xff]
        %v493 = vld [vmem:[%s260 + $0x298] sm:$0xff]
        %v494 = vld [vmem:[%s260 + $0x2a0] sm:$0xff]
        %v495 = vld [vmem:[%s260 + $0x2a8] sm:$0xff]
        %v496 = vld [vmem:[%s260 + $0x2b0] sm:$0xff]
        %v497 = vld [vmem:[%s260 + $0x2b8] sm:$0xff]
        %v498 = vld [vmem:[%s260 + $0x2c0] sm:$0xff]
        %v499 = vld [vmem:[%s260 + $0x2c8] sm:$0xff]
        %v500 = vld [vmem:[%s260 + $0x2d0] sm:$0xff]
        %v501 = vld [vmem:[%s260 + $0x2d8] sm:$0xff]
        %v502 = vld [vmem:[%s260 + $0x2e0] sm:$0xff]
        %v503 = vld [vmem:[%s260 + $0x2e8] sm:$0xff]
        %v504 = vld [vmem:[%s260 + $0x2f0] sm:$0xff]
        %v505 = vld [vmem:[%s260 + $0x2f8] sm:$0xff]
        %v506 = vld [vmem:[%s260 + $0x300] sm:$0xff]
        %v507 = vld [vmem:[%s260 + $0x308] sm:$0xff]
        %v508 = vld [vmem:[%s260 + $0x310] sm:$0xff]
        %v509 = vld [vmem:[%s260 + $0x318] sm:$0xff]
        %v510 = vld [vmem:[%s260 + $0x320] sm:$0xff]
        %v511 = vld [vmem:[%s260 + $0x328] sm:$0xff]
        %v512 = vld [vmem:[%s260 + $0x330] sm:$0xff]
        %v513 = vld [vmem:[%s260 + $0x338] sm:$0xff]
        %v514 = vld [vmem:[%s260 + $0x340] sm:$0xff]
        %v515 = vld [vmem:[%s260 + $0x348] sm:$0xff]
        %v516 = vld [vmem:[%s260 + $0x350] sm:$0xff]
        %v517 = vld [vmem:[%s260 + $0x358] sm:$0xff]
        %v518 = vld [vmem:[%s260 + $0x360] sm:$0xff]
        %v519 = vld [vmem:[%s260 + $0x368] sm:$0xff]
        %v520 = vld [vmem:[%s260 + $0x370] sm:$0xff]
        %v521 = vld [vmem:[%s260 + $0x378] sm:$0xff]
        %v522 = vld [vmem:[%s260 + $0x380] sm:$0xff]
        %v523 = vld [vmem:[%s260 + $0x388] sm:$0xff]
        %v524 = vld [vmem:[%s260 + $0x390] sm:$0xff]
        %v525 = vld [vmem:[%s260 + $0x398] sm:$0xff]
        %v526 = vld [vmem:[%s260 + $0x3a0] sm:$0xff]
        %v527 = vld [vmem:[%s260 + $0x3a8] sm:$0xff]
        %v528 = vld [vmem:[%s260 + $0x3b0] sm:$0xff]
        %v529 = vld [vmem:[%s260 + $0x3b8] sm:$0xff]
        %v530 = vld [vmem:[%s260 + $0x3c0] sm:$0xff]
        %v531 = vld [vmem:[%s260 + $0x3c8] sm:$0xff]
        %v532 = vld [vmem:[%s260 + $0x3d0] sm:$0xff]
        %v533 = vld [vmem:[%s260 + $0x3d8] sm:$0xff]
        %v534 = vld [vmem:[%s260 + $0x3e0] sm:$0xff]
        %v535 = vld [vmem:[%s260 + $0x3e8] sm:$0xff]
        %v536 = vld [vmem:[%s260 + $0x3f0] sm:$0xff]
        %v537 = vld [vmem:[%s260 + $0x3f8] sm:$0xff]
        %v538 = vld [vmem:[%s269] sm:$0xff]
        %v539 = vld [vmem:[%s269 + $0x8] sm:$0xff]
        %v540 = vld [vmem:[%s269 + $0x10] sm:$0xff]
        %v541 = vld [vmem:[%s269 + $0x18] sm:$0xff]
        %v542 = vld [vmem:[%s269 + $0x20] sm:$0xff]
        %v543 = vld [vmem:[%s269 + $0x28] sm:$0xff]
        %v544 = vld [vmem:[%s269 + $0x30] sm:$0xff]
        %v545 = vld [vmem:[%s269 + $0x38] sm:$0xff]
        %v546 = vld [vmem:[%s269 + $0x40] sm:$0xff]
        %v547 = vld [vmem:[%s269 + $0x48] sm:$0xff]
        %v548 = vld [vmem:[%s269 + $0x50] sm:$0xff]
        %v549 = vld [vmem:[%s269 + $0x58] sm:$0xff]
        %v550 = vld [vmem:[%s269 + $0x60] sm:$0xff]
        %v551 = vld [vmem:[%s269 + $0x68] sm:$0xff]
        %v552 = vld [vmem:[%s269 + $0x70] sm:$0xff]
        %v553 = vld [vmem:[%s269 + $0x78] sm:$0xff]
        %v554 = vld [vmem:[%s269 + $0x80] sm:$0xff]
        %v555 = vld [vmem:[%s269 + $0x88] sm:$0xff]
        %v556 = vld [vmem:[%s269 + $0x90] sm:$0xff]
        %v557 = vld [vmem:[%s269 + $0x98] sm:$0xff]
        %v558 = vld [vmem:[%s269 + $0xa0] sm:$0xff]
        %v559 = vld [vmem:[%s269 + $0xa8] sm:$0xff]
        %v560 = vld [vmem:[%s269 + $0xb0] sm:$0xff]
        %v561 = vld [vmem:[%s269 + $0xb8] sm:$0xff]
        %v562 = vld [vmem:[%s269 + $0xc0] sm:$0xff]
        %v563 = vld [vmem:[%s269 + $0xc8] sm:$0xff]
        %v564 = vld [vmem:[%s269 + $0xd0] sm:$0xff]
        %v565 = vld [vmem:[%s269 + $0xd8] sm:$0xff]
        %v566 = vld [vmem:[%s269 + $0xe0] sm:$0xff]
        %v567 = vld [vmem:[%s269 + $0xe8] sm:$0xff]
        %v568 = vld [vmem:[%s269 + $0xf0] sm:$0xff]
        %v569 = vld [vmem:[%s269 + $0xf8] sm:$0xff]
        %v570 = vld [vmem:[%s269 + $0x100] sm:$0xff]
        %v571 = vld [vmem:[%s269 + $0x108] sm:$0xff]
        %v572 = vld [vmem:[%s269 + $0x110] sm:$0xff]
        %v573 = vld [vmem:[%s269 + $0x118] sm:$0xff]
        %v574 = vld [vmem:[%s269 + $0x120] sm:$0xff]
        %v575 = vld [vmem:[%s269 + $0x128] sm:$0xff]
        %v576 = vld [vmem:[%s269 + $0x130] sm:$0xff]
        %v577 = vld [vmem:[%s269 + $0x138] sm:$0xff]
        %v578 = vld [vmem:[%s269 + $0x140] sm:$0xff]
        %v579 = vld [vmem:[%s269 + $0x148] sm:$0xff]
        %v580 = vld [vmem:[%s269 + $0x150] sm:$0xff]
        %v581 = vld [vmem:[%s269 + $0x158] sm:$0xff]
        %v582 = vld [vmem:[%s269 + $0x160] sm:$0xff]
        %v583 = vld [vmem:[%s269 + $0x168] sm:$0xff]
        %v584 = vld [vmem:[%s269 + $0x170] sm:$0xff]
        %v585 = vld [vmem:[%s269 + $0x178] sm:$0xff]
        %v586 = vld [vmem:[%s269 + $0x180] sm:$0xff]
        %v587 = vld [vmem:[%s269 + $0x188] sm:$0xff]
        %v588 = vld [vmem:[%s269 + $0x190] sm:$0xff]
        %v589 = vld [vmem:[%s269 + $0x198] sm:$0xff]
        %v590 = vld [vmem:[%s269 + $0x1a0] sm:$0xff]
        %v591 = vld [vmem:[%s269 + $0x1a8] sm:$0xff]
        %v592 = vld [vmem:[%s269 + $0x1b0] sm:$0xff]
        %v593 = vld [vmem:[%s269 + $0x1b8] sm:$0xff]
        %v594 = vld [vmem:[%s269 + $0x1c0] sm:$0xff]
        %v595 = vld [vmem:[%s269 + $0x1c8] sm:$0xff]
        %v596 = vld [vmem:[%s269 + $0x1d0] sm:$0xff]
        %v597 = vld [vmem:[%s269 + $0x1d8] sm:$0xff]
        %v598 = vld [vmem:[%s269 + $0x1e0] sm:$0xff]
        %v599 = vld [vmem:[%s269 + $0x1e8] sm:$0xff]
        %v600 = vld [vmem:[%s269 + $0x1f0] sm:$0xff]
        %v601 = vld [vmem:[%s269 + $0x1f8] sm:$0xff]
        %v602 = vld [vmem:[%s269 + $0x200] sm:$0xff]
        %v603 = vld [vmem:[%s269 + $0x208] sm:$0xff]
        %v604 = vld [vmem:[%s269 + $0x210] sm:$0xff]
        %v605 = vld [vmem:[%s269 + $0x218] sm:$0xff]
        %v606 = vld [vmem:[%s269 + $0x220] sm:$0xff]
        %v607 = vld [vmem:[%s269 + $0x228] sm:$0xff]
        %v608 = vld [vmem:[%s269 + $0x230] sm:$0xff]
        %v609 = vld [vmem:[%s269 + $0x238] sm:$0xff]
        %v610 = vld [vmem:[%s269 + $0x240] sm:$0xff]
        %v611 = vld [vmem:[%s269 + $0x248] sm:$0xff]
        %v612 = vld [vmem:[%s269 + $0x250] sm:$0xff]
        %v613 = vld [vmem:[%s269 + $0x258] sm:$0xff]
        %v614 = vld [vmem:[%s269 + $0x260] sm:$0xff]
        %v615 = vld [vmem:[%s269 + $0x268] sm:$0xff]
        %v616 = vld [vmem:[%s269 + $0x270] sm:$0xff]
        %v617 = vld [vmem:[%s269 + $0x278] sm:$0xff]
        %v618 = vld [vmem:[%s269 + $0x280] sm:$0xff]
        %v619 = vld [vmem:[%s269 + $0x288] sm:$0xff]
        %v620 = vld [vmem:[%s269 + $0x290] sm:$0xff]
        %v621 = vld [vmem:[%s269 + $0x298] sm:$0xff]
        %v622 = vld [vmem:[%s269 + $0x2a0] sm:$0xff]
        %v623 = vld [vmem:[%s269 + $0x2a8] sm:$0xff]
        %v624 = vld [vmem:[%s269 + $0x2b0] sm:$0xff]
        %v625 = vld [vmem:[%s269 + $0x2b8] sm:$0xff]
        %v626 = vld [vmem:[%s269 + $0x2c0] sm:$0xff]
        %v627 = vld [vmem:[%s269 + $0x2c8] sm:$0xff]
        %v628 = vld [vmem:[%s269 + $0x2d0] sm:$0xff]
        %v629 = vld [vmem:[%s269 + $0x2d8] sm:$0xff]
        %v630 = vld [vmem:[%s269 + $0x2e0] sm:$0xff]
        %v631 = vld [vmem:[%s269 + $0x2e8] sm:$0xff]
        %v632 = vld [vmem:[%s269 + $0x2f0] sm:$0xff]
        %v633 = vld [vmem:[%s269 + $0x2f8] sm:$0xff]
        %v634 = vld [vmem:[%s269 + $0x300] sm:$0xff]
        %v635 = vld [vmem:[%s269 + $0x308] sm:$0xff]
        %v636 = vld [vmem:[%s269 + $0x310] sm:$0xff]
        %v637 = vld [vmem:[%s269 + $0x318] sm:$0xff]
        %v638 = vld [vmem:[%s269 + $0x320] sm:$0xff]
        %v639 = vld [vmem:[%s269 + $0x328] sm:$0xff]
        %v640 = vld [vmem:[%s269 + $0x330] sm:$0xff]
        %v641 = vld [vmem:[%s269 + $0x338] sm:$0xff]
        %v642 = vld [vmem:[%s269 + $0x340] sm:$0xff]
        %v643 = vld [vmem:[%s269 + $0x348] sm:$0xff]
        %v644 = vld [vmem:[%s269 + $0x350] sm:$0xff]
        %v645 = vld [vmem:[%s269 + $0x358] sm:$0xff]
        %v646 = vld [vmem:[%s269 + $0x360] sm:$0xff]
        %v647 = vld [vmem:[%s269 + $0x368] sm:$0xff]
        %v648 = vld [vmem:[%s269 + $0x370] sm:$0xff]
        %v649 = vld [vmem:[%s269 + $0x378] sm:$0xff]
        %v650 = vld [vmem:[%s269 + $0x380] sm:$0xff]
        %v651 = vld [vmem:[%s269 + $0x388] sm:$0xff]
        %v652 = vld [vmem:[%s269 + $0x390] sm:$0xff]
        %v653 = vld [vmem:[%s269 + $0x398] sm:$0xff]
        %v654 = vld [vmem:[%s269 + $0x3a0] sm:$0xff]
        %v655 = vld [vmem:[%s269 + $0x3a8] sm:$0xff]
        %v656 = vld [vmem:[%s269 + $0x3b0] sm:$0xff]
        %v657 = vld [vmem:[%s269 + $0x3b8] sm:$0xff]
        %v658 = vld [vmem:[%s269 + $0x3c0] sm:$0xff]
        %v659 = vld [vmem:[%s269 + $0x3c8] sm:$0xff]
        %v660 = vld [vmem:[%s269 + $0x3d0] sm:$0xff]
        %v661 = vld [vmem:[%s269 + $0x3d8] sm:$0xff]
        %v662 = vld [vmem:[%s269 + $0x3e0] sm:$0xff]
        %v663 = vld [vmem:[%s269 + $0x3e8] sm:$0xff]
        %v664 = vld [vmem:[%s269 + $0x3f0] sm:$0xff]
        %v665 = vld [vmem:[%s269 + $0x3f8] sm:$0xff]
        %v666 = vld [vmem:[%s269 + $0x400] sm:$0xff]
        %v667 = vld [vmem:[%s269 + $0x408] sm:$0xff]
        %v668 = vld [vmem:[%s269 + $0x410] sm:$0xff]
        %v669 = vld [vmem:[%s269 + $0x418] sm:$0xff]
        %v670 = vld [vmem:[%s269 + $0x420] sm:$0xff]
        %v671 = vld [vmem:[%s269 + $0x428] sm:$0xff]
        %v672 = vld [vmem:[%s269 + $0x430] sm:$0xff]
        %v673 = vld [vmem:[%s269 + $0x438] sm:$0xff]
        %v674 = vld [vmem:[%s269 + $0x440] sm:$0xff]
        %v675 = vld [vmem:[%s269 + $0x448] sm:$0xff]
        %v676 = vld [vmem:[%s269 + $0x450] sm:$0xff]
        %v677 = vld [vmem:[%s269 + $0x458] sm:$0xff]
        %v678 = vld [vmem:[%s269 + $0x460] sm:$0xff]
        %v679 = vld [vmem:[%s269 + $0x468] sm:$0xff]
        %v680 = vld [vmem:[%s269 + $0x470] sm:$0xff]
        %v681 = vld [vmem:[%s269 + $0x478] sm:$0xff]
        %v682 = vld [vmem:[%s269 + $0x480] sm:$0xff]
        %v683 = vld [vmem:[%s269 + $0x488] sm:$0xff]
        %v684 = vld [vmem:[%s269 + $0x490] sm:$0xff]
        %v685 = vld [vmem:[%s269 + $0x498] sm:$0xff]
        %v686 = vld [vmem:[%s269 + $0x4a0] sm:$0xff]
        %v687 = vld [vmem:[%s269 + $0x4a8] sm:$0xff]
        %v688 = vld [vmem:[%s269 + $0x4b0] sm:$0xff]
        %v689 = vld [vmem:[%s269 + $0x4b8] sm:$0xff]
        %v690 = vld [vmem:[%s269 + $0x4c0] sm:$0xff]
        %v691 = vld [vmem:[%s269 + $0x4c8] sm:$0xff]
        %v692 = vld [vmem:[%s269 + $0x4d0] sm:$0xff]
        %v693 = vld [vmem:[%s269 + $0x4d8] sm:$0xff]
        %v694 = vld [vmem:[%s269 + $0x4e0] sm:$0xff]
        %v695 = vld [vmem:[%s269 + $0x4e8] sm:$0xff]
        %v696 = vld [vmem:[%s269 + $0x4f0] sm:$0xff]
        %v697 = vld [vmem:[%s269 + $0x4f8] sm:$0xff]
        %v698 = vld [vmem:[%s269 + $0x500] sm:$0xff]
        %v699 = vld [vmem:[%s269 + $0x508] sm:$0xff]
        %v700 = vld [vmem:[%s269 + $0x510] sm:$0xff]
        %v701 = vld [vmem:[%s269 + $0x518] sm:$0xff]
        %v702 = vld [vmem:[%s269 + $0x520] sm:$0xff]
        %v703 = vld [vmem:[%s269 + $0x528] sm:$0xff]
        %v704 = vld [vmem:[%s269 + $0x530] sm:$0xff]
        %v705 = vld [vmem:[%s269 + $0x538] sm:$0xff]
        %v706 = vld [vmem:[%s269 + $0x540] sm:$0xff]
        %v707 = vld [vmem:[%s269 + $0x548] sm:$0xff]
        %v708 = vld [vmem:[%s269 + $0x550] sm:$0xff]
        %v709 = vld [vmem:[%s269 + $0x558] sm:$0xff]
        %v710 = vld [vmem:[%s269 + $0x560] sm:$0xff]
        %v711 = vld [vmem:[%s269 + $0x568] sm:$0xff]
        %v712 = vld [vmem:[%s269 + $0x570] sm:$0xff]
        %v713 = vld [vmem:[%s269 + $0x578] sm:$0xff]
        %v714 = vld [vmem:[%s269 + $0x580] sm:$0xff]
        %v715 = vld [vmem:[%s269 + $0x588] sm:$0xff]
        %v716 = vld [vmem:[%s269 + $0x590] sm:$0xff]
        %v717 = vld [vmem:[%s269 + $0x598] sm:$0xff]
        %v718 = vld [vmem:[%s269 + $0x5a0] sm:$0xff]
        %v719 = vld [vmem:[%s269 + $0x5a8] sm:$0xff]
        %v720 = vld [vmem:[%s269 + $0x5b0] sm:$0xff]
        %v721 = vld [vmem:[%s269 + $0x5b8] sm:$0xff]
        %v722 = vld [vmem:[%s269 + $0x5c0] sm:$0xff]
        %v723 = vld [vmem:[%s269 + $0x5c8] sm:$0xff]
        %v724 = vld [vmem:[%s269 + $0x5d0] sm:$0xff]
        %v725 = vld [vmem:[%s269 + $0x5d8] sm:$0xff]
        %v726 = vld [vmem:[%s269 + $0x5e0] sm:$0xff]
        %v727 = vld [vmem:[%s269 + $0x5e8] sm:$0xff]
        %v728 = vld [vmem:[%s269 + $0x5f0] sm:$0xff]
        %v729 = vld [vmem:[%s269 + $0x5f8] sm:$0xff]
        %v730 = vld [vmem:[%s269 + $0x600] sm:$0xff]
        %v731 = vld [vmem:[%s269 + $0x608] sm:$0xff]
        %v732 = vld [vmem:[%s269 + $0x610] sm:$0xff]
        %v733 = vld [vmem:[%s269 + $0x618] sm:$0xff]
        %v734 = vld [vmem:[%s269 + $0x620] sm:$0xff]
        %v735 = vld [vmem:[%s269 + $0x628] sm:$0xff]
        %v736 = vld [vmem:[%s269 + $0x630] sm:$0xff]
        %v737 = vld [vmem:[%s269 + $0x638] sm:$0xff]
        %v738 = vld [vmem:[%s269 + $0x640] sm:$0xff]
        %v739 = vld [vmem:[%s269 + $0x648] sm:$0xff]
        %v740 = vld [vmem:[%s269 + $0x650] sm:$0xff]
        %v741 = vld [vmem:[%s269 + $0x658] sm:$0xff]
        %v742 = vld [vmem:[%s269 + $0x660] sm:$0xff]
        %v743 = vld [vmem:[%s269 + $0x668] sm:$0xff]
        %v744 = vld [vmem:[%s269 + $0x670] sm:$0xff]
        %v745 = vld [vmem:[%s269 + $0x678] sm:$0xff]
        %v746 = vld [vmem:[%s269 + $0x680] sm:$0xff]
        %v747 = vld [vmem:[%s269 + $0x688] sm:$0xff]
        %v748 = vld [vmem:[%s269 + $0x690] sm:$0xff]
        %v749 = vld [vmem:[%s269 + $0x698] sm:$0xff]
        %v750 = vld [vmem:[%s269 + $0x6a0] sm:$0xff]
        %v751 = vld [vmem:[%s269 + $0x6a8] sm:$0xff]
        %v752 = vld [vmem:[%s269 + $0x6b0] sm:$0xff]
        %v753 = vld [vmem:[%s269 + $0x6b8] sm:$0xff]
        %v754 = vld [vmem:[%s269 + $0x6c0] sm:$0xff]
        %v755 = vld [vmem:[%s269 + $0x6c8] sm:$0xff]
        %v756 = vld [vmem:[%s269 + $0x6d0] sm:$0xff]
        %v757 = vld [vmem:[%s269 + $0x6d8] sm:$0xff]
        %v758 = vld [vmem:[%s269 + $0x6e0] sm:$0xff]
        %v759 = vld [vmem:[%s269 + $0x6e8] sm:$0xff]
        %v760 = vld [vmem:[%s269 + $0x6f0] sm:$0xff]
        %v761 = vld [vmem:[%s269 + $0x6f8] sm:$0xff]
        %v762 = vld [vmem:[%s269 + $0x700] sm:$0xff]
        %v763 = vld [vmem:[%s269 + $0x708] sm:$0xff]
        %v764 = vld [vmem:[%s269 + $0x710] sm:$0xff]
        %v765 = vld [vmem:[%s269 + $0x718] sm:$0xff]
        %v766 = vld [vmem:[%s269 + $0x720] sm:$0xff]
        %v767 = vld [vmem:[%s269 + $0x728] sm:$0xff]
        %v768 = vld [vmem:[%s269 + $0x730] sm:$0xff]
        %v769 = vld [vmem:[%s269 + $0x738] sm:$0xff]
        %v770 = vld [vmem:[%s269 + $0x740] sm:$0xff]
        %v771 = vld [vmem:[%s269 + $0x748] sm:$0xff]
        %v772 = vld [vmem:[%s269 + $0x750] sm:$0xff]
        %v773 = vld [vmem:[%s269 + $0x758] sm:$0xff]
        %v774 = vld [vmem:[%s269 + $0x760] sm:$0xff]
        %v775 = vld [vmem:[%s269 + $0x768] sm:$0xff]
        %v776 = vld [vmem:[%s269 + $0x770] sm:$0xff]
        %v777 = vld [vmem:[%s269 + $0x778] sm:$0xff]
        %v778 = vld [vmem:[%s269 + $0x780] sm:$0xff]
        %v779 = vld [vmem:[%s269 + $0x788] sm:$0xff]
        %v780 = vld [vmem:[%s269 + $0x790] sm:$0xff]
        %v781 = vld [vmem:[%s269 + $0x798] sm:$0xff]
        %v782 = vld [vmem:[%s269 + $0x7a0] sm:$0xff]
        %v783 = vld [vmem:[%s269 + $0x7a8] sm:$0xff]
        %v784 = vld [vmem:[%s269 + $0x7b0] sm:$0xff]
        %v785 = vld [vmem:[%s269 + $0x7b8] sm:$0xff]
        %v786 = vld [vmem:[%s269 + $0x7c0] sm:$0xff]
        %v787 = vld [vmem:[%s269 + $0x7c8] sm:$0xff]
        %v788 = vld [vmem:[%s269 + $0x7d0] sm:$0xff]
        %v789 = vld [vmem:[%s269 + $0x7d8] sm:$0xff]
        %v790 = vld [vmem:[%s269 + $0x7e0] sm:$0xff]
        %v791 = vld [vmem:[%s269 + $0x7e8] sm:$0xff]
        %v792 = vld [vmem:[%s269 + $0x7f0] sm:$0xff]
        %v793 = vld [vmem:[%s269 + $0x7f8] sm:$0xff]
        %v794 = vld [vmem:[%s269 + $0x800] sm:$0xff]
        %v795 = vld [vmem:[%s269 + $0x808] sm:$0xff]
        %v796 = vld [vmem:[%s269 + $0x810] sm:$0xff]
        %v797 = vld [vmem:[%s269 + $0x818] sm:$0xff]
        %v798 = vld [vmem:[%s269 + $0x820] sm:$0xff]
        %v799 = vld [vmem:[%s269 + $0x828] sm:$0xff]
        %v800 = vld [vmem:[%s269 + $0x830] sm:$0xff]
        %v801 = vld [vmem:[%s269 + $0x838] sm:$0xff]
        %v802 = vld [vmem:[%s269 + $0x840] sm:$0xff]
        %v803 = vld [vmem:[%s269 + $0x848] sm:$0xff]
        %v804 = vld [vmem:[%s269 + $0x850] sm:$0xff]
        %v805 = vld [vmem:[%s269 + $0x858] sm:$0xff]
        %v806 = vld [vmem:[%s269 + $0x860] sm:$0xff]
        %v807 = vld [vmem:[%s269 + $0x868] sm:$0xff]
        %v808 = vld [vmem:[%s269 + $0x870] sm:$0xff]
        %v809 = vld [vmem:[%s269 + $0x878] sm:$0xff]
        %v810 = vld [vmem:[%s269 + $0x880] sm:$0xff]
        %v811 = vld [vmem:[%s269 + $0x888] sm:$0xff]
        %v812 = vld [vmem:[%s269 + $0x890] sm:$0xff]
        %v813 = vld [vmem:[%s269 + $0x898] sm:$0xff]
        %v814 = vld [vmem:[%s269 + $0x8a0] sm:$0xff]
        %v815 = vld [vmem:[%s269 + $0x8a8] sm:$0xff]
        %v816 = vld [vmem:[%s269 + $0x8b0] sm:$0xff]
        %v817 = vld [vmem:[%s269 + $0x8b8] sm:$0xff]
        %v818 = vld [vmem:[%s269 + $0x8c0] sm:$0xff]
        %v819 = vld [vmem:[%s269 + $0x8c8] sm:$0xff]
        %v820 = vld [vmem:[%s269 + $0x8d0] sm:$0xff]
        %v821 = vld [vmem:[%s269 + $0x8d8] sm:$0xff]
        %v822 = vld [vmem:[%s269 + $0x8e0] sm:$0xff]
        %v823 = vld [vmem:[%s269 + $0x8e8] sm:$0xff]
        %v824 = vld [vmem:[%s269 + $0x8f0] sm:$0xff]
        %v825 = vld [vmem:[%s269 + $0x8f8] sm:$0xff]
        %v826 = vld [vmem:[%s269 + $0x900] sm:$0xff]
        %v827 = vld [vmem:[%s269 + $0x908] sm:$0xff]
        %v828 = vld [vmem:[%s269 + $0x910] sm:$0xff]
        %v829 = vld [vmem:[%s269 + $0x918] sm:$0xff]
        %v830 = vld [vmem:[%s269 + $0x920] sm:$0xff]
        %v831 = vld [vmem:[%s269 + $0x928] sm:$0xff]
        %v832 = vld [vmem:[%s269 + $0x930] sm:$0xff]
        %v833 = vld [vmem:[%s269 + $0x938] sm:$0xff]
        %v834 = vld [vmem:[%s269 + $0x940] sm:$0xff]
        %v835 = vld [vmem:[%s269 + $0x948] sm:$0xff]
        %v836 = vld [vmem:[%s269 + $0x950] sm:$0xff]
        %v837 = vld [vmem:[%s269 + $0x958] sm:$0xff]
        %v838 = vld [vmem:[%s269 + $0x960] sm:$0xff]
        %v839 = vld [vmem:[%s269 + $0x968] sm:$0xff]
        %v840 = vld [vmem:[%s269 + $0x970] sm:$0xff]
        %v841 = vld [vmem:[%s269 + $0x978] sm:$0xff]
        %v842 = vld [vmem:[%s269 + $0x980] sm:$0xff]
        %v843 = vld [vmem:[%s269 + $0x988] sm:$0xff]
        %v844 = vld [vmem:[%s269 + $0x990] sm:$0xff]
        %v845 = vld [vmem:[%s269 + $0x998] sm:$0xff]
        %v846 = vld [vmem:[%s269 + $0x9a0] sm:$0xff]
        %v847 = vld [vmem:[%s269 + $0x9a8] sm:$0xff]
        %v848 = vld [vmem:[%s269 + $0x9b0] sm:$0xff]
        %v849 = vld [vmem:[%s269 + $0x9b8] sm:$0xff]
        %v850 = vld [vmem:[%s269 + $0x9c0] sm:$0xff]
        %v851 = vld [vmem:[%s269 + $0x9c8] sm:$0xff]
        %v852 = vld [vmem:[%s269 + $0x9d0] sm:$0xff]
        %v853 = vld [vmem:[%s269 + $0x9d8] sm:$0xff]
        %v854 = vld [vmem:[%s269 + $0x9e0] sm:$0xff]
        %v855 = vld [vmem:[%s269 + $0x9e8] sm:$0xff]
        %v856 = vld [vmem:[%s269 + $0x9f0] sm:$0xff]
        %v857 = vld [vmem:[%s269 + $0x9f8] sm:$0xff]
        %v858 = vld [vmem:[%s269 + $0xa00] sm:$0xff]
        %v859 = vld [vmem:[%s269 + $0xa08] sm:$0xff]
        %v860 = vld [vmem:[%s269 + $0xa10] sm:$0xff]
        %v861 = vld [vmem:[%s269 + $0xa18] sm:$0xff]
        %v862 = vld [vmem:[%s269 + $0xa20] sm:$0xff]
        %v863 = vld [vmem:[%s269 + $0xa28] sm:$0xff]
        %v864 = vld [vmem:[%s269 + $0xa30] sm:$0xff]
        %v865 = vld [vmem:[%s269 + $0xa38] sm:$0xff]
        %v866 = vld [vmem:[%s269 + $0xa40] sm:$0xff]
        %v867 = vld [vmem:[%s269 + $0xa48] sm:$0xff]
        %v868 = vld [vmem:[%s269 + $0xa50] sm:$0xff]
        %v869 = vld [vmem:[%s269 + $0xa58] sm:$0xff]
        %v870 = vld [vmem:[%s269 + $0xa60] sm:$0xff]
        %v871 = vld [vmem:[%s269 + $0xa68] sm:$0xff]
        %v872 = vld [vmem:[%s269 + $0xa70] sm:$0xff]
        %v873 = vld [vmem:[%s269 + $0xa78] sm:$0xff]
        %v874 = vld [vmem:[%s269 + $0xa80] sm:$0xff]
        %v875 = vld [vmem:[%s269 + $0xa88] sm:$0xff]
        %v876 = vld [vmem:[%s269 + $0xa90] sm:$0xff]
        %v877 = vld [vmem:[%s269 + $0xa98] sm:$0xff]
        %v878 = vld [vmem:[%s269 + $0xaa0] sm:$0xff]
        %v879 = vld [vmem:[%s269 + $0xaa8] sm:$0xff]
        %v880 = vld [vmem:[%s269 + $0xab0] sm:$0xff]
        %v881 = vld [vmem:[%s269 + $0xab8] sm:$0xff]
        %v882 = vld [vmem:[%s269 + $0xac0] sm:$0xff]
        %v883 = vld [vmem:[%s269 + $0xac8] sm:$0xff]
        %v884 = vld [vmem:[%s269 + $0xad0] sm:$0xff]
        %v885 = vld [vmem:[%s269 + $0xad8] sm:$0xff]
        %v886 = vld [vmem:[%s269 + $0xae0] sm:$0xff]
        %v887 = vld [vmem:[%s269 + $0xae8] sm:$0xff]
        %v888 = vld [vmem:[%s269 + $0xaf0] sm:$0xff]
        %v889 = vld [vmem:[%s269 + $0xaf8] sm:$0xff]
        %v890 = vld [vmem:[%s269 + $0xb00] sm:$0xff]
        %v891 = vld [vmem:[%s269 + $0xb08] sm:$0xff]
        %v892 = vld [vmem:[%s269 + $0xb10] sm:$0xff]
        %v893 = vld [vmem:[%s269 + $0xb18] sm:$0xff]
        %v894 = vld [vmem:[%s269 + $0xb20] sm:$0xff]
        %v895 = vld [vmem:[%s269 + $0xb28] sm:$0xff]
        %v896 = vld [vmem:[%s269 + $0xb30] sm:$0xff]
        %v897 = vld [vmem:[%s269 + $0xb38] sm:$0xff]
        %v898 = vld [vmem:[%s269 + $0xb40] sm:$0xff]
        %v899 = vld [vmem:[%s269 + $0xb48] sm:$0xff]
        %v900 = vld [vmem:[%s269 + $0xb50] sm:$0xff]
        %v901 = vld [vmem:[%s269 + $0xb58] sm:$0xff]
        %v902 = vld [vmem:[%s269 + $0xb60] sm:$0xff]
        %v903 = vld [vmem:[%s269 + $0xb68] sm:$0xff]
        %v904 = vld [vmem:[%s269 + $0xb70] sm:$0xff]
        %v905 = vld [vmem:[%s269 + $0xb78] sm:$0xff]
        %v906 = vld [vmem:[%s269 + $0xb80] sm:$0xff]
        %v907 = vld [vmem:[%s269 + $0xb88] sm:$0xff]
        %v908 = vld [vmem:[%s269 + $0xb90] sm:$0xff]
        %v909 = vld [vmem:[%s269 + $0xb98] sm:$0xff]
        %v910 = vld [vmem:[%s269 + $0xba0] sm:$0xff]
        %v911 = vld [vmem:[%s269 + $0xba8] sm:$0xff]
        %v912 = vld [vmem:[%s269 + $0xbb0] sm:$0xff]
        %v913 = vld [vmem:[%s269 + $0xbb8] sm:$0xff]
        %v914 = vld [vmem:[%s269 + $0xbc0] sm:$0xff]
        %v915 = vld [vmem:[%s269 + $0xbc8] sm:$0xff]
        %v916 = vld [vmem:[%s269 + $0xbd0] sm:$0xff]
        %v917 = vld [vmem:[%s269 + $0xbd8] sm:$0xff]
        %v918 = vld [vmem:[%s269 + $0xbe0] sm:$0xff]
        %v919 = vld [vmem:[%s269 + $0xbe8] sm:$0xff]
        %v920 = vld [vmem:[%s269 + $0xbf0] sm:$0xff]
        %v921 = vld [vmem:[%s269 + $0xbf8] sm:$0xff]
        %922 = vmatprep.subr.mxu0 %v584
        %923 = vmatpush1.msra.mxu0 %v583
        %924 = vmatprep.subr.mxu0 %v581
        %925 = vmatpush1.msra.mxu0 %v580
        %926 = vmatprep.subr.mxu0 %v578
        %927 = vmatpush1.msra.mxu0 %v577
        %928 = vmatprep.subr.mxu0 %v575
        %929 = vmatpush1.msra.mxu0 %v574
        %930 = vmatprep.subr.mxu0 %v572
        %931 = vmatpush1.msra.mxu0 %v571
        %932 = vmatprep.subr.mxu0 %v569
        %933 = vmatpush1.msra.mxu0 %v568
        %934 = vmatprep.subr.mxu0 %v566
        %935 = vmatpush1.msra.mxu0 %v565
        %936 = vmatprep.subr.mxu0 %v563
        %937 = vmatpush1.msra.mxu0 %v562
        %938 = vmatprep.subr.mxu0 %v560
        %939 = vmatpush1.msra.mxu0 %v559
        %940 = vmatprep.subr.mxu0 %v557
        %941 = vmatpush1.msra.mxu0 %v556
        %942 = vmatprep.subr.mxu0 %v554
        %943 = vmatpush1.msra.mxu0 %v553
        %944 = vmatprep.subr.mxu0 %v551
        %945 = vmatpush1.msra.mxu0 %v550
        %946 = vmatprep.subr.mxu0 %v548
        %947 = vmatpush1.msra.mxu0 %v547
        %948 = vmatprep.subr.mxu0 %v545
        %949 = vmatpush1.msra.mxu0 %v544
        %950 = vmatprep.subr.mxu0 %v542
        %951 = vmatpush1.msra.mxu0 %v541
        %952 = vmatprep.subr.mxu0 %v539
        %953 = vmatpush1.msra.mxu0 %v538
        %954 = vmatprep.subr.mxu0 %v632
        %955 = vmatpush2.msra.mxu0 %v631
        %956 = vmatprep.subr.mxu0 %v629
        %957 = vmatpush2.msra.mxu0 %v628
        %958 = vmatprep.subr.mxu0 %v626
        %959 = vmatpush2.msra.mxu0 %v625
        %960 = vmatprep.subr.mxu0 %v623
        %961 = vmatpush2.msra.mxu0 %v622
        %962 = vmatprep.subr.mxu0 %v620
        %963 = vmatpush2.msra.mxu0 %v619
        %964 = vmatprep.subr.mxu0 %v617
        %965 = vmatpush2.msra.mxu0 %v616
        %966 = vmatprep.subr.mxu0 %v614
        %967 = vmatpush2.msra.mxu0 %v613
        %968 = vmatprep.subr.mxu0 %v611
        %969 = vmatpush2.msra.mxu0 %v610
        %970 = vmatprep.subr.mxu0 %v608
        %971 = vmatpush2.msra.mxu0 %v607
        %972 = vmatprep.subr.mxu0 %v605
        %973 = vmatpush2.msra.mxu0 %v604
        %974 = vmatprep.subr.mxu0 %v602
        %975 = vmatpush2.msra.mxu0 %v601
        %976 = vmatprep.subr.mxu0 %v599
        %977 = vmatpush2.msra.mxu0 %v598
        %978 = vmatprep.subr.mxu0 %v596
        %979 = vmatpush2.msra.mxu0 %v595
        %980 = vmatprep.subr.mxu0 %v593
        %981 = vmatpush2.msra.mxu0 %v592
        %982 = vmatprep.subr.mxu0 %v590
        %983 = vmatpush2.msra.mxu0 %v589
        %984 = vmatprep.subr.mxu0 %v587
        %985 = vmatpush2.msra.mxu0 %v586
        %986 = vmatprep.mubr.f32.mxu0 %v411
        %987 = vmatmul.mubr.f32.gmra.mxu0 %v410
        %v988 = vpop.f32.mrf.mxu0
        %v989 = vadd.f32 0.0, %v988
        %v990 = vpop.f32.mrf.mxu0
        %v991 = vadd.f32 0.0, %v990
        %992 = vmatprep.mubr.f32.mxu0 %v419
        %993 = vmatmul.mubr.f32.gmra.mxu0 %v418
        %v994 = vpop.f32.mrf.mxu0
        %v995 = vadd.f32 0.0, %v994
        %v996 = vpop.f32.mrf.mxu0
        %v997 = vadd.f32 0.0, %v996
        %998 = vmatprep.mubr.f32.mxu0 %v427
        %999 = vmatmul.mubr.f32.gmra.mxu0 %v426
        %v1000 = vpop.f32.mrf.mxu0
        %v1001 = vadd.f32 0.0, %v1000
        %v1002 = vpop.f32.mrf.mxu0
        %v1003 = vadd.f32 0.0, %v1002
        %1004 = vmatprep.mubr.f32.mxu0 %v435
        %1005 = vmatmul.mubr.f32.gmra.mxu0 %v434
        %v1006 = vpop.f32.mrf.mxu0
        %v1007 = vadd.f32 0.0, %v1006
        %v1008 = vpop.f32.mrf.mxu0
        %v1009 = vadd.f32 0.0, %v1008
        %1010 = vmatprep.mubr.f32.mxu0 %v443
        %1011 = vmatmul.mubr.f32.gmra.mxu0 %v442
        %v1012 = vpop.f32.mrf.mxu0
        %v1013 = vadd.f32 0.0, %v1012
        %v1014 = vpop.f32.mrf.mxu0
        %v1015 = vadd.f32 0.0, %v1014
        %1016 = vmatprep.mubr.f32.mxu0 %v451
        %1017 = vmatmul.mubr.f32.gmra.mxu0 %v450
        %v1018 = vpop.f32.mrf.mxu0
        %v1019 = vadd.f32 0.0, %v1018
        %v1020 = vpop.f32.mrf.mxu0
        %v1021 = vadd.f32 0.0, %v1020
        %1022 = vmatprep.mubr.f32.mxu0 %v459
        %1023 = vmatmul.mubr.f32.gmra.mxu0 %v458
        %v1024 = vpop.f32.mrf.mxu0
        %v1025 = vadd.f32 0.0, %v1024
        %v1026 = vpop.f32.mrf.mxu0
        %v1027 = vadd.f32 0.0, %v1026
        %1028 = vmatprep.mubr.f32.mxu0 %v467
        %1029 = vmatmul.mubr.f32.gmra.mxu0 %v466
        %v1030 = vpop.f32.mrf.mxu0
        %v1031 = vadd.f32 0.0, %v1030
        %v1032 = vpop.f32.mrf.mxu0
        %v1033 = vadd.f32 0.0, %v1032
        %1034 = vmatprep.mubr.f32.mxu0 %v475
        %1035 = vmatmul.mubr.f32.gmra.mxu0 %v474
        %v1036 = vpop.f32.mrf.mxu0
        %v1037 = vadd.f32 0.0, %v1036
        %v1038 = vpop.f32.mrf.mxu0
        %v1039 = vadd.f32 0.0, %v1038
        %1040 = vmatprep.mubr.f32.mxu0 %v483
        %1041 = vmatmul.mubr.f32.gmra.mxu0 %v482
        %v1042 = vpop.f32.mrf.mxu0
        %v1043 = vadd.f32 0.0, %v1042
        %v1044 = vpop.f32.mrf.mxu0
        %v1045 = vadd.f32 0.0, %v1044
        %1046 = vmatprep.mubr.f32.mxu0 %v491
        %1047 = vmatmul.mubr.f32.gmra.mxu0 %v490
        %v1048 = vpop.f32.mrf.mxu0
        %v1049 = vadd.f32 0.0, %v1048
        %v1050 = vpop.f32.mrf.mxu0
        %v1051 = vadd.f32 0.0, %v1050
        %1052 = vmatprep.mubr.f32.mxu0 %v499
        %1053 = vmatmul.mubr.f32.gmra.mxu0 %v498
        %v1054 = vpop.f32.mrf.mxu0
        %v1055 = vadd.f32 0.0, %v1054
        %v1056 = vpop.f32.mrf.mxu0
        %v1057 = vadd.f32 0.0, %v1056
        %1058 = vmatprep.mubr.f32.mxu0 %v507
        %1059 = vmatmul.mubr.f32.gmra.mxu0 %v506
        %v1060 = vpop.f32.mrf.mxu0
        %v1061 = vadd.f32 0.0, %v1060
        %v1062 = vpop.f32.mrf.mxu0
        %v1063 = vadd.f32 0.0, %v1062
        %1064 = vmatprep.mubr.f32.mxu0 %v515
        %1065 = vmatmul.mubr.f32.gmra.mxu0 %v514
        %v1066 = vpop.f32.mrf.mxu0
        %v1067 = vadd.f32 0.0, %v1066
        %v1068 = vpop.f32.mrf.mxu0
        %v1069 = vadd.f32 0.0, %v1068
        %1070 = vmatprep.mubr.f32.mxu0 %v523
        %1071 = vmatmul.mubr.f32.gmra.mxu0 %v522
        %v1072 = vpop.f32.mrf.mxu0
        %v1073 = vadd.f32 0.0, %v1072
        %v1074 = vpop.f32.mrf.mxu0
        %v1075 = vadd.f32 0.0, %v1074
        %1076 = vmatprep.mubr.f32.mxu0 %v531
        %1077 = vmatmul.mubr.f32.gmra.mxu0 %v530
        %v1078 = vpop.f32.mrf.mxu0
        %v1079 = vadd.f32 0.0, %v1078
        %v1080 = vpop.f32.mrf.mxu0
        %v1081 = vadd.f32 0.0, %v1080
        %1082 = vdwg.mxu0
        %1083 = vmatprep.subr.mxu0 %v680
        %1084 = vmatpush1.msra.mxu0 %v679
        %1085 = vmatprep.subr.mxu0 %v677
        %1086 = vmatpush1.msra.mxu0 %v676
        %1087 = vmatprep.subr.mxu0 %v674
        %1088 = vmatpush1.msra.mxu0 %v673
        %1089 = vmatprep.subr.mxu0 %v671
        %1090 = vmatpush1.msra.mxu0 %v670
        %1091 = vmatprep.subr.mxu0 %v668
        %1092 = vmatpush1.msra.mxu0 %v667
        %1093 = vmatprep.subr.mxu0 %v665
        %1094 = vmatpush1.msra.mxu0 %v664
        %1095 = vmatprep.subr.mxu0 %v662
        %1096 = vmatpush1.msra.mxu0 %v661
        %1097 = vmatprep.subr.mxu0 %v659
        %1098 = vmatpush1.msra.mxu0 %v658
        %1099 = vmatprep.subr.mxu0 %v656
        %1100 = vmatpush1.msra.mxu0 %v655
        %1101 = vmatprep.subr.mxu0 %v653
        %1102 = vmatpush1.msra.mxu0 %v652
        %1103 = vmatprep.subr.mxu0 %v650
        %1104 = vmatpush1.msra.mxu0 %v649
        %1105 = vmatprep.subr.mxu0 %v647
        %1106 = vmatpush1.msra.mxu0 %v646
        %1107 = vmatprep.subr.mxu0 %v644
        %1108 = vmatpush1.msra.mxu0 %v643
        %1109 = vmatprep.subr.mxu0 %v641
        %1110 = vmatpush1.msra.mxu0 %v640
        %1111 = vmatprep.subr.mxu0 %v638
        %1112 = vmatpush1.msra.mxu0 %v637
        %1113 = vmatprep.subr.mxu0 %v635
        %1114 = vmatpush1.msra.mxu0 %v634
        %1115 = vmatprep.subr.mxu0 %v728
        %1116 = vmatpush2.msra.mxu0 %v727
        %1117 = vmatprep.subr.mxu0 %v725
        %1118 = vmatpush2.msra.mxu0 %v724
        %1119 = vmatprep.subr.mxu0 %v722
        %1120 = vmatpush2.msra.mxu0 %v721
        %1121 = vmatprep.subr.mxu0 %v719
        %1122 = vmatpush2.msra.mxu0 %v718
        %1123 = vmatprep.subr.mxu0 %v716
        %1124 = vmatpush2.msra.mxu0 %v715
        %1125 = vmatprep.subr.mxu0 %v713
        %1126 = vmatpush2.msra.mxu0 %v712
        %1127 = vmatprep.subr.mxu0 %v710
        %1128 = vmatpush2.msra.mxu0 %v709
        %1129 = vmatprep.subr.mxu0 %v707
        %1130 = vmatpush2.msra.mxu0 %v706
        %1131 = vmatprep.subr.mxu0 %v704
        %1132 = vmatpush2.msra.mxu0 %v703
        %1133 = vmatprep.subr.mxu0 %v701
        %1134 = vmatpush2.msra.mxu0 %v700
        %1135 = vmatprep.subr.mxu0 %v698
        %1136 = vmatpush2.msra.mxu0 %v697
        %1137 = vmatprep.subr.mxu0 %v695
        %1138 = vmatpush2.msra.mxu0 %v694
        %1139 = vmatprep.subr.mxu0 %v692
        %1140 = vmatpush2.msra.mxu0 %v691
        %1141 = vmatprep.subr.mxu0 %v689
        %1142 = vmatpush2.msra.mxu0 %v688
        %1143 = vmatprep.subr.mxu0 %v686
        %1144 = vmatpush2.msra.mxu0 %v685
        %1145 = vmatprep.subr.mxu0 %v683
        %1146 = vmatpush2.msra.mxu0 %v682
        %1147 = vmatprep.mubr.f32.mxu0 %v413
        %1148 = vmatmul.mubr.f32.gmra.mxu0 %v412
        %v1149 = vpop.f32.mrf.mxu0
        %v1150 = vadd.f32 %v989, %v1149
        %v1151 = vpop.f32.mrf.mxu0
        %v1152 = vadd.f32 %v991, %v1151
        %1153 = vmatprep.mubr.f32.mxu0 %v421
        %1154 = vmatmul.mubr.f32.gmra.mxu0 %v420
        %v1155 = vpop.f32.mrf.mxu0
        %v1156 = vadd.f32 %v995, %v1155
        %v1157 = vpop.f32.mrf.mxu0
        %v1158 = vadd.f32 %v997, %v1157
        %1159 = vmatprep.mubr.f32.mxu0 %v429
        %1160 = vmatmul.mubr.f32.gmra.mxu0 %v428
        %v1161 = vpop.f32.mrf.mxu0
        %v1162 = vadd.f32 %v1001, %v1161
        %v1163 = vpop.f32.mrf.mxu0
        %v1164 = vadd.f32 %v1003, %v1163
        %1165 = vmatprep.mubr.f32.mxu0 %v437
        %1166 = vmatmul.mubr.f32.gmra.mxu0 %v436
        %v1167 = vpop.f32.mrf.mxu0
        %v1168 = vadd.f32 %v1007, %v1167
        %v1169 = vpop.f32.mrf.mxu0
        %v1170 = vadd.f32 %v1009, %v1169
        %1171 = vmatprep.mubr.f32.mxu0 %v445
        %1172 = vmatmul.mubr.f32.gmra.mxu0 %v444
        %v1173 = vpop.f32.mrf.mxu0
        %v1174 = vadd.f32 %v1013, %v1173
        %v1175 = vpop.f32.mrf.mxu0
        %v1176 = vadd.f32 %v1015, %v1175
        %1177 = vmatprep.mubr.f32.mxu0 %v453
        %1178 = vmatmul.mubr.f32.gmra.mxu0 %v452
        %v1179 = vpop.f32.mrf.mxu0
        %v1180 = vadd.f32 %v1019, %v1179
        %v1181 = vpop.f32.mrf.mxu0
        %v1182 = vadd.f32 %v1021, %v1181
        %1183 = vmatprep.mubr.f32.mxu0 %v461
        %1184 = vmatmul.mubr.f32.gmra.mxu0 %v460
        %v1185 = vpop.f32.mrf.mxu0
        %v1186 = vadd.f32 %v1025, %v1185
        %v1187 = vpop.f32.mrf.mxu0
        %v1188 = vadd.f32 %v1027, %v1187
        %1189 = vmatprep.mubr.f32.mxu0 %v469
        %1190 = vmatmul.mubr.f32.gmra.mxu0 %v468
        %v1191 = vpop.f32.mrf.mxu0
        %v1192 = vadd.f32 %v1031, %v1191
        %v1193 = vpop.f32.mrf.mxu0
        %v1194 = vadd.f32 %v1033, %v1193
        %1195 = vmatprep.mubr.f32.mxu0 %v477
        %1196 = vmatmul.mubr.f32.gmra.mxu0 %v476
        %v1197 = vpop.f32.mrf.mxu0
        %v1198 = vadd.f32 %v1037, %v1197
        %v1199 = vpop.f32.mrf.mxu0
        %v1200 = vadd.f32 %v1039, %v1199
        %1201 = vmatprep.mubr.f32.mxu0 %v485
        %1202 = vmatmul.mubr.f32.gmra.mxu0 %v484
        %v1203 = vpop.f32.mrf.mxu0
        %v1204 = vadd.f32 %v1043, %v1203
        %v1205 = vpop.f32.mrf.mxu0
        %v1206 = vadd.f32 %v1045, %v1205
        %1207 = vmatprep.mubr.f32.mxu0 %v493
        %1208 = vmatmul.mubr.f32.gmra.mxu0 %v492
        %v1209 = vpop.f32.mrf.mxu0
        %v1210 = vadd.f32 %v1049, %v1209
        %v1211 = vpop.f32.mrf.mxu0
        %v1212 = vadd.f32 %v1051, %v1211
        %1213 = vmatprep.mubr.f32.mxu0 %v501
        %1214 = vmatmul.mubr.f32.gmra.mxu0 %v500
        %v1215 = vpop.f32.mrf.mxu0
        %v1216 = vadd.f32 %v1055, %v1215
        %v1217 = vpop.f32.mrf.mxu0
        %v1218 = vadd.f32 %v1057, %v1217
        %1219 = vmatprep.mubr.f32.mxu0 %v509
        %1220 = vmatmul.mubr.f32.gmra.mxu0 %v508
        %v1221 = vpop.f32.mrf.mxu0
        %v1222 = vadd.f32 %v1061, %v1221
        %v1223 = vpop.f32.mrf.mxu0
        %v1224 = vadd.f32 %v1063, %v1223
        %1225 = vmatprep.mubr.f32.mxu0 %v517
        %1226 = vmatmul.mubr.f32.gmra.mxu0 %v516
        %v1227 = vpop.f32.mrf.mxu0
        %v1228 = vadd.f32 %v1067, %v1227
        %v1229 = vpop.f32.mrf.mxu0
        %v1230 = vadd.f32 %v1069, %v1229
        %1231 = vmatprep.mubr.f32.mxu0 %v525
        %1232 = vmatmul.mubr.f32.gmra.mxu0 %v524
        %v1233 = vpop.f32.mrf.mxu0
        %v1234 = vadd.f32 %v1073, %v1233
        %v1235 = vpop.f32.mrf.mxu0
        %v1236 = vadd.f32 %v1075, %v1235
        %1237 = vmatprep.mubr.f32.mxu0 %v533
        %1238 = vmatmul.mubr.f32.gmra.mxu0 %v532
        %v1239 = vpop.f32.mrf.mxu0
        %v1240 = vadd.f32 %v1079, %v1239
        %v1241 = vpop.f32.mrf.mxu0
        %v1242 = vadd.f32 %v1081, %v1241
        %1243 = vdwg.mxu0
        %1244 = vmatprep.subr.mxu0 %v776
        %1245 = vmatpush1.msra.mxu0 %v775
        %1246 = vmatprep.subr.mxu0 %v773
        %1247 = vmatpush1.msra.mxu0 %v772
        %1248 = vmatprep.subr.mxu0 %v770
        %1249 = vmatpush1.msra.mxu0 %v769
        %1250 = vmatprep.subr.mxu0 %v767
        %1251 = vmatpush1.msra.mxu0 %v766
        %1252 = vmatprep.subr.mxu0 %v764
        %1253 = vmatpush1.msra.mxu0 %v763
        %1254 = vmatprep.subr.mxu0 %v761
        %1255 = vmatpush1.msra.mxu0 %v760
        %1256 = vmatprep.subr.mxu0 %v758
        %1257 = vmatpush1.msra.mxu0 %v757
        %1258 = vmatprep.subr.mxu0 %v755
        %1259 = vmatpush1.msra.mxu0 %v754
        %1260 = vmatprep.subr.mxu0 %v752
        %1261 = vmatpush1.msra.mxu0 %v751
        %1262 = vmatprep.subr.mxu0 %v749
        %1263 = vmatpush1.msra.mxu0 %v748
        %1264 = vmatprep.subr.mxu0 %v746
        %1265 = vmatpush1.msra.mxu0 %v745
        %1266 = vmatprep.subr.mxu0 %v743
        %1267 = vmatpush1.msra.mxu0 %v742
        %1268 = vmatprep.subr.mxu0 %v740
        %1269 = vmatpush1.msra.mxu0 %v739
        %1270 = vmatprep.subr.mxu0 %v737
        %1271 = vmatpush1.msra.mxu0 %v736
        %1272 = vmatprep.subr.mxu0 %v734
        %1273 = vmatpush1.msra.mxu0 %v733
        %1274 = vmatprep.subr.mxu0 %v731
        %1275 = vmatpush1.msra.mxu0 %v730
        %1276 = vmatprep.subr.mxu0 %v824
        %1277 = vmatpush2.msra.mxu0 %v823
        %1278 = vmatprep.subr.mxu0 %v821
        %1279 = vmatpush2.msra.mxu0 %v820
        %1280 = vmatprep.subr.mxu0 %v818
        %1281 = vmatpush2.msra.mxu0 %v817
        %1282 = vmatprep.subr.mxu0 %v815
        %1283 = vmatpush2.msra.mxu0 %v814
        %1284 = vmatprep.subr.mxu0 %v812
        %1285 = vmatpush2.msra.mxu0 %v811
        %1286 = vmatprep.subr.mxu0 %v809
        %1287 = vmatpush2.msra.mxu0 %v808
        %1288 = vmatprep.subr.mxu0 %v806
        %1289 = vmatpush2.msra.mxu0 %v805
        %1290 = vmatprep.subr.mxu0 %v803
        %1291 = vmatpush2.msra.mxu0 %v802
        %1292 = vmatprep.subr.mxu0 %v800
        %1293 = vmatpush2.msra.mxu0 %v799
        %1294 = vmatprep.subr.mxu0 %v797
        %1295 = vmatpush2.msra.mxu0 %v796
        %1296 = vmatprep.subr.mxu0 %v794
        %1297 = vmatpush2.msra.mxu0 %v793
        %1298 = vmatprep.subr.mxu0 %v791
        %1299 = vmatpush2.msra.mxu0 %v790
        %1300 = vmatprep.subr.mxu0 %v788
        %1301 = vmatpush2.msra.mxu0 %v787
        %1302 = vmatprep.subr.mxu0 %v785
        %1303 = vmatpush2.msra.mxu0 %v784
        %1304 = vmatprep.subr.mxu0 %v782
        %1305 = vmatpush2.msra.mxu0 %v781
        %1306 = vmatprep.subr.mxu0 %v779
        %1307 = vmatpush2.msra.mxu0 %v778
        %1308 = vmatprep.mubr.f32.mxu0 %v415
        %1309 = vmatmul.mubr.f32.gmra.mxu0 %v414
        %v1310 = vpop.f32.mrf.mxu0
        %v1311 = vadd.f32 %v1150, %v1310
        %v1312 = vpop.f32.mrf.mxu0
        %v1313 = vadd.f32 %v1152, %v1312
        %1314 = vmatprep.mubr.f32.mxu0 %v423
        %1315 = vmatmul.mubr.f32.gmra.mxu0 %v422
        %v1316 = vpop.f32.mrf.mxu0
        %v1317 = vadd.f32 %v1156, %v1316
        %v1318 = vpop.f32.mrf.mxu0
        %v1319 = vadd.f32 %v1158, %v1318
        %1320 = vmatprep.mubr.f32.mxu0 %v431
        %1321 = vmatmul.mubr.f32.gmra.mxu0 %v430
        %v1322 = vpop.f32.mrf.mxu0
        %v1323 = vadd.f32 %v1162, %v1322
        %v1324 = vpop.f32.mrf.mxu0
        %v1325 = vadd.f32 %v1164, %v1324
        %1326 = vmatprep.mubr.f32.mxu0 %v439
        %1327 = vmatmul.mubr.f32.gmra.mxu0 %v438
        %v1328 = vpop.f32.mrf.mxu0
        %v1329 = vadd.f32 %v1168, %v1328
        %v1330 = vpop.f32.mrf.mxu0
        %v1331 = vadd.f32 %v1170, %v1330
        %1332 = vmatprep.mubr.f32.mxu0 %v447
        %1333 = vmatmul.mubr.f32.gmra.mxu0 %v446
        %v1334 = vpop.f32.mrf.mxu0
        %v1335 = vadd.f32 %v1174, %v1334
        %v1336 = vpop.f32.mrf.mxu0
        %v1337 = vadd.f32 %v1176, %v1336
        %1338 = vmatprep.mubr.f32.mxu0 %v455
        %1339 = vmatmul.mubr.f32.gmra.mxu0 %v454
        %v1340 = vpop.f32.mrf.mxu0
        %v1341 = vadd.f32 %v1180, %v1340
        %v1342 = vpop.f32.mrf.mxu0
        %v1343 = vadd.f32 %v1182, %v1342
        %1344 = vmatprep.mubr.f32.mxu0 %v463
        %1345 = vmatmul.mubr.f32.gmra.mxu0 %v462
        %v1346 = vpop.f32.mrf.mxu0
        %v1347 = vadd.f32 %v1186, %v1346
        %v1348 = vpop.f32.mrf.mxu0
        %v1349 = vadd.f32 %v1188, %v1348
        %1350 = vmatprep.mubr.f32.mxu0 %v471
        %1351 = vmatmul.mubr.f32.gmra.mxu0 %v470
        %v1352 = vpop.f32.mrf.mxu0
        %v1353 = vadd.f32 %v1192, %v1352
        %v1354 = vpop.f32.mrf.mxu0
        %v1355 = vadd.f32 %v1194, %v1354
        %1356 = vmatprep.mubr.f32.mxu0 %v479
        %1357 = vmatmul.mubr.f32.gmra.mxu0 %v478
        %v1358 = vpop.f32.mrf.mxu0
        %v1359 = vadd.f32 %v1198, %v1358
        %v1360 = vpop.f32.mrf.mxu0
        %v1361 = vadd.f32 %v1200, %v1360
        %1362 = vmatprep.mubr.f32.mxu0 %v487
        %1363 = vmatmul.mubr.f32.gmra.mxu0 %v486
        %v1364 = vpop.f32.mrf.mxu0
        %v1365 = vadd.f32 %v1204, %v1364
        %v1366 = vpop.f32.mrf.mxu0
        %v1367 = vadd.f32 %v1206, %v1366
        %1368 = vmatprep.mubr.f32.mxu0 %v495
        %1369 = vmatmul.mubr.f32.gmra.mxu0 %v494
        %v1370 = vpop.f32.mrf.mxu0
        %v1371 = vadd.f32 %v1210, %v1370
        %v1372 = vpop.f32.mrf.mxu0
        %v1373 = vadd.f32 %v1212, %v1372
        %1374 = vmatprep.mubr.f32.mxu0 %v503
        %1375 = vmatmul.mubr.f32.gmra.mxu0 %v502
        %v1376 = vpop.f32.mrf.mxu0
        %v1377 = vadd.f32 %v1216, %v1376
        %v1378 = vpop.f32.mrf.mxu0
        %v1379 = vadd.f32 %v1218, %v1378
        %1380 = vmatprep.mubr.f32.mxu0 %v511
        %1381 = vmatmul.mubr.f32.gmra.mxu0 %v510
        %v1382 = vpop.f32.mrf.mxu0
        %v1383 = vadd.f32 %v1222, %v1382
        %v1384 = vpop.f32.mrf.mxu0
        %v1385 = vadd.f32 %v1224, %v1384
        %1386 = vmatprep.mubr.f32.mxu0 %v519
        %1387 = vmatmul.mubr.f32.gmra.mxu0 %v518
        %v1388 = vpop.f32.mrf.mxu0
        %v1389 = vadd.f32 %v1228, %v1388
        %v1390 = vpop.f32.mrf.mxu0
        %v1391 = vadd.f32 %v1230, %v1390
        %1392 = vmatprep.mubr.f32.mxu0 %v527
        %1393 = vmatmul.mubr.f32.gmra.mxu0 %v526
        %v1394 = vpop.f32.mrf.mxu0
        %v1395 = vadd.f32 %v1234, %v1394
        %v1396 = vpop.f32.mrf.mxu0
        %v1397 = vadd.f32 %v1236, %v1396
        %1398 = vmatprep.mubr.f32.mxu0 %v535
        %1399 = vmatmul.mubr.f32.gmra.mxu0 %v534
        %v1400 = vpop.f32.mrf.mxu0
        %v1401 = vadd.f32 %v1240, %v1400
        %v1402 = vpop.f32.mrf.mxu0
        %v1403 = vadd.f32 %v1242, %v1402
        %1404 = vdwg.mxu0
        %1405 = vmatprep.subr.mxu0 %v872
        %1406 = vmatpush1.msra.mxu0 %v871
        %1407 = vmatprep.subr.mxu0 %v869
        %1408 = vmatpush1.msra.mxu0 %v868
        %1409 = vmatprep.subr.mxu0 %v866
        %1410 = vmatpush1.msra.mxu0 %v865
        %1411 = vmatprep.subr.mxu0 %v863
        %1412 = vmatpush1.msra.mxu0 %v862
        %1413 = vmatprep.subr.mxu0 %v860
        %1414 = vmatpush1.msra.mxu0 %v859
        %1415 = vmatprep.subr.mxu0 %v857
        %1416 = vmatpush1.msra.mxu0 %v856
        %1417 = vmatprep.subr.mxu0 %v854
        %1418 = vmatpush1.msra.mxu0 %v853
        %1419 = vmatprep.subr.mxu0 %v851
        %1420 = vmatpush1.msra.mxu0 %v850
        %1421 = vmatprep.subr.mxu0 %v848
        %1422 = vmatpush1.msra.mxu0 %v847
        %1423 = vmatprep.subr.mxu0 %v845
        %1424 = vmatpush1.msra.mxu0 %v844
        %1425 = vmatprep.subr.mxu0 %v842
        %1426 = vmatpush1.msra.mxu0 %v841
        %1427 = vmatprep.subr.mxu0 %v839
        %1428 = vmatpush1.msra.mxu0 %v838
        %1429 = vmatprep.subr.mxu0 %v836
        %1430 = vmatpush1.msra.mxu0 %v835
        %1431 = vmatprep.subr.mxu0 %v833
        %1432 = vmatpush1.msra.mxu0 %v832
        %1433 = vmatprep.subr.mxu0 %v830
        %1434 = vmatpush1.msra.mxu0 %v829
        %1435 = vmatprep.subr.mxu0 %v827
        %1436 = vmatpush1.msra.mxu0 %v826
        %1437 = vmatprep.subr.mxu0 %v920
        %1438 = vmatpush2.msra.mxu0 %v919
        %1439 = vmatprep.subr.mxu0 %v917
        %1440 = vmatpush2.msra.mxu0 %v916
        %1441 = vmatprep.subr.mxu0 %v914
        %1442 = vmatpush2.msra.mxu0 %v913
        %1443 = vmatprep.subr.mxu0 %v911
        %1444 = vmatpush2.msra.mxu0 %v910
        %1445 = vmatprep.subr.mxu0 %v908
        %1446 = vmatpush2.msra.mxu0 %v907
        %1447 = vmatprep.subr.mxu0 %v905
        %1448 = vmatpush2.msra.mxu0 %v904
        %1449 = vmatprep.subr.mxu0 %v902
        %1450 = vmatpush2.msra.mxu0 %v901
        %1451 = vmatprep.subr.mxu0 %v899
        %1452 = vmatpush2.msra.mxu0 %v898
        %1453 = vmatprep.subr.mxu0 %v896
        %1454 = vmatpush2.msra.mxu0 %v895
        %1455 = vmatprep.subr.mxu0 %v893
        %1456 = vmatpush2.msra.mxu0 %v892
        %1457 = vmatprep.subr.mxu0 %v890
        %1458 = vmatpush2.msra.mxu0 %v889
        %1459 = vmatprep.subr.mxu0 %v887
        %1460 = vmatpush2.msra.mxu0 %v886
        %1461 = vmatprep.subr.mxu0 %v884
        %1462 = vmatpush2.msra.mxu0 %v883
        %1463 = vmatprep.subr.mxu0 %v881
        %1464 = vmatpush2.msra.mxu0 %v880
        %1465 = vmatprep.subr.mxu0 %v878
        %1466 = vmatpush2.msra.mxu0 %v877
        %1467 = vmatprep.subr.mxu0 %v875
        %1468 = vmatpush2.msra.mxu0 %v874
        %1469 = vmatprep.mubr.f32.mxu0 %v417
        %1470 = vmatmul.mubr.f32.gmra.mxu0 %v416
        %v1471 = vpop.f32.mrf.mxu0
        %v1472 = vadd.f32 %v1311, %v1471
        %v1473 = vpop.f32.mrf.mxu0
        %v1474 = vadd.f32 %v1313, %v1473
        %1475 = vmatprep.mubr.f32.mxu0 %v425
        %1476 = vmatmul.mubr.f32.gmra.mxu0 %v424
        %v1477 = vpop.f32.mrf.mxu0
        %v1478 = vadd.f32 %v1317, %v1477
        %v1479 = vpop.f32.mrf.mxu0
        %v1480 = vadd.f32 %v1319, %v1479
        %1481 = vmatprep.mubr.f32.mxu0 %v433
        %1482 = vmatmul.mubr.f32.gmra.mxu0 %v432
        %v1483 = vpop.f32.mrf.mxu0
        %v1484 = vadd.f32 %v1323, %v1483
        %v1485 = vpop.f32.mrf.mxu0
        %v1486 = vadd.f32 %v1325, %v1485
        %1487 = vmatprep.mubr.f32.mxu0 %v441
        %1488 = vmatmul.mubr.f32.gmra.mxu0 %v440
        %v1489 = vpop.f32.mrf.mxu0
        %v1490 = vadd.f32 %v1329, %v1489
        %v1491 = vpop.f32.mrf.mxu0
        %v1492 = vadd.f32 %v1331, %v1491
        %1493 = vmatprep.mubr.f32.mxu0 %v449
        %1494 = vmatmul.mubr.f32.gmra.mxu0 %v448
        %v1495 = vpop.f32.mrf.mxu0
        %v1496 = vadd.f32 %v1335, %v1495
        %v1497 = vpop.f32.mrf.mxu0
        %v1498 = vadd.f32 %v1337, %v1497
        %1499 = vmatprep.mubr.f32.mxu0 %v457
        %1500 = vmatmul.mubr.f32.gmra.mxu0 %v456
        %v1501 = vpop.f32.mrf.mxu0
        %v1502 = vadd.f32 %v1341, %v1501
        %v1503 = vpop.f32.mrf.mxu0
        %v1504 = vadd.f32 %v1343, %v1503
        %1505 = vmatprep.mubr.f32.mxu0 %v465
        %1506 = vmatmul.mubr.f32.gmra.mxu0 %v464
        %v1507 = vpop.f32.mrf.mxu0
        %v1508 = vadd.f32 %v1347, %v1507
        %v1509 = vpop.f32.mrf.mxu0
        %v1510 = vadd.f32 %v1349, %v1509
        %1511 = vmatprep.mubr.f32.mxu0 %v473
        %1512 = vmatmul.mubr.f32.gmra.mxu0 %v472
        %v1513 = vpop.f32.mrf.mxu0
        %v1514 = vadd.f32 %v1353, %v1513
        %v1515 = vpop.f32.mrf.mxu0
        %v1516 = vadd.f32 %v1355, %v1515
        %1517 = vmatprep.mubr.f32.mxu0 %v481
        %1518 = vmatmul.mubr.f32.gmra.mxu0 %v480
        %v1519 = vpop.f32.mrf.mxu0
        %v1520 = vadd.f32 %v1359, %v1519
        %v1521 = vpop.f32.mrf.mxu0
        %v1522 = vadd.f32 %v1361, %v1521
        %1523 = vmatprep.mubr.f32.mxu0 %v489
        %1524 = vmatmul.mubr.f32.gmra.mxu0 %v488
        %v1525 = vpop.f32.mrf.mxu0
        %v1526 = vadd.f32 %v1365, %v1525
        %v1527 = vpop.f32.mrf.mxu0
        %v1528 = vadd.f32 %v1367, %v1527
        %1529 = vmatprep.mubr.f32.mxu0 %v497
        %1530 = vmatmul.mubr.f32.gmra.mxu0 %v496
        %v1531 = vpop.f32.mrf.mxu0
        %v1532 = vadd.f32 %v1371, %v1531
        %v1533 = vpop.f32.mrf.mxu0
        %v1534 = vadd.f32 %v1373, %v1533
        %1535 = vmatprep.mubr.f32.mxu0 %v505
        %1536 = vmatmul.mubr.f32.gmra.mxu0 %v504
        %v1537 = vpop.f32.mrf.mxu0
        %v1538 = vadd.f32 %v1377, %v1537
        %v1539 = vpop.f32.mrf.mxu0
        %v1540 = vadd.f32 %v1379, %v1539
        %1541 = vmatprep.mubr.f32.mxu0 %v513
        %1542 = vmatmul.mubr.f32.gmra.mxu0 %v512
        %v1543 = vpop.f32.mrf.mxu0
        %v1544 = vadd.f32 %v1383, %v1543
        %v1545 = vpop.f32.mrf.mxu0
        %v1546 = vadd.f32 %v1385, %v1545
        %1547 = vmatprep.mubr.f32.mxu0 %v521
        %1548 = vmatmul.mubr.f32.gmra.mxu0 %v520
        %v1549 = vpop.f32.mrf.mxu0
        %v1550 = vadd.f32 %v1389, %v1549
        %v1551 = vpop.f32.mrf.mxu0
        %v1552 = vadd.f32 %v1391, %v1551
        %1553 = vmatprep.mubr.f32.mxu0 %v529
        %1554 = vmatmul.mubr.f32.gmra.mxu0 %v528
        %v1555 = vpop.f32.mrf.mxu0
        %v1556 = vadd.f32 %v1395, %v1555
        %v1557 = vpop.f32.mrf.mxu0
        %v1558 = vadd.f32 %v1397, %v1557
        %1559 = vmatprep.mubr.f32.mxu0 %v537
        %1560 = vmatmul.mubr.f32.gmra.mxu0 %v536
        %v1561 = vpop.f32.mrf.mxu0
        %v1562 = vadd.f32 %v1401, %v1561
        %v1563 = vpop.f32.mrf.mxu0
        %v1564 = vadd.f32 %v1403, %v1563
        %1565 = vdwg.mxu0
        %1566 = vmatprep.subr.mxu0 0.0
        %1567 = vmatpush1.msra.mxu0 %v585
        %1568 = vmatprep.subr.mxu0 0.0
        %1569 = vmatpush1.msra.mxu0 %v582
        %1570 = vmatprep.subr.mxu0 0.0
        %1571 = vmatpush1.msra.mxu0 %v579
        %1572 = vmatprep.subr.mxu0 0.0
        %1573 = vmatpush1.msra.mxu0 %v576
        %1574 = vmatprep.subr.mxu0 0.0
        %1575 = vmatpush1.msra.mxu0 %v573
        %1576 = vmatprep.subr.mxu0 0.0
        %1577 = vmatpush1.msra.mxu0 %v570
        %1578 = vmatprep.subr.mxu0 0.0
        %1579 = vmatpush1.msra.mxu0 %v567
        %1580 = vmatprep.subr.mxu0 0.0
        %1581 = vmatpush1.msra.mxu0 %v564
        %1582 = vmatprep.subr.mxu0 0.0
        %1583 = vmatpush1.msra.mxu0 %v561
        %1584 = vmatprep.subr.mxu0 0.0
        %1585 = vmatpush1.msra.mxu0 %v558
        %1586 = vmatprep.subr.mxu0 0.0
        %1587 = vmatpush1.msra.mxu0 %v555
        %1588 = vmatprep.subr.mxu0 0.0
        %1589 = vmatpush1.msra.mxu0 %v552
        %1590 = vmatprep.subr.mxu0 0.0
        %1591 = vmatpush1.msra.mxu0 %v549
        %1592 = vmatprep.subr.mxu0 0.0
        %1593 = vmatpush1.msra.mxu0 %v546
        %1594 = vmatprep.subr.mxu0 0.0
        %1595 = vmatpush1.msra.mxu0 %v543
        %1596 = vmatprep.subr.mxu0 0.0
        %1597 = vmatpush1.msra.mxu0 %v540
        %1598 = vmatprep.subr.mxu0 0.0
        %1599 = vmatpush2.msra.mxu0 %v633
        %1600 = vmatprep.subr.mxu0 0.0
        %1601 = vmatpush2.msra.mxu0 %v630
        %1602 = vmatprep.subr.mxu0 0.0
        %1603 = vmatpush2.msra.mxu0 %v627
        %1604 = vmatprep.subr.mxu0 0.0
        %1605 = vmatpush2.msra.mxu0 %v624
        %1606 = vmatprep.subr.mxu0 0.0
        %1607 = vmatpush2.msra.mxu0 %v621
        %1608 = vmatprep.subr.mxu0 0.0
        %1609 = vmatpush2.msra.mxu0 %v618
        %1610 = vmatprep.subr.mxu0 0.0
        %1611 = vmatpush2.msra.mxu0 %v615
        %1612 = vmatprep.subr.mxu0 0.0
        %1613 = vmatpush2.msra.mxu0 %v612
        %1614 = vmatprep.subr.mxu0 0.0
        %1615 = vmatpush2.msra.mxu0 %v609
        %1616 = vmatprep.subr.mxu0 0.0
        %1617 = vmatpush2.msra.mxu0 %v606
        %1618 = vmatprep.subr.mxu0 0.0
        %1619 = vmatpush2.msra.mxu0 %v603
        %1620 = vmatprep.subr.mxu0 0.0
        %1621 = vmatpush2.msra.mxu0 %v600
        %1622 = vmatprep.subr.mxu0 0.0
        %1623 = vmatpush2.msra.mxu0 %v597
        %1624 = vmatprep.subr.mxu0 0.0
        %1625 = vmatpush2.msra.mxu0 %v594
        %1626 = vmatprep.subr.mxu0 0.0
        %1627 = vmatpush2.msra.mxu0 %v591
        %1628 = vmatprep.subr.mxu0 0.0
        %1629 = vmatpush2.msra.mxu0 %v588
        %1630 = vmatprep.mubr.f32.mxu0 %v411
        %1631 = vmatmul.mubr.f32.gmra.mxu0 %v410
        %v1632 = vpop.f32.mrf.mxu0
        %v1633 = vadd.f32 0.0, %v1632
        %v1634 = vpop.f32.mrf.mxu0
        %1635 = vmatprep.mubr.f32.mxu0 %v419
        %1636 = vmatmul.mubr.f32.gmra.mxu0 %v418
        %v1637 = vpop.f32.mrf.mxu0
        %v1638 = vadd.f32 0.0, %v1637
        %v1639 = vpop.f32.mrf.mxu0
        %1640 = vmatprep.mubr.f32.mxu0 %v427
        %1641 = vmatmul.mubr.f32.gmra.mxu0 %v426
        %v1642 = vpop.f32.mrf.mxu0
        %v1643 = vadd.f32 0.0, %v1642
        %v1644 = vpop.f32.mrf.mxu0
        %1645 = vmatprep.mubr.f32.mxu0 %v435
        %1646 = vmatmul.mubr.f32.gmra.mxu0 %v434
        %v1647 = vpop.f32.mrf.mxu0
        %v1648 = vadd.f32 0.0, %v1647
        %v1649 = vpop.f32.mrf.mxu0
        %1650 = vmatprep.mubr.f32.mxu0 %v443
        %1651 = vmatmul.mubr.f32.gmra.mxu0 %v442
        %v1652 = vpop.f32.mrf.mxu0
        %v1653 = vadd.f32 0.0, %v1652
        %v1654 = vpop.f32.mrf.mxu0
        %1655 = vmatprep.mubr.f32.mxu0 %v451
        %1656 = vmatmul.mubr.f32.gmra.mxu0 %v450
        %v1657 = vpop.f32.mrf.mxu0
        %v1658 = vadd.f32 0.0, %v1657
        %v1659 = vpop.f32.mrf.mxu0
        %1660 = vmatprep.mubr.f32.mxu0 %v459
        %1661 = vmatmul.mubr.f32.gmra.mxu0 %v458
        %v1662 = vpop.f32.mrf.mxu0
        %v1663 = vadd.f32 0.0, %v1662
        %v1664 = vpop.f32.mrf.mxu0
        %1665 = vmatprep.mubr.f32.mxu0 %v467
        %1666 = vmatmul.mubr.f32.gmra.mxu0 %v466
        %v1667 = vpop.f32.mrf.mxu0
        %v1668 = vadd.f32 0.0, %v1667
        %v1669 = vpop.f32.mrf.mxu0
        %1670 = vmatprep.mubr.f32.mxu0 %v475
        %1671 = vmatmul.mubr.f32.gmra.mxu0 %v474
        %v1672 = vpop.f32.mrf.mxu0
        %v1673 = vadd.f32 0.0, %v1672
        %v1674 = vpop.f32.mrf.mxu0
        %1675 = vmatprep.mubr.f32.mxu0 %v483
        %1676 = vmatmul.mubr.f32.gmra.mxu0 %v482
        %v1677 = vpop.f32.mrf.mxu0
        %v1678 = vadd.f32 0.0, %v1677
        %v1679 = vpop.f32.mrf.mxu0
        %1680 = vmatprep.mubr.f32.mxu0 %v491
        %1681 = vmatmul.mubr.f32.gmra.mxu0 %v490
        %v1682 = vpop.f32.mrf.mxu0
        %v1683 = vadd.f32 0.0, %v1682
        %v1684 = vpop.f32.mrf.mxu0
        %1685 = vmatprep.mubr.f32.mxu0 %v499
        %1686 = vmatmul.mubr.f32.gmra.mxu0 %v498
        %v1687 = vpop.f32.mrf.mxu0
        %v1688 = vadd.f32 0.0, %v1687
        %v1689 = vpop.f32.mrf.mxu0
        %1690 = vmatprep.mubr.f32.mxu0 %v507
        %1691 = vmatmul.mubr.f32.gmra.mxu0 %v506
        %v1692 = vpop.f32.mrf.mxu0
        %v1693 = vadd.f32 0.0, %v1692
        %v1694 = vpop.f32.mrf.mxu0
        %1695 = vmatprep.mubr.f32.mxu0 %v515
        %1696 = vmatmul.mubr.f32.gmra.mxu0 %v514
        %v1697 = vpop.f32.mrf.mxu0
        %v1698 = vadd.f32 0.0, %v1697
        %v1699 = vpop.f32.mrf.mxu0
        %1700 = vmatprep.mubr.f32.mxu0 %v523
        %1701 = vmatmul.mubr.f32.gmra.mxu0 %v522
        %v1702 = vpop.f32.mrf.mxu0
        %v1703 = vadd.f32 0.0, %v1702
        %v1704 = vpop.f32.mrf.mxu0
        %1705 = vmatprep.mubr.f32.mxu0 %v531
        %1706 = vmatmul.mubr.f32.gmra.mxu0 %v530
        %v1707 = vpop.f32.mrf.mxu0
        %v1708 = vadd.f32 0.0, %v1707
        %v1709 = vpop.f32.mrf.mxu0
        %1710 = vdwg.mxu0
        %1711 = vmatprep.subr.mxu0 0.0
        %1712 = vmatpush1.msra.mxu0 %v681
        %1713 = vmatprep.subr.mxu0 0.0
        %1714 = vmatpush1.msra.mxu0 %v678
        %1715 = vmatprep.subr.mxu0 0.0
        %1716 = vmatpush1.msra.mxu0 %v675
        %1717 = vmatprep.subr.mxu0 0.0
        %1718 = vmatpush1.msra.mxu0 %v672
        %1719 = vmatprep.subr.mxu0 0.0
        %1720 = vmatpush1.msra.mxu0 %v669
        %1721 = vmatprep.subr.mxu0 0.0
        %1722 = vmatpush1.msra.mxu0 %v666
        %1723 = vmatprep.subr.mxu0 0.0
        %1724 = vmatpush1.msra.mxu0 %v663
        %1725 = vmatprep.subr.mxu0 0.0
        %1726 = vmatpush1.msra.mxu0 %v660
        %1727 = vmatprep.subr.mxu0 0.0
        %1728 = vmatpush1.msra.mxu0 %v657
        %1729 = vmatprep.subr.mxu0 0.0
        %1730 = vmatpush1.msra.mxu0 %v654
        %1731 = vmatprep.subr.mxu0 0.0
        %1732 = vmatpush1.msra.mxu0 %v651
        %1733 = vmatprep.subr.mxu0 0.0
        %1734 = vmatpush1.msra.mxu0 %v648
        %1735 = vmatprep.subr.mxu0 0.0
        %1736 = vmatpush1.msra.mxu0 %v645
        %1737 = vmatprep.subr.mxu0 0.0
        %1738 = vmatpush1.msra.mxu0 %v642
        %1739 = vmatprep.subr.mxu0 0.0
        %1740 = vmatpush1.msra.mxu0 %v639
        %1741 = vmatprep.subr.mxu0 0.0
        %1742 = vmatpush1.msra.mxu0 %v636
        %1743 = vmatprep.subr.mxu0 0.0
        %1744 = vmatpush2.msra.mxu0 %v729
        %1745 = vmatprep.subr.mxu0 0.0
        %1746 = vmatpush2.msra.mxu0 %v726
        %1747 = vmatprep.subr.mxu0 0.0
        %1748 = vmatpush2.msra.mxu0 %v723
        %1749 = vmatprep.subr.mxu0 0.0
        %1750 = vmatpush2.msra.mxu0 %v720
        %1751 = vmatprep.subr.mxu0 0.0
        %1752 = vmatpush2.msra.mxu0 %v717
        %1753 = vmatprep.subr.mxu0 0.0
        %1754 = vmatpush2.msra.mxu0 %v714
        %1755 = vmatprep.subr.mxu0 0.0
        %1756 = vmatpush2.msra.mxu0 %v711
        %1757 = vmatprep.subr.mxu0 0.0
        %1758 = vmatpush2.msra.mxu0 %v708
        %1759 = vmatprep.subr.mxu0 0.0
        %1760 = vmatpush2.msra.mxu0 %v705
        %1761 = vmatprep.subr.mxu0 0.0
        %1762 = vmatpush2.msra.mxu0 %v702
        %1763 = vmatprep.subr.mxu0 0.0
        %1764 = vmatpush2.msra.mxu0 %v699
        %1765 = vmatprep.subr.mxu0 0.0
        %1766 = vmatpush2.msra.mxu0 %v696
        %1767 = vmatprep.subr.mxu0 0.0
        %1768 = vmatpush2.msra.mxu0 %v693
        %1769 = vmatprep.subr.mxu0 0.0
        %1770 = vmatpush2.msra.mxu0 %v690
        %1771 = vmatprep.subr.mxu0 0.0
        %1772 = vmatpush2.msra.mxu0 %v687
        %1773 = vmatprep.subr.mxu0 0.0
        %1774 = vmatpush2.msra.mxu0 %v684
        %1775 = vmatprep.mubr.f32.mxu0 %v413
        %1776 = vmatmul.mubr.f32.gmra.mxu0 %v412
        %v1777 = vpop.f32.mrf.mxu0
        %v1778 = vadd.f32 %v1633, %v1777
        %v1779 = vpop.f32.mrf.mxu0
        %1780 = vmatprep.mubr.f32.mxu0 %v421
        %1781 = vmatmul.mubr.f32.gmra.mxu0 %v420
        %v1782 = vpop.f32.mrf.mxu0
        %v1783 = vadd.f32 %v1638, %v1782
        %v1784 = vpop.f32.mrf.mxu0
        %1785 = vmatprep.mubr.f32.mxu0 %v429
        %1786 = vmatmul.mubr.f32.gmra.mxu0 %v428
        %v1787 = vpop.f32.mrf.mxu0
        %v1788 = vadd.f32 %v1643, %v1787
        %v1789 = vpop.f32.mrf.mxu0
        %1790 = vmatprep.mubr.f32.mxu0 %v437
        %1791 = vmatmul.mubr.f32.gmra.mxu0 %v436
        %v1792 = vpop.f32.mrf.mxu0
        %v1793 = vadd.f32 %v1648, %v1792
        %v1794 = vpop.f32.mrf.mxu0
        %1795 = vmatprep.mubr.f32.mxu0 %v445
        %1796 = vmatmul.mubr.f32.gmra.mxu0 %v444
        %v1797 = vpop.f32.mrf.mxu0
        %v1798 = vadd.f32 %v1653, %v1797
        %v1799 = vpop.f32.mrf.mxu0
        %1800 = vmatprep.mubr.f32.mxu0 %v453
        %1801 = vmatmul.mubr.f32.gmra.mxu0 %v452
        %v1802 = vpop.f32.mrf.mxu0
        %v1803 = vadd.f32 %v1658, %v1802
        %v1804 = vpop.f32.mrf.mxu0
        %1805 = vmatprep.mubr.f32.mxu0 %v461
        %1806 = vmatmul.mubr.f32.gmra.mxu0 %v460
        %v1807 = vpop.f32.mrf.mxu0
        %v1808 = vadd.f32 %v1663, %v1807
        %v1809 = vpop.f32.mrf.mxu0
        %1810 = vmatprep.mubr.f32.mxu0 %v469
        %1811 = vmatmul.mubr.f32.gmra.mxu0 %v468
        %v1812 = vpop.f32.mrf.mxu0
        %v1813 = vadd.f32 %v1668, %v1812
        %v1814 = vpop.f32.mrf.mxu0
        %1815 = vmatprep.mubr.f32.mxu0 %v477
        %1816 = vmatmul.mubr.f32.gmra.mxu0 %v476
        %v1817 = vpop.f32.mrf.mxu0
        %v1818 = vadd.f32 %v1673, %v1817
        %v1819 = vpop.f32.mrf.mxu0
        %1820 = vmatprep.mubr.f32.mxu0 %v485
        %1821 = vmatmul.mubr.f32.gmra.mxu0 %v484
        %v1822 = vpop.f32.mrf.mxu0
        %v1823 = vadd.f32 %v1678, %v1822
        %v1824 = vpop.f32.mrf.mxu0
        %1825 = vmatprep.mubr.f32.mxu0 %v493
        %1826 = vmatmul.mubr.f32.gmra.mxu0 %v492
        %v1827 = vpop.f32.mrf.mxu0
        %v1828 = vadd.f32 %v1683, %v1827
        %v1829 = vpop.f32.mrf.mxu0
        %1830 = vmatprep.mubr.f32.mxu0 %v501
        %1831 = vmatmul.mubr.f32.gmra.mxu0 %v500
        %v1832 = vpop.f32.mrf.mxu0
        %v1833 = vadd.f32 %v1688, %v1832
        %v1834 = vpop.f32.mrf.mxu0
        %1835 = vmatprep.mubr.f32.mxu0 %v509
        %1836 = vmatmul.mubr.f32.gmra.mxu0 %v508
        %v1837 = vpop.f32.mrf.mxu0
        %v1838 = vadd.f32 %v1693, %v1837
        %v1839 = vpop.f32.mrf.mxu0
        %1840 = vmatprep.mubr.f32.mxu0 %v517
        %1841 = vmatmul.mubr.f32.gmra.mxu0 %v516
        %v1842 = vpop.f32.mrf.mxu0
        %v1843 = vadd.f32 %v1698, %v1842
        %v1844 = vpop.f32.mrf.mxu0
        %1845 = vmatprep.mubr.f32.mxu0 %v525
        %1846 = vmatmul.mubr.f32.gmra.mxu0 %v524
        %v1847 = vpop.f32.mrf.mxu0
        %v1848 = vadd.f32 %v1703, %v1847
        %v1849 = vpop.f32.mrf.mxu0
        %1850 = vmatprep.mubr.f32.mxu0 %v533
        %1851 = vmatmul.mubr.f32.gmra.mxu0 %v532
        %v1852 = vpop.f32.mrf.mxu0
        %v1853 = vadd.f32 %v1708, %v1852
        %v1854 = vpop.f32.mrf.mxu0
        %1855 = vdwg.mxu0
        %1856 = vmatprep.subr.mxu0 0.0
        %1857 = vmatpush1.msra.mxu0 %v777
        %1858 = vmatprep.subr.mxu0 0.0
        %1859 = vmatpush1.msra.mxu0 %v774
        %1860 = vmatprep.subr.mxu0 0.0
        %1861 = vmatpush1.msra.mxu0 %v771
        %1862 = vmatprep.subr.mxu0 0.0
        %1863 = vmatpush1.msra.mxu0 %v768
        %1864 = vmatprep.subr.mxu0 0.0
        %1865 = vmatpush1.msra.mxu0 %v765
        %1866 = vmatprep.subr.mxu0 0.0
        %1867 = vmatpush1.msra.mxu0 %v762
        %1868 = vmatprep.subr.mxu0 0.0
        %1869 = vmatpush1.msra.mxu0 %v759
        %1870 = vmatprep.subr.mxu0 0.0
        %1871 = vmatpush1.msra.mxu0 %v756
        %1872 = vmatprep.subr.mxu0 0.0
        %1873 = vmatpush1.msra.mxu0 %v753
        %1874 = vmatprep.subr.mxu0 0.0
        %1875 = vmatpush1.msra.mxu0 %v750
        %1876 = vmatprep.subr.mxu0 0.0
        %1877 = vmatpush1.msra.mxu0 %v747
        %1878 = vmatprep.subr.mxu0 0.0
        %1879 = vmatpush1.msra.mxu0 %v744
        %1880 = vmatprep.subr.mxu0 0.0
        %1881 = vmatpush1.msra.mxu0 %v741
        %1882 = vmatprep.subr.mxu0 0.0
        %1883 = vmatpush1.msra.mxu0 %v738
        %1884 = vmatprep.subr.mxu0 0.0
        %1885 = vmatpush1.msra.mxu0 %v735
        %1886 = vmatprep.subr.mxu0 0.0
        %1887 = vmatpush1.msra.mxu0 %v732
        %1888 = vmatprep.subr.mxu0 0.0
        %1889 = vmatpush2.msra.mxu0 %v825
        %1890 = vmatprep.subr.mxu0 0.0
        %1891 = vmatpush2.msra.mxu0 %v822
        %1892 = vmatprep.subr.mxu0 0.0
        %1893 = vmatpush2.msra.mxu0 %v819
        %1894 = vmatprep.subr.mxu0 0.0
        %1895 = vmatpush2.msra.mxu0 %v816
        %1896 = vmatprep.subr.mxu0 0.0
        %1897 = vmatpush2.msra.mxu0 %v813
        %1898 = vmatprep.subr.mxu0 0.0
        %1899 = vmatpush2.msra.mxu0 %v810
        %1900 = vmatprep.subr.mxu0 0.0
        %1901 = vmatpush2.msra.mxu0 %v807
        %1902 = vmatprep.subr.mxu0 0.0
        %1903 = vmatpush2.msra.mxu0 %v804
        %1904 = vmatprep.subr.mxu0 0.0
        %1905 = vmatpush2.msra.mxu0 %v801
        %1906 = vmatprep.subr.mxu0 0.0
        %1907 = vmatpush2.msra.mxu0 %v798
        %1908 = vmatprep.subr.mxu0 0.0
        %1909 = vmatpush2.msra.mxu0 %v795
        %1910 = vmatprep.subr.mxu0 0.0
        %1911 = vmatpush2.msra.mxu0 %v792
        %1912 = vmatprep.subr.mxu0 0.0
        %1913 = vmatpush2.msra.mxu0 %v789
        %1914 = vmatprep.subr.mxu0 0.0
        %1915 = vmatpush2.msra.mxu0 %v786
        %1916 = vmatprep.subr.mxu0 0.0
        %1917 = vmatpush2.msra.mxu0 %v783
        %1918 = vmatprep.subr.mxu0 0.0
        %1919 = vmatpush2.msra.mxu0 %v780
        %1920 = vmatprep.mubr.f32.mxu0 %v415
        %1921 = vmatmul.mubr.f32.gmra.mxu0 %v414
        %v1922 = vpop.f32.mrf.mxu0
        %v1923 = vadd.f32 %v1778, %v1922
        %v1924 = vpop.f32.mrf.mxu0
        %1925 = vmatprep.mubr.f32.mxu0 %v423
        %1926 = vmatmul.mubr.f32.gmra.mxu0 %v422
        %v1927 = vpop.f32.mrf.mxu0
        %v1928 = vadd.f32 %v1783, %v1927
        %v1929 = vpop.f32.mrf.mxu0
        %1930 = vmatprep.mubr.f32.mxu0 %v431
        %1931 = vmatmul.mubr.f32.gmra.mxu0 %v430
        %v1932 = vpop.f32.mrf.mxu0
        %v1933 = vadd.f32 %v1788, %v1932
        %v1934 = vpop.f32.mrf.mxu0
        %1935 = vmatprep.mubr.f32.mxu0 %v439
        %1936 = vmatmul.mubr.f32.gmra.mxu0 %v438
        %v1937 = vpop.f32.mrf.mxu0
        %v1938 = vadd.f32 %v1793, %v1937
        %v1939 = vpop.f32.mrf.mxu0
        %1940 = vmatprep.mubr.f32.mxu0 %v447
        %1941 = vmatmul.mubr.f32.gmra.mxu0 %v446
        %v1942 = vpop.f32.mrf.mxu0
        %v1943 = vadd.f32 %v1798, %v1942
        %v1944 = vpop.f32.mrf.mxu0
        %1945 = vmatprep.mubr.f32.mxu0 %v455
        %1946 = vmatmul.mubr.f32.gmra.mxu0 %v454
        %v1947 = vpop.f32.mrf.mxu0
        %v1948 = vadd.f32 %v1803, %v1947
        %v1949 = vpop.f32.mrf.mxu0
        %1950 = vmatprep.mubr.f32.mxu0 %v463
        %1951 = vmatmul.mubr.f32.gmra.mxu0 %v462
        %v1952 = vpop.f32.mrf.mxu0
        %v1953 = vadd.f32 %v1808, %v1952
        %v1954 = vpop.f32.mrf.mxu0
        %1955 = vmatprep.mubr.f32.mxu0 %v471
        %1956 = vmatmul.mubr.f32.gmra.mxu0 %v470
        %v1957 = vpop.f32.mrf.mxu0
        %v1958 = vadd.f32 %v1813, %v1957
        %v1959 = vpop.f32.mrf.mxu0
        %1960 = vmatprep.mubr.f32.mxu0 %v479
        %1961 = vmatmul.mubr.f32.gmra.mxu0 %v478
        %v1962 = vpop.f32.mrf.mxu0
        %v1963 = vadd.f32 %v1818, %v1962
        %v1964 = vpop.f32.mrf.mxu0
        %1965 = vmatprep.mubr.f32.mxu0 %v487
        %1966 = vmatmul.mubr.f32.gmra.mxu0 %v486
        %v1967 = vpop.f32.mrf.mxu0
        %v1968 = vadd.f32 %v1823, %v1967
        %v1969 = vpop.f32.mrf.mxu0
        %1970 = vmatprep.mubr.f32.mxu0 %v495
        %1971 = vmatmul.mubr.f32.gmra.mxu0 %v494
        %v1972 = vpop.f32.mrf.mxu0
        %v1973 = vadd.f32 %v1828, %v1972
        %v1974 = vpop.f32.mrf.mxu0
        %1975 = vmatprep.mubr.f32.mxu0 %v503
        %1976 = vmatmul.mubr.f32.gmra.mxu0 %v502
        %v1977 = vpop.f32.mrf.mxu0
        %v1978 = vadd.f32 %v1833, %v1977
        %v1979 = vpop.f32.mrf.mxu0
        %1980 = vmatprep.mubr.f32.mxu0 %v511
        %1981 = vmatmul.mubr.f32.gmra.mxu0 %v510
        %v1982 = vpop.f32.mrf.mxu0
        %v1983 = vadd.f32 %v1838, %v1982
        %v1984 = vpop.f32.mrf.mxu0
        %1985 = vmatprep.mubr.f32.mxu0 %v519
        %1986 = vmatmul.mubr.f32.gmra.mxu0 %v518
        %v1987 = vpop.f32.mrf.mxu0
        %v1988 = vadd.f32 %v1843, %v1987
        %v1989 = vpop.f32.mrf.mxu0
        %1990 = vmatprep.mubr.f32.mxu0 %v527
        %1991 = vmatmul.mubr.f32.gmra.mxu0 %v526
        %v1992 = vpop.f32.mrf.mxu0
        %v1993 = vadd.f32 %v1848, %v1992
        %v1994 = vpop.f32.mrf.mxu0
        %1995 = vmatprep.mubr.f32.mxu0 %v535
        %1996 = vmatmul.mubr.f32.gmra.mxu0 %v534
        %v1997 = vpop.f32.mrf.mxu0
        %v1998 = vadd.f32 %v1853, %v1997
        %v1999 = vpop.f32.mrf.mxu0
        %2000 = vdwg.mxu0
        %2001 = vmatprep.subr.mxu0 0.0
        %2002 = vmatpush1.msra.mxu0 %v873
        %2003 = vmatprep.subr.mxu0 0.0
        %2004 = vmatpush1.msra.mxu0 %v870
        %2005 = vmatprep.subr.mxu0 0.0
        %2006 = vmatpush1.msra.mxu0 %v867
        %2007 = vmatprep.subr.mxu0 0.0
        %2008 = vmatpush1.msra.mxu0 %v864
        %2009 = vmatprep.subr.mxu0 0.0
        %2010 = vmatpush1.msra.mxu0 %v861
        %2011 = vmatprep.subr.mxu0 0.0
        %2012 = vmatpush1.msra.mxu0 %v858
        %2013 = vmatprep.subr.mxu0 0.0
        %2014 = vmatpush1.msra.mxu0 %v855
        %2015 = vmatprep.subr.mxu0 0.0
        %2016 = vmatpush1.msra.mxu0 %v852
        %2017 = vmatprep.subr.mxu0 0.0
        %2018 = vmatpush1.msra.mxu0 %v849
        %2019 = vmatprep.subr.mxu0 0.0
        %2020 = vmatpush1.msra.mxu0 %v846
        %2021 = vmatprep.subr.mxu0 0.0
        %2022 = vmatpush1.msra.mxu0 %v843
        %2023 = vmatprep.subr.mxu0 0.0
        %2024 = vmatpush1.msra.mxu0 %v840
        %2025 = vmatprep.subr.mxu0 0.0
        %2026 = vmatpush1.msra.mxu0 %v837
        %2027 = vmatprep.subr.mxu0 0.0
        %2028 = vmatpush1.msra.mxu0 %v834
        %2029 = vmatprep.subr.mxu0 0.0
        %2030 = vmatpush1.msra.mxu0 %v831
        %2031 = vmatprep.subr.mxu0 0.0
        %2032 = vmatpush1.msra.mxu0 %v828
        %2033 = vmatprep.subr.mxu0 0.0
        %2034 = vmatpush2.msra.mxu0 %v921
        %2035 = vmatprep.subr.mxu0 0.0
        %2036 = vmatpush2.msra.mxu0 %v918
        %2037 = vmatprep.subr.mxu0 0.0
        %2038 = vmatpush2.msra.mxu0 %v915
        %2039 = vmatprep.subr.mxu0 0.0
        %2040 = vmatpush2.msra.mxu0 %v912
        %2041 = vmatprep.subr.mxu0 0.0
        %2042 = vmatpush2.msra.mxu0 %v909
        %2043 = vmatprep.subr.mxu0 0.0
        %2044 = vmatpush2.msra.mxu0 %v906
        %2045 = vmatprep.subr.mxu0 0.0
        %2046 = vmatpush2.msra.mxu0 %v903
        %2047 = vmatprep.subr.mxu0 0.0
        %2048 = vmatpush2.msra.mxu0 %v900
        %2049 = vmatprep.subr.mxu0 0.0
        %2050 = vmatpush2.msra.mxu0 %v897
        %2051 = vmatprep.subr.mxu0 0.0
        %2052 = vmatpush2.msra.mxu0 %v894
        %2053 = vmatprep.subr.mxu0 0.0
        %2054 = vmatpush2.msra.mxu0 %v891
        %2055 = vmatprep.subr.mxu0 0.0
        %2056 = vmatpush2.msra.mxu0 %v888
        %2057 = vmatprep.subr.mxu0 0.0
        %2058 = vmatpush2.msra.mxu0 %v885
        %2059 = vmatprep.subr.mxu0 0.0
        %2060 = vmatpush2.msra.mxu0 %v882
        %2061 = vmatprep.subr.mxu0 0.0
        %2062 = vmatpush2.msra.mxu0 %v879
        %2063 = vmatprep.subr.mxu0 0.0
        %2064 = vmatpush2.msra.mxu0 %v876
        %2065 = vmatprep.mubr.f32.mxu0 %v417
        %2066 = vmatmul.mubr.f32.gmra.mxu0 %v416
        %v2067 = vpop.f32.mrf.mxu0
        %v2068 = vadd.f32 %v1923, %v2067
        %v2069 = vpop.f32.mrf.mxu0
        %2070 = vmatprep.mubr.f32.mxu0 %v425
        %2071 = vmatmul.mubr.f32.gmra.mxu0 %v424
        %v2072 = vpop.f32.mrf.mxu0
        %v2073 = vadd.f32 %v1928, %v2072
        %v2074 = vpop.f32.mrf.mxu0
        %2075 = vmatprep.mubr.f32.mxu0 %v433
        %2076 = vmatmul.mubr.f32.gmra.mxu0 %v432
        %v2077 = vpop.f32.mrf.mxu0
        %v2078 = vadd.f32 %v1933, %v2077
        %v2079 = vpop.f32.mrf.mxu0
        %2080 = vmatprep.mubr.f32.mxu0 %v441
        %2081 = vmatmul.mubr.f32.gmra.mxu0 %v440
        %v2082 = vpop.f32.mrf.mxu0
        %v2083 = vadd.f32 %v1938, %v2082
        %v2084 = vpop.f32.mrf.mxu0
        %2085 = vmatprep.mubr.f32.mxu0 %v449
        %2086 = vmatmul.mubr.f32.gmra.mxu0 %v448
        %v2087 = vpop.f32.mrf.mxu0
        %v2088 = vadd.f32 %v1943, %v2087
        %v2089 = vpop.f32.mrf.mxu0
        %2090 = vmatprep.mubr.f32.mxu0 %v457
        %2091 = vmatmul.mubr.f32.gmra.mxu0 %v456
        %v2092 = vpop.f32.mrf.mxu0
        %v2093 = vadd.f32 %v1948, %v2092
        %v2094 = vpop.f32.mrf.mxu0
        %2095 = vmatprep.mubr.f32.mxu0 %v465
        %2096 = vmatmul.mubr.f32.gmra.mxu0 %v464
        %v2097 = vpop.f32.mrf.mxu0
        %v2098 = vadd.f32 %v1953, %v2097
        %v2099 = vpop.f32.mrf.mxu0
        %2100 = vmatprep.mubr.f32.mxu0 %v473
        %2101 = vmatmul.mubr.f32.gmra.mxu0 %v472
        %v2102 = vpop.f32.mrf.mxu0
        %v2103 = vadd.f32 %v1958, %v2102
        %v2104 = vpop.f32.mrf.mxu0
        %2105 = vmatprep.mubr.f32.mxu0 %v481
        %2106 = vmatmul.mubr.f32.gmra.mxu0 %v480
        %v2107 = vpop.f32.mrf.mxu0
        %v2108 = vadd.f32 %v1963, %v2107
        %v2109 = vpop.f32.mrf.mxu0
        %2110 = vmatprep.mubr.f32.mxu0 %v489
        %2111 = vmatmul.mubr.f32.gmra.mxu0 %v488
        %v2112 = vpop.f32.mrf.mxu0
        %v2113 = vadd.f32 %v1968, %v2112
        %v2114 = vpop.f32.mrf.mxu0
        %2115 = vmatprep.mubr.f32.mxu0 %v497
        %2116 = vmatmul.mubr.f32.gmra.mxu0 %v496
        %v2117 = vpop.f32.mrf.mxu0
        %v2118 = vadd.f32 %v1973, %v2117
        %v2119 = vpop.f32.mrf.mxu0
        %2120 = vmatprep.mubr.f32.mxu0 %v505
        %2121 = vmatmul.mubr.f32.gmra.mxu0 %v504
        %v2122 = vpop.f32.mrf.mxu0
        %v2123 = vadd.f32 %v1978, %v2122
        %v2124 = vpop.f32.mrf.mxu0
        %2125 = vmatprep.mubr.f32.mxu0 %v513
        %2126 = vmatmul.mubr.f32.gmra.mxu0 %v512
        %v2127 = vpop.f32.mrf.mxu0
        %v2128 = vadd.f32 %v1983, %v2127
        %v2129 = vpop.f32.mrf.mxu0
        %2130 = vmatprep.mubr.f32.mxu0 %v521
        %2131 = vmatmul.mubr.f32.gmra.mxu0 %v520
        %v2132 = vpop.f32.mrf.mxu0
        %v2133 = vadd.f32 %v1988, %v2132
        %v2134 = vpop.f32.mrf.mxu0
        %2135 = vmatprep.mubr.f32.mxu0 %v529
        %2136 = vmatmul.mubr.f32.gmra.mxu0 %v528
        %v2137 = vpop.f32.mrf.mxu0
        %v2138 = vadd.f32 %v1993, %v2137
        %v2139 = vpop.f32.mrf.mxu0
        %2140 = vmatprep.mubr.f32.mxu0 %v537
        %2141 = vmatmul.mubr.f32.gmra.mxu0 %v536
        %v2142 = vpop.f32.mrf.mxu0
        %v2143 = vadd.f32 %v1998, %v2142
        %v2144 = vpop.f32.mrf.mxu0
        %2145 = vdwg.mxu0
        %v2146 = vadd.f32 %v362, %v1472
        %v2147 = vadd.f32 %v363, %v1474
        %v2148 = vadd.f32 %v364, %v2068
        %v2149 = vadd.f32 %v365, %v1478
        %v2150 = vadd.f32 %v366, %v1480
        %v2151 = vadd.f32 %v367, %v2073
        %v2152 = vadd.f32 %v368, %v1484
        %v2153 = vadd.f32 %v369, %v1486
        %v2154 = vadd.f32 %v370, %v2078
        %v2155 = vadd.f32 %v371, %v1490
        %v2156 = vadd.f32 %v372, %v1492
        %v2157 = vadd.f32 %v373, %v2083
        %v2158 = vadd.f32 %v374, %v1496
        %v2159 = vadd.f32 %v375, %v1498
        %v2160 = vadd.f32 %v376, %v2088
        %v2161 = vadd.f32 %v377, %v1502
        %v2162 = vadd.f32 %v378, %v1504
        %v2163 = vadd.f32 %v379, %v2093
        %v2164 = vadd.f32 %v380, %v1508
        %v2165 = vadd.f32 %v381, %v1510
        %v2166 = vadd.f32 %v382, %v2098
        %v2167 = vadd.f32 %v383, %v1514
        %v2168 = vadd.f32 %v384, %v1516
        %v2169 = vadd.f32 %v385, %v2103
        %v2170 = vadd.f32 %v386, %v1520
        %v2171 = vadd.f32 %v387, %v1522
        %v2172 = vadd.f32 %v388, %v2108
        %v2173 = vadd.f32 %v389, %v1526
        %v2174 = vadd.f32 %v390, %v1528
        %v2175 = vadd.f32 %v391, %v2113
        %v2176 = vadd.f32 %v392, %v1532
        %v2177 = vadd.f32 %v393, %v1534
        %v2178 = vadd.f32 %v394, %v2118
        %v2179 = vadd.f32 %v395, %v1538
        %v2180 = vadd.f32 %v396, %v1540
        %v2181 = vadd.f32 %v397, %v2123
        %v2182 = vadd.f32 %v398, %v1544
        %v2183 = vadd.f32 %v399, %v1546
        %v2184 = vadd.f32 %v400, %v2128
        %v2185 = vadd.f32 %v401, %v1550
        %v2186 = vadd.f32 %v402, %v1552
        %v2187 = vadd.f32 %v403, %v2133
        %v2188 = vadd.f32 %v404, %v1556
        %v2189 = vadd.f32 %v405, %v1558
        %v2190 = vadd.f32 %v406, %v2138
        %v2191 = vadd.f32 %v407, %v1562
        %v2192 = vadd.f32 %v408, %v1564
        %v2193 = vadd.f32 %v409, %v2143
        %2194 = vst [vmem:[%s301] sm:$0xff] %v2146
        %2195 = vst [vmem:[%s301 + $0x8] sm:$0xff] %v2147
        %2196 = vst [vmem:[%s301 + $0x10] sm:$0xff] %v2148
        %2197 = vst [vmem:[%s301 + $0x18] sm:$0xff] %v2149
        %2198 = vst [vmem:[%s301 + $0x20] sm:$0xff] %v2150
        %2199 = vst [vmem:[%s301 + $0x28] sm:$0xff] %v2151
        %2200 = vst [vmem:[%s301 + $0x30] sm:$0xff] %v2152
        %2201 = vst [vmem:[%s301 + $0x38] sm:$0xff] %v2153
        %2202 = vst [vmem:[%s301 + $0x40] sm:$0xff] %v2154
        %2203 = vst [vmem:[%s301 + $0x48] sm:$0xff] %v2155
        %2204 = vst [vmem:[%s301 + $0x50] sm:$0xff] %v2156
        %2205 = vst [vmem:[%s301 + $0x58] sm:$0xff] %v2157
        %2206 = vst [vmem:[%s301 + $0x60] sm:$0xff] %v2158
        %2207 = vst [vmem:[%s301 + $0x68] sm:$0xff] %v2159
        %2208 = vst [vmem:[%s301 + $0x70] sm:$0xff] %v2160
        %2209 = vst [vmem:[%s301 + $0x78] sm:$0xff] %v2161
        %2210 = vst [vmem:[%s301 + $0x80] sm:$0xff] %v2162
        %2211 = vst [vmem:[%s301 + $0x88] sm:$0xff] %v2163
        %2212 = vst [vmem:[%s301 + $0x90] sm:$0xff] %v2164
        %2213 = vst [vmem:[%s301 + $0x98] sm:$0xff] %v2165
        %2214 = vst [vmem:[%s301 + $0xa0] sm:$0xff] %v2166
        %2215 = vst [vmem:[%s301 + $0xa8] sm:$0xff] %v2167
        %2216 = vst [vmem:[%s301 + $0xb0] sm:$0xff] %v2168
        %2217 = vst [vmem:[%s301 + $0xb8] sm:$0xff] %v2169
        %2218 = vst [vmem:[%s301 + $0xc0] sm:$0xff] %v2170
        %2219 = vst [vmem:[%s301 + $0xc8] sm:$0xff] %v2171
        %2220 = vst [vmem:[%s301 + $0xd0] sm:$0xff] %v2172
        %2221 = vst [vmem:[%s301 + $0xd8] sm:$0xff] %v2173
        %2222 = vst [vmem:[%s301 + $0xe0] sm:$0xff] %v2174
        %2223 = vst [vmem:[%s301 + $0xe8] sm:$0xff] %v2175
        %2224 = vst [vmem:[%s301 + $0xf0] sm:$0xff] %v2176
        %2225 = vst [vmem:[%s301 + $0xf8] sm:$0xff] %v2177
        %2226 = vst [vmem:[%s301 + $0x100] sm:$0xff] %v2178
        %2227 = vst [vmem:[%s301 + $0x108] sm:$0xff] %v2179
        %2228 = vst [vmem:[%s301 + $0x110] sm:$0xff] %v2180
        %2229 = vst [vmem:[%s301 + $0x118] sm:$0xff] %v2181
        %2230 = vst [vmem:[%s301 + $0x120] sm:$0xff] %v2182
        %2231 = vst [vmem:[%s301 + $0x128] sm:$0xff] %v2183
        %2232 = vst [vmem:[%s301 + $0x130] sm:$0xff] %v2184
        %2233 = vst [vmem:[%s301 + $0x138] sm:$0xff] %v2185
        %2234 = vst [vmem:[%s301 + $0x140] sm:$0xff] %v2186
        %2235 = vst [vmem:[%s301 + $0x148] sm:$0xff] %v2187
        %2236 = vst [vmem:[%s301 + $0x150] sm:$0xff] %v2188
        %2237 = vst [vmem:[%s301 + $0x158] sm:$0xff] %v2189
        %2238 = vst [vmem:[%s301 + $0x160] sm:$0xff] %v2190
        %2239 = vst [vmem:[%s301 + $0x168] sm:$0xff] %v2191
        %2240 = vst [vmem:[%s301 + $0x170] sm:$0xff] %v2192
        %2241 = vst [vmem:[%s301 + $0x178] sm:$0xff] %v2193
        %p2242 = scmp.eq.s32.totalorder %s30, 1
        // Predicated region
        $region49: #{tpu_custom_call.1} parent=31 // pred_check
          %p2243 = pneg %p2242
        $region50: #{tpu_custom_call.1} parent=31 // pred_check_branch
          %2245 = sbr.rel (%p2243) target = $region52
        $region51: #{tpu_custom_call.1} parent=31 // pred_region
          %v2246 = vld [vmem:[%s251] sm:$0xff]
          %v2247 = vld [vmem:[%s251 + $0x8] sm:$0xff]
          %v2248 = vld [vmem:[%s251 + $0x10] sm:$0xff]
          %v2249 = vld [vmem:[%s251 + $0x18] sm:$0xff]
          %v2250 = vld [vmem:[%s251 + $0x20] sm:$0xff]
          %v2251 = vld [vmem:[%s251 + $0x28] sm:$0xff]
          %v2252 = vld [vmem:[%s251 + $0x30] sm:$0xff]
          %v2253 = vld [vmem:[%s251 + $0x38] sm:$0xff]
          %v2254 = vld [vmem:[%s251 + $0x40] sm:$0xff]
          %v2255 = vld [vmem:[%s251 + $0x48] sm:$0xff]
          %v2256 = vld [vmem:[%s251 + $0x50] sm:$0xff]
          %v2257 = vld [vmem:[%s251 + $0x58] sm:$0xff]
          %v2258 = vld [vmem:[%s251 + $0x60] sm:$0xff]
          %v2259 = vld [vmem:[%s251 + $0x68] sm:$0xff]
          %v2260 = vld [vmem:[%s251 + $0x70] sm:$0xff]
          %v2261 = vld [vmem:[%s251 + $0x78] sm:$0xff]
          %v2262 = vld [vmem:[%s251 + $0x80] sm:$0xff]
          %v2263 = vld [vmem:[%s251 + $0x88] sm:$0xff]
          %v2264 = vld [vmem:[%s251 + $0x90] sm:$0xff]
          %v2265 = vld [vmem:[%s251 + $0x98] sm:$0xff]
          %v2266 = vld [vmem:[%s251 + $0xa0] sm:$0xff]
          %v2267 = vld [vmem:[%s251 + $0xa8] sm:$0xff]
          %v2268 = vld [vmem:[%s251 + $0xb0] sm:$0xff]
          %v2269 = vld [vmem:[%s251 + $0xb8] sm:$0xff]
          %v2270 = vld [vmem:[%s251 + $0xc0] sm:$0xff]
          %v2271 = vld [vmem:[%s251 + $0xc8] sm:$0xff]
          %v2272 = vld [vmem:[%s251 + $0xd0] sm:$0xff]
          %v2273 = vld [vmem:[%s251 + $0xd8] sm:$0xff]
          %v2274 = vld [vmem:[%s251 + $0xe0] sm:$0xff]
          %v2275 = vld [vmem:[%s251 + $0xe8] sm:$0xff]
          %v2276 = vld [vmem:[%s251 + $0xf0] sm:$0xff]
          %v2277 = vld [vmem:[%s251 + $0xf8] sm:$0xff]
          %v2278 = vld [vmem:[%s251 + $0x100] sm:$0xff]
          %v2279 = vld [vmem:[%s251 + $0x108] sm:$0xff]
          %v2280 = vld [vmem:[%s251 + $0x110] sm:$0xff]
          %v2281 = vld [vmem:[%s251 + $0x118] sm:$0xff]
          %v2282 = vld [vmem:[%s251 + $0x120] sm:$0xff]
          %v2283 = vld [vmem:[%s251 + $0x128] sm:$0xff]
          %v2284 = vld [vmem:[%s251 + $0x130] sm:$0xff]
          %v2285 = vld [vmem:[%s251 + $0x138] sm:$0xff]
          %v2286 = vld [vmem:[%s251 + $0x140] sm:$0xff]
          %v2287 = vld [vmem:[%s251 + $0x148] sm:$0xff]
          %v2288 = vld [vmem:[%s251 + $0x150] sm:$0xff]
          %v2289 = vld [vmem:[%s251 + $0x158] sm:$0xff]
          %v2290 = vld [vmem:[%s251 + $0x160] sm:$0xff]
          %v2291 = vld [vmem:[%s251 + $0x168] sm:$0xff]
          %v2292 = vld [vmem:[%s251 + $0x170] sm:$0xff]
          %v2293 = vld [vmem:[%s251 + $0x178] sm:$0xff]
          %v2294 = vmul.f32 %v2246, 3.0
          %v2295 = vmul.f32 %v2247, 3.0
          %v2296 = vmul.f32 %v2248, 3.0
          %v2297 = vmul.f32 %v2249, 3.0
          %v2298 = vmul.f32 %v2250, 3.0
          %v2299 = vmul.f32 %v2251, 3.0
          %v2300 = vmul.f32 %v2252, 3.0
          %v2301 = vmul.f32 %v2253, 3.0
          %v2302 = vmul.f32 %v2254, 3.0
          %v2303 = vmul.f32 %v2255, 3.0
          %v2304 = vmul.f32 %v2256, 3.0
          %v2305 = vmul.f32 %v2257, 3.0
          %v2306 = vmul.f32 %v2258, 3.0
          %v2307 = vmul.f32 %v2259, 3.0
          %v2308 = vmul.f32 %v2260, 3.0
          %v2309 = vmul.f32 %v2261, 3.0
          %v2310 = vmul.f32 %v2262, 3.0
          %v2311 = vmul.f32 %v2263, 3.0
          %v2312 = vmul.f32 %v2264, 3.0
          %v2313 = vmul.f32 %v2265, 3.0
          %v2314 = vmul.f32 %v2266, 3.0
          %v2315 = vmul.f32 %v2267, 3.0
          %v2316 = vmul.f32 %v2268, 3.0
          %v2317 = vmul.f32 %v2269, 3.0
          %v2318 = vmul.f32 %v2270, 3.0
          %v2319 = vmul.f32 %v2271, 3.0
          %v2320 = vmul.f32 %v2272, 3.0
          %v2321 = vmul.f32 %v2273, 3.0
          %v2322 = vmul.f32 %v2274, 3.0
          %v2323 = vmul.f32 %v2275, 3.0
          %v2324 = vmul.f32 %v2276, 3.0
          %v2325 = vmul.f32 %v2277, 3.0
          %v2326 = vmul.f32 %v2278, 3.0
          %v2327 = vmul.f32 %v2279, 3.0
          %v2328 = vmul.f32 %v2280, 3.0
          %v2329 = vmul.f32 %v2281, 3.0
          %v2330 = vmul.f32 %v2282, 3.0
          %v2331 = vmul.f32 %v2283, 3.0
          %v2332 = vmul.f32 %v2284, 3.0
          %v2333 = vmul.f32 %v2285, 3.0
          %v2334 = vmul.f32 %v2286, 3.0
          %v2335 = vmul.f32 %v2287, 3.0
          %v2336 = vmul.f32 %v2288, 3.0
          %v2337 = vmul.f32 %v2289, 3.0
          %v2338 = vmul.f32 %v2290, 3.0
          %v2339 = vmul.f32 %v2291, 3.0
          %v2340 = vmul.f32 %v2292, 3.0
          %v2341 = vmul.f32 %v2293, 3.0
          %v2342 = vld [vmem:[%s301] sm:$0xff]
          %v2343 = vld [vmem:[%s301 + $0x8] sm:$0xff]
          %v2344 = vld [vmem:[%s301 + $0x10] sm:$0xff]
          %v2345 = vld [vmem:[%s301 + $0x18] sm:$0xff]
          %v2346 = vld [vmem:[%s301 + $0x20] sm:$0xff]
          %v2347 = vld [vmem:[%s301 + $0x28] sm:$0xff]
          %v2348 = vld [vmem:[%s301 + $0x30] sm:$0xff]
          %v2349 = vld [vmem:[%s301 + $0x38] sm:$0xff]
          %v2350 = vld [vmem:[%s301 + $0x40] sm:$0xff]
          %v2351 = vld [vmem:[%s301 + $0x48] sm:$0xff]
          %v2352 = vld [vmem:[%s301 + $0x50] sm:$0xff]
          %v2353 = vld [vmem:[%s301 + $0x58] sm:$0xff]
          %v2354 = vld [vmem:[%s301 + $0x60] sm:$0xff]
          %v2355 = vld [vmem:[%s301 + $0x68] sm:$0xff]
          %v2356 = vld [vmem:[%s301 + $0x70] sm:$0xff]
          %v2357 = vld [vmem:[%s301 + $0x78] sm:$0xff]
          %v2358 = vld [vmem:[%s301 + $0x80] sm:$0xff]
          %v2359 = vld [vmem:[%s301 + $0x88] sm:$0xff]
          %v2360 = vld [vmem:[%s301 + $0x90] sm:$0xff]
          %v2361 = vld [vmem:[%s301 + $0x98] sm:$0xff]
          %v2362 = vld [vmem:[%s301 + $0xa0] sm:$0xff]
          %v2363 = vld [vmem:[%s301 + $0xa8] sm:$0xff]
          %v2364 = vld [vmem:[%s301 + $0xb0] sm:$0xff]
          %v2365 = vld [vmem:[%s301 + $0xb8] sm:$0xff]
          %v2366 = vld [vmem:[%s301 + $0xc0] sm:$0xff]
          %v2367 = vld [vmem:[%s301 + $0xc8] sm:$0xff]
          %v2368 = vld [vmem:[%s301 + $0xd0] sm:$0xff]
          %v2369 = vld [vmem:[%s301 + $0xd8] sm:$0xff]
          %v2370 = vld [vmem:[%s301 + $0xe0] sm:$0xff]
          %v2371 = vld [vmem:[%s301 + $0xe8] sm:$0xff]
          %v2372 = vld [vmem:[%s301 + $0xf0] sm:$0xff]
          %v2373 = vld [vmem:[%s301 + $0xf8] sm:$0xff]
          %v2374 = vld [vmem:[%s301 + $0x100] sm:$0xff]
          %v2375 = vld [vmem:[%s301 + $0x108] sm:$0xff]
          %v2376 = vld [vmem:[%s301 + $0x110] sm:$0xff]
          %v2377 = vld [vmem:[%s301 + $0x118] sm:$0xff]
          %v2378 = vld [vmem:[%s301 + $0x120] sm:$0xff]
          %v2379 = vld [vmem:[%s301 + $0x128] sm:$0xff]
          %v2380 = vld [vmem:[%s301 + $0x130] sm:$0xff]
          %v2381 = vld [vmem:[%s301 + $0x138] sm:$0xff]
          %v2382 = vld [vmem:[%s301 + $0x140] sm:$0xff]
          %v2383 = vld [vmem:[%s301 + $0x148] sm:$0xff]
          %v2384 = vld [vmem:[%s301 + $0x150] sm:$0xff]
          %v2385 = vld [vmem:[%s301 + $0x158] sm:$0xff]
          %v2386 = vld [vmem:[%s301 + $0x160] sm:$0xff]
          %v2387 = vld [vmem:[%s301 + $0x168] sm:$0xff]
          %v2388 = vld [vmem:[%s301 + $0x170] sm:$0xff]
          %v2389 = vld [vmem:[%s301 + $0x178] sm:$0xff]
          %v2390 = vmul.f32 %v2342, 7.0
          %v2391 = vmul.f32 %v2343, 7.0
          %v2392 = vmul.f32 %v2344, 7.0
          %v2393 = vmul.f32 %v2345, 7.0
          %v2394 = vmul.f32 %v2346, 7.0
          %v2395 = vmul.f32 %v2347, 7.0
          %v2396 = vmul.f32 %v2348, 7.0
          %v2397 = vmul.f32 %v2349, 7.0
          %v2398 = vmul.f32 %v2350, 7.0
          %v2399 = vmul.f32 %v2351, 7.0
          %v2400 = vmul.f32 %v2352, 7.0
          %v2401 = vmul.f32 %v2353, 7.0
          %v2402 = vmul.f32 %v2354, 7.0
          %v2403 = vmul.f32 %v2355, 7.0
          %v2404 = vmul.f32 %v2356, 7.0
          %v2405 = vmul.f32 %v2357, 7.0
          %v2406 = vmul.f32 %v2358, 7.0
          %v2407 = vmul.f32 %v2359, 7.0
          %v2408 = vmul.f32 %v2360, 7.0
          %v2409 = vmul.f32 %v2361, 7.0
          %v2410 = vmul.f32 %v2362, 7.0
          %v2411 = vmul.f32 %v2363, 7.0
          %v2412 = vmul.f32 %v2364, 7.0
          %v2413 = vmul.f32 %v2365, 7.0
          %v2414 = vmul.f32 %v2366, 7.0
          %v2415 = vmul.f32 %v2367, 7.0
          %v2416 = vmul.f32 %v2368, 7.0
          %v2417 = vmul.f32 %v2369, 7.0
          %v2418 = vmul.f32 %v2370, 7.0
          %v2419 = vmul.f32 %v2371, 7.0
          %v2420 = vmul.f32 %v2372, 7.0
          %v2421 = vmul.f32 %v2373, 7.0
          %v2422 = vmul.f32 %v2374, 7.0
          %v2423 = vmul.f32 %v2375, 7.0
          %v2424 = vmul.f32 %v2376, 7.0
          %v2425 = vmul.f32 %v2377, 7.0
          %v2426 = vmul.f32 %v2378, 7.0
          %v2427 = vmul.f32 %v2379, 7.0
          %v2428 = vmul.f32 %v2380, 7.0
          %v2429 = vmul.f32 %v2381, 7.0
          %v2430 = vmul.f32 %v2382, 7.0
          %v2431 = vmul.f32 %v2383, 7.0
          %v2432 = vmul.f32 %v2384, 7.0
          %v2433 = vmul.f32 %v2385, 7.0
          %v2434 = vmul.f32 %v2386, 7.0
          %v2435 = vmul.f32 %v2387, 7.0
          %v2436 = vmul.f32 %v2388, 7.0
          %v2437 = vmul.f32 %v2389, 7.0
          %v2438 = vadd.f32 %v2294, %v2390
          %v2439 = vadd.f32 %v2295, %v2391
          %v2440 = vadd.f32 %v2296, %v2392
          %v2441 = vadd.f32 %v2297, %v2393
          %v2442 = vadd.f32 %v2298, %v2394
          %v2443 = vadd.f32 %v2299, %v2395
          %v2444 = vadd.f32 %v2300, %v2396
          %v2445 = vadd.f32 %v2301, %v2397
          %v2446 = vadd.f32 %v2302, %v2398
          %v2447 = vadd.f32 %v2303, %v2399
          %v2448 = vadd.f32 %v2304, %v2400
          %v2449 = vadd.f32 %v2305, %v2401
          %v2450 = vadd.f32 %v2306, %v2402
          %v2451 = vadd.f32 %v2307, %v2403
          %v2452 = vadd.f32 %v2308, %v2404
          %v2453 = vadd.f32 %v2309, %v2405
          %v2454 = vadd.f32 %v2310, %v2406
          %v2455 = vadd.f32 %v2311, %v2407
          %v2456 = vadd.f32 %v2312, %v2408
          %v2457 = vadd.f32 %v2313, %v2409
          %v2458 = vadd.f32 %v2314, %v2410
          %v2459 = vadd.f32 %v2315, %v2411
          %v2460 = vadd.f32 %v2316, %v2412
          %v2461 = vadd.f32 %v2317, %v2413
          %v2462 = vadd.f32 %v2318, %v2414
          %v2463 = vadd.f32 %v2319, %v2415
          %v2464 = vadd.f32 %v2320, %v2416
          %v2465 = vadd.f32 %v2321, %v2417
          %v2466 = vadd.f32 %v2322, %v2418
          %v2467 = vadd.f32 %v2323, %v2419
          %v2468 = vadd.f32 %v2324, %v2420
          %v2469 = vadd.f32 %v2325, %v2421
          %v2470 = vadd.f32 %v2326, %v2422
          %v2471 = vadd.f32 %v2327, %v2423
          %v2472 = vadd.f32 %v2328, %v2424
          %v2473 = vadd.f32 %v2329, %v2425
          %v2474 = vadd.f32 %v2330, %v2426
          %v2475 = vadd.f32 %v2331, %v2427
          %v2476 = vadd.f32 %v2332, %v2428
          %v2477 = vadd.f32 %v2333, %v2429
          %v2478 = vadd.f32 %v2334, %v2430
          %v2479 = vadd.f32 %v2335, %v2431
          %v2480 = vadd.f32 %v2336, %v2432
          %v2481 = vadd.f32 %v2337, %v2433
          %v2482 = vadd.f32 %v2338, %v2434
          %v2483 = vadd.f32 %v2339, %v2435
          %v2484 = vadd.f32 %v2340, %v2436
          %v2485 = vadd.f32 %v2341, %v2437
          %2486 = vst [vmem:[%s301] sm:$0xff] %v2438
          %2487 = vst [vmem:[%s301 + $0x8] sm:$0xff] %v2439
          %2488 = vst [vmem:[%s301 + $0x10] sm:$0xff] %v2440
          %2489 = vst [vmem:[%s301 + $0x18] sm:$0xff] %v2441
          %2490 = vst [vmem:[%s301 + $0x20] sm:$0xff] %v2442
          %2491 = vst [vmem:[%s301 + $0x28] sm:$0xff] %v2443
          %2492 = vst [vmem:[%s301 + $0x30] sm:$0xff] %v2444
          %2493 = vst [vmem:[%s301 + $0x38] sm:$0xff] %v2445
          %2494 = vst [vmem:[%s301 + $0x40] sm:$0xff] %v2446
          %2495 = vst [vmem:[%s301 + $0x48] sm:$0xff] %v2447
          %2496 = vst [vmem:[%s301 + $0x50] sm:$0xff] %v2448
          %2497 = vst [vmem:[%s301 + $0x58] sm:$0xff] %v2449
          %2498 = vst [vmem:[%s301 + $0x60] sm:$0xff] %v2450
          %2499 = vst [vmem:[%s301 + $0x68] sm:$0xff] %v2451
          %2500 = vst [vmem:[%s301 + $0x70] sm:$0xff] %v2452
          %2501 = vst [vmem:[%s301 + $0x78] sm:$0xff] %v2453
          %2502 = vst [vmem:[%s301 + $0x80] sm:$0xff] %v2454
          %2503 = vst [vmem:[%s301 + $0x88] sm:$0xff] %v2455
          %2504 = vst [vmem:[%s301 + $0x90] sm:$0xff] %v2456
          %2505 = vst [vmem:[%s301 + $0x98] sm:$0xff] %v2457
          %2506 = vst [vmem:[%s301 + $0xa0] sm:$0xff] %v2458
          %2507 = vst [vmem:[%s301 + $0xa8] sm:$0xff] %v2459
          %2508 = vst [vmem:[%s301 + $0xb0] sm:$0xff] %v2460
          %2509 = vst [vmem:[%s301 + $0xb8] sm:$0xff] %v2461
          %2510 = vst [vmem:[%s301 + $0xc0] sm:$0xff] %v2462
          %2511 = vst [vmem:[%s301 + $0xc8] sm:$0xff] %v2463
          %2512 = vst [vmem:[%s301 + $0xd0] sm:$0xff] %v2464
          %2513 = vst [vmem:[%s301 + $0xd8] sm:$0xff] %v2465
          %2514 = vst [vmem:[%s301 + $0xe0] sm:$0xff] %v2466
          %2515 = vst [vmem:[%s301 + $0xe8] sm:$0xff] %v2467
          %2516 = vst [vmem:[%s301 + $0xf0] sm:$0xff] %v2468
          %2517 = vst [vmem:[%s301 + $0xf8] sm:$0xff] %v2469
          %2518 = vst [vmem:[%s301 + $0x100] sm:$0xff] %v2470
          %2519 = vst [vmem:[%s301 + $0x108] sm:$0xff] %v2471
          %2520 = vst [vmem:[%s301 + $0x110] sm:$0xff] %v2472
          %2521 = vst [vmem:[%s301 + $0x118] sm:$0xff] %v2473
          %2522 = vst [vmem:[%s301 + $0x120] sm:$0xff] %v2474
          %2523 = vst [vmem:[%s301 + $0x128] sm:$0xff] %v2475
          %2524 = vst [vmem:[%s301 + $0x130] sm:$0xff] %v2476
          %2525 = vst [vmem:[%s301 + $0x138] sm:$0xff] %v2477
          %2526 = vst [vmem:[%s301 + $0x140] sm:$0xff] %v2478
          %2527 = vst [vmem:[%s301 + $0x148] sm:$0xff] %v2479
          %2528 = vst [vmem:[%s301 + $0x150] sm:$0xff] %v2480
          %2529 = vst [vmem:[%s301 + $0x158] sm:$0xff] %v2481
          %2530 = vst [vmem:[%s301 + $0x160] sm:$0xff] %v2482
          %2531 = vst [vmem:[%s301 + $0x168] sm:$0xff] %v2483
          %2532 = vst [vmem:[%s301 + $0x170] sm:$0xff] %v2484
          %2533 = vst [vmem:[%s301 + $0x178] sm:$0xff] %v2485
        $region52: #{tpu_custom_call.1} parent=31 // pred_fallthru
          _
        %s2534 = sand.u32 %s136, 1
        %s2535 = scalar_lea.sflag [#allocation4], %s2534
        %s2536 = sand.u32 %s136, 1
        %s2537 = smul.addr %s2536, 384
        %s2538 = scalar_lea.vmem [#allocation8], %s2537
        // Predicated region
        $region53: #{tpu_custom_call.1} parent=31 // pred_check
          %p2539 = pneg %p146
        $region54: #{tpu_custom_call.1} parent=31 // pred_check_branch
          %2541 = sbr.rel (%p2539) target = $region56
        $region55: #{tpu_custom_call.1} parent=31 // pred_region
          %s2542 = smul.u32 16, %s28
          %s2543 = smul.u32 3, %s29
          %s2545 = ssub.s32 6144, 6144
          %2546 = vsyncadd %s2535, %s2545
          %s2547 = smul.addr %s2542, 3
          %s2548 = sadd.s32 %s2543, %s2547
          %s2549 = smul.addr %s2548, 128
          %s2550 = scalar_lea.hbm %s3, %s2549
          %s2551 = sshll.u32 %s2538, 4
          %s2552 = int_to_ptr.vmem [resolvable:$true] %s2551
          %2557 = dma.vmem_to_hbm [thread:$0]  %s2552, 6144, %s2550, %s2535, 384, 384, 24
        $region56: #{tpu_custom_call.1} parent=31 // pred_fallthru
          _
      $region32: #{tpu_custom_call.1} parent=5 // pred_fallthru
        _
      %p2558 = scmp.le.s32.totalorder 2, %s18
      // Predicated region
      $region57: #{tpu_custom_call.1} parent=5 // pred_check
        %p2559 = pneg %p2558
      $region58: #{tpu_custom_call.1} parent=5 // pred_check_branch
        %2561 = sbr.rel (%p2559) target = $region60
      $region59: #{tpu_custom_call.1} parent=5 // pred_region
        %s2562 = ssub.s32 %s18, 2
        // Predicated region
        $region61: #{tpu_custom_call.1} parent=59 // pred_check
          %p2563 = pneg %p152
        $region62: #{tpu_custom_call.1} parent=59 // pred_check_branch
          %2565 = sbr.rel (%p2563) target = $region64
        $region63: #{tpu_custom_call.1} parent=59 // pred_region
          %s2566 = sand.u32 %s137, 1
          %s2567 = scalar_lea.sflag [#allocation4], %s2566
          %s2568 = sand.u32 %s137, 1
          %s2569 = smul.addr %s2568, 384
          %s2570 = scalar_lea.vmem [#allocation8], %s2569
          %2571 = dma.done %s2567, 6144
        $region64: #{tpu_custom_call.1} parent=59 // pred_fallthru
          _
      $region60: #{tpu_custom_call.1} parent=5 // pred_fallthru
        _
    $region6: #{tpu_custom_call.1} parent=1 // loop_footer
      %s22 = sadd.s32 1, %s18
    $region7: #{tpu_custom_call.1} parent=1 // loop_footer_branch
      %17 = sbr.rel target = $region3
    $region8: #{tpu_custom_call.1} parent=1 // loop_exit
      _
    %2572 = vsyncpa [#allocation3], 1
    %s2573 = scalar_lea.sflag [#allocation3], 1
    %2574 = vsyncpa %s2573, 1
    %2575 = vsyncpa [#allocation6], 1
    %s2576 = scalar_lea.sflag [#allocation6], 1
    %2577 = vsyncpa %s2576, 1
    %2578 = vsyncpa [#allocation4], 1
    %s2579 = scalar_lea.sflag [#allocation4], 1
    %2580 = vsyncpa %s2579, 1

</llo_original>
